<compile_context>
chip_gen: v6e
topology: v6e:2x2x1
jax: 0.10.0
libtpu: 0.0.40
codegen_flags: <defaults>
</compile_context>

<pallas_src>
import numpy as np
import jax
import jax.numpy as jnp
from jax import lax
from jax.experimental import pallas as pl
from jax.experimental.pallas import tpu as pltpu

# ---------------- configuration (small shapes consistent with the module) ----------
IN_CHANNELS = 16          # C (divisible by 4 for gate_net)
GATHER_WIDTH = 32         # G
PROP_ITER = 4
DIST_CUTOFF = 3.5
N_GRAPHS = 2              # B
N_PER_GRAPH = 8           # NP nodes per graph (graphs padded to equal size)
N_EDGES_PER_GRAPH = 20    # synthetic directed edges per graph (before self loops)

H1 = int(GATHER_WIDTH / 1.5)   # 21
H2 = int(GATHER_WIDTH / 2)     # 16

_LANE_ALIGN = 128


def _aligned(n):
    return ((n + _LANE_ALIGN - 1) // _LANE_ALIGN) * _LANE_ALIGN


# ---------------- packed parameter layouts (static, shared by host + kernel) -------
def _make_weight_layout():
    C, G = IN_CHANNELS, GATHER_WIDTH
    entries = [
        # name,        rows,   cols
        ("ggc_w",      C,      PROP_ITER * C),  # 4 propagation matrices, layer l at +l*C
        ("gru_wih3",   C,      3 * C),          # fused GRU input weights  (r|z|n)
        ("gru_whh3",   C,      3 * C),          # fused GRU hidden weights (r|z|n)
        ("gate_w1t",   C // 2, C),              # gate_net layer-1 weight, pre-transposed
        ("attn_i_w1",  2 * C,  C),
        ("attn_i_w2",  C,      G),
        ("attn_j_w1",  C,      G),
        ("out_w1",     G,      H1),
        ("out_w2",     H1,     H2),
        ("out_w3",     H2,     1),
    ]
    layout, off = {}, 0
    for name, r, c in entries:
        layout[name] = (r, off, c)
        off += _aligned(c)        # 128-lane aligned slots: slices never straddle tiles
    return layout, off


def _make_bias_layout():
    C, G = IN_CHANNELS, GATHER_WIDTH
    entries = [
        ("gru_bih3", 3 * C), ("gru_bhh3", 3 * C),
        ("attn_i_b1", C), ("attn_i_b2", G), ("attn_j_b1", G),
        ("out_b1", H1), ("out_b2", H2), ("out_b3", 1),
    ]
    layout, off = {}, 0
    for name, c in entries:
        layout[name] = (off, c)
        off += _aligned(c)
    return layout, off


W_LAYOUT, W_COLS = _make_weight_layout()
W_ROWS = max(r for r, _, _ in W_LAYOUT.values())          # 32
B_LAYOUT, B_COLS = _make_bias_layout()

# gate_net layer-2/3 weights and all gate biases live in SMEM as scalars.
GATE_B1_OFF = 0
GATE_W2_OFF = GATE_B1_OFF + IN_CHANNELS // 2
GATE_B2_OFF = GATE_W2_OFF + (IN_CHANNELS // 2) * (IN_CHANNELS // 4)
GATE_W3_OFF = GATE_B2_OFF + IN_CHANNELS // 4
GATE_B3_OFF = GATE_W3_OFF + IN_CHANNELS // 4
GATE_NSCAL = GATE_B3_OFF + 1


def _softsign(v):
    return v * pl.reciprocal(1.0 + jnp.abs(v), approx=True)


# --------------------------------- the kernel --------------------------------------
def gcn_kernel(x_ref, adj_ref, nmask_ref, wp_ref, bp_ref, gate_ref, out_ref):
    C, G = IN_CHANNELS, GATHER_WIDTH
    f32 = jnp.float32

    def w(name):
        r, off, c = W_LAYOUT[name]
        return wp_ref[pl.ds(0, r), pl.ds(off, c)]

    def w_sub(name, extra, ncols):
        r, off, _ = W_LAYOUT[name]
        return wp_ref[pl.ds(0, r), pl.ds(off + extra, ncols)]

    def bias(name):
        off, c = B_LAYOUT[name]
        return bp_ref[pl.ds(0, 1), pl.ds(off, c)]

    x = x_ref[0]                         # [NP, C]   node_feat_0
    adj = adj_ref[0]                     # [NP, NP]  dense edge weights, [target, source]
    mask = adj > 0.0                     # edge mask (all stored weights are > 0)

    # hoisted (layer-invariant) parameters
    w1t = w("gate_w1t")                  # [C/2, C]
    wih3 = w("gru_wih3")                 # [C, 3C]
    whh3 = w("gru_whh3")                 # [C, 3C]
    bih3 = bias("gru_bih3")              # [1, 3C]
    bhh3 = bias("gru_bhh3")              # [1, 3C]
    gate_b1 = [gate_ref[GATE_B1_OFF + k] for k in range(C // 2)]
    gate_w2 = [[gate_ref[GATE_W2_OFF + k * (C // 4) + j] for j in range(C // 4)]
               for k in range(C // 2)]
    gate_b2 = [gate_ref[GATE_B2_OFF + j] for j in range(C // 4)]
    gate_w3 = [gate_ref[GATE_W3_OFF + j] for j in range(C // 4)]
    gate_b3 = gate_ref[GATE_B3_OFF]

    # ---------- GatedGraphConv(in_channels, prop_iter) with attention aggregation ---
    h = x
    for layer in range(PROP_ITER):                       # static unroll, prop_iter = 4
        wl = w_sub("ggc_w", layer * C, C)                                 # [C, C]
        m = jnp.dot(h, wl, preferred_element_type=f32)                    # [NP, C]

        # gate_net on per-edge messages msg[t,s,:] = adj[t,s] * m[s,:].
        # layer 1 pre-activation = adj[t,s] * (m @ W1)[s,k] + b1[k]; compute
        # p1t = (m @ W1)^T lane-dense via an A @ B^T dot (flash-attn pattern).
        p1t = lax.dot_general(w1t, m, (((1,), (1,)), ((), ())),
                              preferred_element_type=f32)                 # [C/2, NP]
        s1 = [_softsign(adj * p1t[k:k + 1, :] + gate_b1[k])
              for k in range(C // 2)]                                     # [NP, NP] each
        s2 = []
        for j in range(C // 4):
            z = gate_b2[j]
            for k in range(C // 2):
                z = z + gate_w2[k][j] * s1[k]
            s2.append(_softsign(z))
        gate = gate_b3
        for j in range(C // 4):
            gate = gate + gate_w3[j] * s2[j]                              # [NP, NP]

        # masked, shift-stabilized softmax over incoming edges of each target row
        gmax = jnp.maximum(
            jnp.max(jnp.where(mask, gate, -1e30), axis=1, keepdims=True), 0.0)
        e = jnp.where(mask, jnp.exp(gate - gmax), 0.0)                    # [NP, NP]
        denom = jnp.sum(e, axis=1, keepdims=True)                         # [NP, 1]
        num = jnp.dot(e * adj, m, preferred_element_type=f32)             # [NP, C]
        agg = num * pl.reciprocal(jnp.maximum(denom, 1e-30), approx=True)

        # fused GRUCell(agg, h): r | z | n lane blocks (torch.nn.GRUCell ordering)
        gi = jnp.dot(agg, wih3, preferred_element_type=f32) + bih3        # [NP, 3C]
        gh = jnp.dot(h, whh3, preferred_element_type=f32) + bhh3          # [NP, 3C]
        r = jax.nn.sigmoid(gi[:, 0:C] + gh[:, 0:C])
        zg = jax.nn.sigmoid(gi[:, C:2 * C] + gh[:, C:2 * C])
        nk = jnp.tanh(gi[:, 2 * C:3 * C] + r * gh[:, 2 * C:3 * C])
        h = (1.0 - zg) * nk + zg * h

    node_feat_1 = h

    # ---------- attention: softmax(attn_net_i([h, x]), dim=1) * attn_net_j(x) -------
    cat = jnp.concatenate([node_feat_1, x], axis=1)                       # [NP, 2C]
    ai = _softsign(jnp.dot(cat, w("attn_i_w1"), preferred_element_type=f32)
                   + bias("attn_i_b1"))                                   # [NP, C]
    ai = _softsign(jnp.dot(ai, w("attn_i_w2"), preferred_element_type=f32)
                   + bias("attn_i_b2"))                                   # [NP, G]
    ai = jnp.exp(ai - jnp.max(ai, axis=1, keepdims=True))
    ai = ai * pl.reciprocal(jnp.sum(ai, axis=1, keepdims=True), approx=True)
    aj = _softsign(jnp.dot(x, w("attn_j_w1"), preferred_element_type=f32)
                   + bias("attn_j_b1"))                                   # [NP, G]
    attn = ai * aj                                                        # [NP, G]

    # ---------- masked global_add_pool (per-graph) + output MLP ---------------------
    pool = jnp.dot(nmask_ref[0], attn, preferred_element_type=f32)        # [1, G]
    o = jnp.maximum(jnp.dot(pool, w("out_w1"), preferred_element_type=f32)
                    + bias("out_b1"), 0.0)
    o = jnp.maximum(jnp.dot(o, w("out_w2"), preferred_element_type=f32)
                    + bias("out_b2"), 0.0)
    o = jnp.dot(o, w("out_w3"), preferred_element_type=f32) + bias("out_b3")   # [1, 1]
    out_ref[0] = o


# --------------------------------- wrapper -----------------------------------------
def gcn_forward(x, adj, node_mask, w_pack, b_pack, gate_scalars):
    B = x.shape[0]
    out = pl.pallas_call(
        gcn_kernel,
        out_shape=jax.ShapeDtypeStruct((B, 1, 1), jnp.float32),
        grid=(B,),
        in_specs=[
            pl.BlockSpec((1, N_PER_GRAPH, IN_CHANNELS), lambda b: (b, 0, 0)),
            pl.BlockSpec((1, N_PER_GRAPH, N_PER_GRAPH), lambda b: (b, 0, 0)),
            pl.BlockSpec((1, 1, N_PER_GRAPH), lambda b: (b, 0, 0)),
            pl.BlockSpec((W_ROWS, W_COLS), lambda b: (0, 0)),
            pl.BlockSpec((1, B_COLS), lambda b: (0, 0)),
            pl.BlockSpec(memory_space=pltpu.MemorySpace.SMEM),
        ],
        out_specs=pl.BlockSpec((1, 1, 1), lambda b: (b, 0, 0)),
        compiler_params=pltpu.CompilerParams(
            dimension_semantics=("parallel",)),
    )(x, adj, node_mask, w_pack, b_pack, gate_scalars)
    return out.reshape(B, 1)


# --------------------------------- parameter init + packing ------------------------
def init_params(key):
    C, G = IN_CHANNELS, GATHER_WIDTH
    raw_shapes = [
        ("ggc_w", (C, PROP_ITER * C)),
        ("gru_wih3", (C, 3 * C)), ("gru_whh3", (C, 3 * C)),
        ("gate_w1", (C, C // 2)), ("gate_w2", (C // 2, C // 4)), ("gate_w3", (C // 4,)),
        ("gate_b1", (C // 2,)), ("gate_b2", (C // 4,)), ("gate_b3", (1,)),
        ("attn_i_w1", (2 * C, C)), ("attn_i_w2", (C, G)), ("attn_j_w1", (C, G)),
        ("out_w1", (G, H1)), ("out_w2", (H1, H2)), ("out_w3", (H2, 1)),
        ("gru_bih3", (3 * C,)), ("gru_bhh3", (3 * C,)),
        ("attn_i_b1", (C,)), ("attn_i_b2", (G,)), ("attn_j_b1", (G,)),
        ("out_b1", (H1,)), ("out_b2", (H2,)), ("out_b3", (1,)),
    ]
    keys = jax.random.split(key, len(raw_shapes))
    raw = {name: 0.1 * np.asarray(jax.random.normal(k, shape, dtype=jnp.float32))
           for (name, shape), k in zip(raw_shapes, keys)}

    w_pack = np.zeros((W_ROWS, W_COLS), dtype=np.float32)

    def put_w(name, arr):
        r, off, c = W_LAYOUT[name]
        assert arr.shape == (r, c), (name, arr.shape, (r, c))
        w_pack[:r, off:off + c] = arr

    put_w("ggc_w", raw["ggc_w"])
    put_w("gru_wih3", raw["gru_wih3"])
    put_w("gru_whh3", raw["gru_whh3"])
    put_w("gate_w1t", raw["gate_w1"].T)          # stored pre-transposed: [C/2, C]
    put_w("attn_i_w1", raw["attn_i_w1"])
    put_w("attn_i_w2", raw["attn_i_w2"])
    put_w("attn_j_w1", raw["attn_j_w1"])
    put_w("out_w1", raw["out_w1"])
    put_w("out_w2", raw["out_w2"])
    put_w("out_w3", raw["out_w3"])

    b_pack = np.zeros((1, B_COLS), dtype=np.float32)
    for name, (off, c) in B_LAYOUT.items():
        b_pack[0, off:off + c] = raw[name]

    gate_scal = np.zeros((GATE_NSCAL,), dtype=np.float32)
    gate_scal[GATE_B1_OFF:GATE_B1_OFF + C // 2] = raw["gate_b1"]
    gate_scal[GATE_W2_OFF:GATE_W2_OFF + (C // 2) * (C // 4)] = raw["gate_w2"].reshape(-1)
    gate_scal[GATE_B2_OFF:GATE_B2_OFF + C // 4] = raw["gate_b2"]
    gate_scal[GATE_W3_OFF:GATE_W3_OFF + C // 4] = raw["gate_w3"]
    gate_scal[GATE_B3_OFF] = raw["gate_b3"][0]

    return jnp.asarray(w_pack), jnp.asarray(b_pack), jnp.asarray(gate_scal)


# ------------------------------------ demo ------------------------------------------
if __name__ == "__main__":
    key = jax.random.PRNGKey(0)
    k_x, k_e, k_w, k_p = jax.random.split(key, 4)

    B, NP, C = N_GRAPHS, N_PER_GRAPH, IN_CHANNELS
    x = jax.random.normal(k_x, (B, NP, C), dtype=jnp.float32)

    # host glue: per-graph synthetic edges + self loops (weight 1.0) + distance cutoff,
    # densified into [target, source] adjacency (graphs are block-diagonal -> exact per-graph grid).
    all_pairs = np.array([(s, t) for s in range(NP) for t in range(NP) if s != t],
                         dtype=np.int32)
    eks = jax.random.split(k_e, B)
    wks = jax.random.split(k_w, B)
    adj_np = np.zeros((B, NP, NP), dtype=np.float32)
    for g in range(B):
        perm = np.asarray(jax.random.permutation(eks[g], all_pairs.shape[0]))
        pairs = all_pairs[perm[:N_EDGES_PER_GRAPH]]
        src = pairs[:, 0]
        tgt = pairs[:, 1]
        wgt = np.asarray(jax.random.uniform(wks[g], (N_EDGES_PER_GRAPH,),
                                            minval=0.5, maxval=6.0, dtype=jnp.float32))
        src = np.concatenate([src, np.arange(NP)])
        tgt = np.concatenate([tgt, np.arange(NP)])
        wgt = np.concatenate([wgt, np.ones(NP, dtype=np.float32)]).astype(np.float32)
        keep = wgt <= DIST_CUTOFF
        adj_np[g, tgt[keep], src[keep]] = wgt[keep]
    adj = jnp.asarray(adj_np)

    node_mask = jnp.ones((B, 1, NP), dtype=jnp.float32)   # all nodes valid (no padding)

    w_pack, b_pack, gate_scal = init_params(k_p)

    out = gcn_forward(x, adj, node_mask, w_pack, b_pack, gate_scal)
    out = jax.block_until_ready(out)
    assert out.shape == (B, 1)
    assert np.all(np.isfinite(np.asarray(out)))
    print("KERNEL_OK")
</pallas_src>

<mosaic_0001>
module attributes {stable_mosaic.version = 11 : i64} {
  func.func @gcn_kernel(%arg0: i32, %arg1: memref<1x8x16xf32, #tpu.memory_space<vmem>>, %arg2: memref<1x8x8xf32, #tpu.memory_space<vmem>>, %arg3: memref<1x1x8xf32, #tpu.memory_space<vmem>>, %arg4: memref<32x1280xf32, #tpu.memory_space<vmem>>, %arg5: memref<1x1024xf32, #tpu.memory_space<vmem>>, %arg6: memref<49xf32, #tpu.memory_space<smem>>, %arg7: memref<1x1x1xf32, #tpu.memory_space<vmem>>) attributes {dimension_semantics = [#tpu.dimension_semantics<parallel>], iteration_bounds = array<i64: 2>, scalar_prefetch = 0 : i64, scratch_operands = 0 : i64, tpu.core_type = #tpu.core_type<tc>, window_params = [{transform_indices = @transform_0, window_bounds = array<i64: 1, 8, 16>}, {transform_indices = @transform_1, window_bounds = array<i64: 1, 8, 8>}, {transform_indices = @transform_2, window_bounds = array<i64: 1, 1, 8>}, {pipeline_mode = #tpu.pipeline_mode<synchronous>, transform_indices = @transform_3, window_bounds = array<i64: 32, 1280>}, {pipeline_mode = #tpu.pipeline_mode<synchronous>, transform_indices = @transform_4, window_bounds = array<i64: 1, 1024>}, {transform_indices = @transform_5, window_bounds = array<i64: 49>}, {transform_indices = @transform_6, window_bounds = array<i64: 1, 1, 1>}]} {
    %c0 = arith.constant 0 : index
    %c0_0 = arith.constant 0 : index
    %c0_1 = arith.constant 0 : index
    %0 = vector.load %arg1[%c0, %c0_0, %c0_1] : memref<1x8x16xf32, #tpu.memory_space<vmem>>, vector<1x8x16xf32>
    %1 = vector.shape_cast %0 : vector<1x8x16xf32> to vector<8x16xf32>
    %c0_2 = arith.constant 0 : index
    %c0_3 = arith.constant 0 : index
    %c0_4 = arith.constant 0 : index
    %2 = vector.load %arg2[%c0_2, %c0_3, %c0_4] : memref<1x8x8xf32, #tpu.memory_space<vmem>>, vector<1x8x8xf32>
    %3 = vector.shape_cast %2 : vector<1x8x8xf32> to vector<8x8xf32>
    %cst = arith.constant 0.000000e+00 : f32
    %4 = vector.broadcast %cst : f32 to vector<8x8xf32>
    %5 = arith.cmpf ogt, %3, %4 : vector<8x8xf32>
    %c0_5 = arith.constant 0 : index
    %c384 = arith.constant 384 : index
    %6 = vector.load %arg4[%c0_5, %c384] : memref<32x1280xf32, #tpu.memory_space<vmem>>, vector<8x16xf32>
    %c0_6 = arith.constant 0 : index
    %c128 = arith.constant 128 : index
    %7 = vector.load %arg4[%c0_6, %c128] : memref<32x1280xf32, #tpu.memory_space<vmem>>, vector<16x48xf32>
    %c0_7 = arith.constant 0 : index
    %c256 = arith.constant 256 : index
    %8 = vector.load %arg4[%c0_7, %c256] : memref<32x1280xf32, #tpu.memory_space<vmem>>, vector<16x48xf32>
    %c0_8 = arith.constant 0 : index
    %c0_9 = arith.constant 0 : index
    %9 = vector.load %arg5[%c0_8, %c0_9] : memref<1x1024xf32, #tpu.memory_space<vmem>>, vector<1x48xf32>
    %c0_10 = arith.constant 0 : index
    %c128_11 = arith.constant 128 : index
    %10 = vector.load %arg5[%c0_10, %c128_11] : memref<1x1024xf32, #tpu.memory_space<vmem>>, vector<1x48xf32>
    %c0_12 = arith.constant 0 : index
    %11 = memref.load %arg6[%c0_12] : memref<49xf32, #tpu.memory_space<smem>>
    %c1 = arith.constant 1 : index
    %12 = memref.load %arg6[%c1] : memref<49xf32, #tpu.memory_space<smem>>
    %c2 = arith.constant 2 : index
    %13 = memref.load %arg6[%c2] : memref<49xf32, #tpu.memory_space<smem>>
    %c3 = arith.constant 3 : index
    %14 = memref.load %arg6[%c3] : memref<49xf32, #tpu.memory_space<smem>>
    %c4 = arith.constant 4 : index
    %15 = memref.load %arg6[%c4] : memref<49xf32, #tpu.memory_space<smem>>
    %c5 = arith.constant 5 : index
    %16 = memref.load %arg6[%c5] : memref<49xf32, #tpu.memory_space<smem>>
    %c6 = arith.constant 6 : index
    %17 = memref.load %arg6[%c6] : memref<49xf32, #tpu.memory_space<smem>>
    %c7 = arith.constant 7 : index
    %18 = memref.load %arg6[%c7] : memref<49xf32, #tpu.memory_space<smem>>
    %c8 = arith.constant 8 : index
    %19 = memref.load %arg6[%c8] : memref<49xf32, #tpu.memory_space<smem>>
    %c9 = arith.constant 9 : index
    %20 = memref.load %arg6[%c9] : memref<49xf32, #tpu.memory_space<smem>>
    %c10 = arith.constant 10 : index
    %21 = memref.load %arg6[%c10] : memref<49xf32, #tpu.memory_space<smem>>
    %c11 = arith.constant 11 : index
    %22 = memref.load %arg6[%c11] : memref<49xf32, #tpu.memory_space<smem>>
    %c12 = arith.constant 12 : index
    %23 = memref.load %arg6[%c12] : memref<49xf32, #tpu.memory_space<smem>>
    %c13 = arith.constant 13 : index
    %24 = memref.load %arg6[%c13] : memref<49xf32, #tpu.memory_space<smem>>
    %c14 = arith.constant 14 : index
    %25 = memref.load %arg6[%c14] : memref<49xf32, #tpu.memory_space<smem>>
    %c15 = arith.constant 15 : index
    %26 = memref.load %arg6[%c15] : memref<49xf32, #tpu.memory_space<smem>>
    %c16 = arith.constant 16 : index
    %27 = memref.load %arg6[%c16] : memref<49xf32, #tpu.memory_space<smem>>
    %c17 = arith.constant 17 : index
    %28 = memref.load %arg6[%c17] : memref<49xf32, #tpu.memory_space<smem>>
    %c18 = arith.constant 18 : index
    %29 = memref.load %arg6[%c18] : memref<49xf32, #tpu.memory_space<smem>>
    %c19 = arith.constant 19 : index
    %30 = memref.load %arg6[%c19] : memref<49xf32, #tpu.memory_space<smem>>
    %c20 = arith.constant 20 : index
    %31 = memref.load %arg6[%c20] : memref<49xf32, #tpu.memory_space<smem>>
    %c21 = arith.constant 21 : index
    %32 = memref.load %arg6[%c21] : memref<49xf32, #tpu.memory_space<smem>>
    %c22 = arith.constant 22 : index
    %33 = memref.load %arg6[%c22] : memref<49xf32, #tpu.memory_space<smem>>
    %c23 = arith.constant 23 : index
    %34 = memref.load %arg6[%c23] : memref<49xf32, #tpu.memory_space<smem>>
    %c24 = arith.constant 24 : index
    %35 = memref.load %arg6[%c24] : memref<49xf32, #tpu.memory_space<smem>>
    %c25 = arith.constant 25 : index
    %36 = memref.load %arg6[%c25] : memref<49xf32, #tpu.memory_space<smem>>
    %c26 = arith.constant 26 : index
    %37 = memref.load %arg6[%c26] : memref<49xf32, #tpu.memory_space<smem>>
    %c27 = arith.constant 27 : index
    %38 = memref.load %arg6[%c27] : memref<49xf32, #tpu.memory_space<smem>>
    %c28 = arith.constant 28 : index
    %39 = memref.load %arg6[%c28] : memref<49xf32, #tpu.memory_space<smem>>
    %c29 = arith.constant 29 : index
    %40 = memref.load %arg6[%c29] : memref<49xf32, #tpu.memory_space<smem>>
    %c30 = arith.constant 30 : index
    %41 = memref.load %arg6[%c30] : memref<49xf32, #tpu.memory_space<smem>>
    %c31 = arith.constant 31 : index
    %42 = memref.load %arg6[%c31] : memref<49xf32, #tpu.memory_space<smem>>
    %c32 = arith.constant 32 : index
    %43 = memref.load %arg6[%c32] : memref<49xf32, #tpu.memory_space<smem>>
    %c33 = arith.constant 33 : index
    %44 = memref.load %arg6[%c33] : memref<49xf32, #tpu.memory_space<smem>>
    %c34 = arith.constant 34 : index
    %45 = memref.load %arg6[%c34] : memref<49xf32, #tpu.memory_space<smem>>
    %c35 = arith.constant 35 : index
    %46 = memref.load %arg6[%c35] : memref<49xf32, #tpu.memory_space<smem>>
    %c36 = arith.constant 36 : index
    %47 = memref.load %arg6[%c36] : memref<49xf32, #tpu.memory_space<smem>>
    %c37 = arith.constant 37 : index
    %48 = memref.load %arg6[%c37] : memref<49xf32, #tpu.memory_space<smem>>
    %c38 = arith.constant 38 : index
    %49 = memref.load %arg6[%c38] : memref<49xf32, #tpu.memory_space<smem>>
    %c39 = arith.constant 39 : index
    %50 = memref.load %arg6[%c39] : memref<49xf32, #tpu.memory_space<smem>>
    %c40 = arith.constant 40 : index
    %51 = memref.load %arg6[%c40] : memref<49xf32, #tpu.memory_space<smem>>
    %c41 = arith.constant 41 : index
    %52 = memref.load %arg6[%c41] : memref<49xf32, #tpu.memory_space<smem>>
    %c42 = arith.constant 42 : index
    %53 = memref.load %arg6[%c42] : memref<49xf32, #tpu.memory_space<smem>>
    %c43 = arith.constant 43 : index
    %54 = memref.load %arg6[%c43] : memref<49xf32, #tpu.memory_space<smem>>
    %c44 = arith.constant 44 : index
    %55 = memref.load %arg6[%c44] : memref<49xf32, #tpu.memory_space<smem>>
    %c45 = arith.constant 45 : index
    %56 = memref.load %arg6[%c45] : memref<49xf32, #tpu.memory_space<smem>>
    %c46 = arith.constant 46 : index
    %57 = memref.load %arg6[%c46] : memref<49xf32, #tpu.memory_space<smem>>
    %c47 = arith.constant 47 : index
    %58 = memref.load %arg6[%c47] : memref<49xf32, #tpu.memory_space<smem>>
    %c48 = arith.constant 48 : index
    %59 = memref.load %arg6[%c48] : memref<49xf32, #tpu.memory_space<smem>>
    %c0_13 = arith.constant 0 : index
    %c0_14 = arith.constant 0 : index
    %60 = vector.load %arg4[%c0_13, %c0_14] : memref<32x1280xf32, #tpu.memory_space<vmem>>, vector<16x16xf32>
    %cst_15 = arith.constant dense<0.000000e+00> : vector<8x16xf32>
    %61 = tpu.matmul %1, %60, %cst_15 {dimension_numbers = #tpu.dot_dimension_numbers<[1], [0], [0], [1], [0, 0, 1, 1], [], []>} : vector<8x16xf32>, vector<16x16xf32>, vector<8x16xf32> -> vector<8x16xf32>
    %cst_16 = arith.constant dense<0.000000e+00> : vector<8x8xf32>
    %62 = tpu.matmul %6, %61, %cst_16 {dimension_numbers = #tpu.dot_dimension_numbers<[1], [1], [0], [0], [0, 0, 1, 0], [], []>} : vector<8x16xf32>, vector<8x16xf32>, vector<8x8xf32> -> vector<8x8xf32>
    %63 = vector.extract_strided_slice %62 {offsets = [0, 0], sizes = [1, 8], strides = [1, 1]} : vector<8x8xf32> to vector<1x8xf32>
    %64 = vector.broadcast %63 : vector<1x8xf32> to vector<8x8xf32>
    %65 = arith.mulf %3, %64 : vector<8x8xf32>
    %66 = vector.broadcast %11 : f32 to vector<8x8xf32>
    %67 = arith.addf %65, %66 : vector<8x8xf32>
    %68 = math.absf %67 : vector<8x8xf32>
    %cst_17 = arith.constant 1.000000e+00 : f32
    %69 = vector.broadcast %cst_17 : f32 to vector<8x8xf32>
    %70 = arith.addf %69, %68 : vector<8x8xf32>
    %71 = tpu.reciprocal %70 {approx = true} : vector<8x8xf32> -> vector<8x8xf32>
    %72 = arith.mulf %67, %71 : vector<8x8xf32>
    %73 = vector.extract_strided_slice %62 {offsets = [1, 0], sizes = [1, 8], strides = [1, 1]} : vector<8x8xf32> to vector<1x8xf32>
    %74 = vector.broadcast %73 : vector<1x8xf32> to vector<8x8xf32>
    %75 = arith.mulf %3, %74 : vector<8x8xf32>
    %76 = vector.broadcast %12 : f32 to vector<8x8xf32>
    %77 = arith.addf %75, %76 : vector<8x8xf32>
    %78 = math.absf %77 : vector<8x8xf32>
    %cst_18 = arith.constant 1.000000e+00 : f32
    %79 = vector.broadcast %cst_18 : f32 to vector<8x8xf32>
    %80 = arith.addf %79, %78 : vector<8x8xf32>
    %81 = tpu.reciprocal %80 {approx = true} : vector<8x8xf32> -> vector<8x8xf32>
    %82 = arith.mulf %77, %81 : vector<8x8xf32>
    %83 = vector.extract_strided_slice %62 {offsets = [2, 0], sizes = [1, 8], strides = [1, 1]} : vector<8x8xf32> to vector<1x8xf32>
    %84 = vector.broadcast %83 : vector<1x8xf32> to vector<8x8xf32>
    %85 = arith.mulf %3, %84 : vector<8x8xf32>
    %86 = vector.broadcast %13 : f32 to vector<8x8xf32>
    %87 = arith.addf %85, %86 : vector<8x8xf32>
    %88 = math.absf %87 : vector<8x8xf32>
    %cst_19 = arith.constant 1.000000e+00 : f32
    %89 = vector.broadcast %cst_19 : f32 to vector<8x8xf32>
    %90 = arith.addf %89, %88 : vector<8x8xf32>
    %91 = tpu.reciprocal %90 {approx = true} : vector<8x8xf32> -> vector<8x8xf32>
    %92 = arith.mulf %87, %91 : vector<8x8xf32>
    %93 = vector.extract_strided_slice %62 {offsets = [3, 0], sizes = [1, 8], strides = [1, 1]} : vector<8x8xf32> to vector<1x8xf32>
    %94 = vector.broadcast %93 : vector<1x8xf32> to vector<8x8xf32>
    %95 = arith.mulf %3, %94 : vector<8x8xf32>
    %96 = vector.broadcast %14 : f32 to vector<8x8xf32>
    %97 = arith.addf %95, %96 : vector<8x8xf32>
    %98 = math.absf %97 : vector<8x8xf32>
    %cst_20 = arith.constant 1.000000e+00 : f32
    %99 = vector.broadcast %cst_20 : f32 to vector<8x8xf32>
    %100 = arith.addf %99, %98 : vector<8x8xf32>
    %101 = tpu.reciprocal %100 {approx = true} : vector<8x8xf32> -> vector<8x8xf32>
    %102 = arith.mulf %97, %101 : vector<8x8xf32>
    %103 = vector.extract_strided_slice %62 {offsets = [4, 0], sizes = [1, 8], strides = [1, 1]} : vector<8x8xf32> to vector<1x8xf32>
    %104 = vector.broadcast %103 : vector<1x8xf32> to vector<8x8xf32>
    %105 = arith.mulf %3, %104 : vector<8x8xf32>
    %106 = vector.broadcast %15 : f32 to vector<8x8xf32>
    %107 = arith.addf %105, %106 : vector<8x8xf32>
    %108 = math.absf %107 : vector<8x8xf32>
    %cst_21 = arith.constant 1.000000e+00 : f32
    %109 = vector.broadcast %cst_21 : f32 to vector<8x8xf32>
    %110 = arith.addf %109, %108 : vector<8x8xf32>
    %111 = tpu.reciprocal %110 {approx = true} : vector<8x8xf32> -> vector<8x8xf32>
    %112 = arith.mulf %107, %111 : vector<8x8xf32>
    %113 = vector.extract_strided_slice %62 {offsets = [5, 0], sizes = [1, 8], strides = [1, 1]} : vector<8x8xf32> to vector<1x8xf32>
    %114 = vector.broadcast %113 : vector<1x8xf32> to vector<8x8xf32>
    %115 = arith.mulf %3, %114 : vector<8x8xf32>
    %116 = vector.broadcast %16 : f32 to vector<8x8xf32>
    %117 = arith.addf %115, %116 : vector<8x8xf32>
    %118 = math.absf %117 : vector<8x8xf32>
    %cst_22 = arith.constant 1.000000e+00 : f32
    %119 = vector.broadcast %cst_22 : f32 to vector<8x8xf32>
    %120 = arith.addf %119, %118 : vector<8x8xf32>
    %121 = tpu.reciprocal %120 {approx = true} : vector<8x8xf32> -> vector<8x8xf32>
    %122 = arith.mulf %117, %121 : vector<8x8xf32>
    %123 = vector.extract_strided_slice %62 {offsets = [6, 0], sizes = [1, 8], strides = [1, 1]} : vector<8x8xf32> to vector<1x8xf32>
    %124 = vector.broadcast %123 : vector<1x8xf32> to vector<8x8xf32>
    %125 = arith.mulf %3, %124 : vector<8x8xf32>
    %126 = vector.broadcast %17 : f32 to vector<8x8xf32>
    %127 = arith.addf %125, %126 : vector<8x8xf32>
    %128 = math.absf %127 : vector<8x8xf32>
    %cst_23 = arith.constant 1.000000e+00 : f32
    %129 = vector.broadcast %cst_23 : f32 to vector<8x8xf32>
    %130 = arith.addf %129, %128 : vector<8x8xf32>
    %131 = tpu.reciprocal %130 {approx = true} : vector<8x8xf32> -> vector<8x8xf32>
    %132 = arith.mulf %127, %131 : vector<8x8xf32>
    %133 = vector.extract_strided_slice %62 {offsets = [7, 0], sizes = [1, 8], strides = [1, 1]} : vector<8x8xf32> to vector<1x8xf32>
    %134 = vector.broadcast %133 : vector<1x8xf32> to vector<8x8xf32>
    %135 = arith.mulf %3, %134 : vector<8x8xf32>
    %136 = vector.broadcast %18 : f32 to vector<8x8xf32>
    %137 = arith.addf %135, %136 : vector<8x8xf32>
    %138 = math.absf %137 : vector<8x8xf32>
    %cst_24 = arith.constant 1.000000e+00 : f32
    %139 = vector.broadcast %cst_24 : f32 to vector<8x8xf32>
    %140 = arith.addf %139, %138 : vector<8x8xf32>
    %141 = tpu.reciprocal %140 {approx = true} : vector<8x8xf32> -> vector<8x8xf32>
    %142 = arith.mulf %137, %141 : vector<8x8xf32>
    %143 = vector.broadcast %19 : f32 to vector<8x8xf32>
    %144 = arith.mulf %143, %72 : vector<8x8xf32>
    %145 = vector.broadcast %51 : f32 to vector<8x8xf32>
    %146 = arith.addf %145, %144 : vector<8x8xf32>
    %147 = vector.broadcast %23 : f32 to vector<8x8xf32>
    %148 = arith.mulf %147, %82 : vector<8x8xf32>
    %149 = arith.addf %146, %148 : vector<8x8xf32>
    %150 = vector.broadcast %27 : f32 to vector<8x8xf32>
    %151 = arith.mulf %150, %92 : vector<8x8xf32>
    %152 = arith.addf %149, %151 : vector<8x8xf32>
    %153 = vector.broadcast %31 : f32 to vector<8x8xf32>
    %154 = arith.mulf %153, %102 : vector<8x8xf32>
    %155 = arith.addf %152, %154 : vector<8x8xf32>
    %156 = vector.broadcast %35 : f32 to vector<8x8xf32>
    %157 = arith.mulf %156, %112 : vector<8x8xf32>
    %158 = arith.addf %155, %157 : vector<8x8xf32>
    %159 = vector.broadcast %39 : f32 to vector<8x8xf32>
    %160 = arith.mulf %159, %122 : vector<8x8xf32>
    %161 = arith.addf %158, %160 : vector<8x8xf32>
    %162 = vector.broadcast %43 : f32 to vector<8x8xf32>
    %163 = arith.mulf %162, %132 : vector<8x8xf32>
    %164 = arith.addf %161, %163 : vector<8x8xf32>
    %165 = vector.broadcast %47 : f32 to vector<8x8xf32>
    %166 = arith.mulf %165, %142 : vector<8x8xf32>
    %167 = arith.addf %164, %166 : vector<8x8xf32>
    %168 = math.absf %167 : vector<8x8xf32>
    %cst_25 = arith.constant 1.000000e+00 : f32
    %169 = vector.broadcast %cst_25 : f32 to vector<8x8xf32>
    %170 = arith.addf %169, %168 : vector<8x8xf32>
    %171 = tpu.reciprocal %170 {approx = true} : vector<8x8xf32> -> vector<8x8xf32>
    %172 = arith.mulf %167, %171 : vector<8x8xf32>
    %173 = vector.broadcast %20 : f32 to vector<8x8xf32>
    %174 = arith.mulf %173, %72 : vector<8x8xf32>
    %175 = vector.broadcast %52 : f32 to vector<8x8xf32>
    %176 = arith.addf %175, %174 : vector<8x8xf32>
    %177 = vector.broadcast %24 : f32 to vector<8x8xf32>
    %178 = arith.mulf %177, %82 : vector<8x8xf32>
    %179 = arith.addf %176, %178 : vector<8x8xf32>
    %180 = vector.broadcast %28 : f32 to vector<8x8xf32>
    %181 = arith.mulf %180, %92 : vector<8x8xf32>
    %182 = arith.addf %179, %181 : vector<8x8xf32>
    %183 = vector.broadcast %32 : f32 to vector<8x8xf32>
    %184 = arith.mulf %183, %102 : vector<8x8xf32>
    %185 = arith.addf %182, %184 : vector<8x8xf32>
    %186 = vector.broadcast %36 : f32 to vector<8x8xf32>
    %187 = arith.mulf %186, %112 : vector<8x8xf32>
    %188 = arith.addf %185, %187 : vector<8x8xf32>
    %189 = vector.broadcast %40 : f32 to vector<8x8xf32>
    %190 = arith.mulf %189, %122 : vector<8x8xf32>
    %191 = arith.addf %188, %190 : vector<8x8xf32>
    %192 = vector.broadcast %44 : f32 to vector<8x8xf32>
    %193 = arith.mulf %192, %132 : vector<8x8xf32>
    %194 = arith.addf %191, %193 : vector<8x8xf32>
    %195 = vector.broadcast %48 : f32 to vector<8x8xf32>
    %196 = arith.mulf %195, %142 : vector<8x8xf32>
    %197 = arith.addf %194, %196 : vector<8x8xf32>
    %198 = math.absf %197 : vector<8x8xf32>
    %cst_26 = arith.constant 1.000000e+00 : f32
    %199 = vector.broadcast %cst_26 : f32 to vector<8x8xf32>
    %200 = arith.addf %199, %198 : vector<8x8xf32>
    %201 = tpu.reciprocal %200 {approx = true} : vector<8x8xf32> -> vector<8x8xf32>
    %202 = arith.mulf %197, %201 : vector<8x8xf32>
    %203 = vector.broadcast %21 : f32 to vector<8x8xf32>
    %204 = arith.mulf %203, %72 : vector<8x8xf32>
    %205 = vector.broadcast %53 : f32 to vector<8x8xf32>
    %206 = arith.addf %205, %204 : vector<8x8xf32>
    %207 = vector.broadcast %25 : f32 to vector<8x8xf32>
    %208 = arith.mulf %207, %82 : vector<8x8xf32>
    %209 = arith.addf %206, %208 : vector<8x8xf32>
    %210 = vector.broadcast %29 : f32 to vector<8x8xf32>
    %211 = arith.mulf %210, %92 : vector<8x8xf32>
    %212 = arith.addf %209, %211 : vector<8x8xf32>
    %213 = vector.broadcast %33 : f32 to vector<8x8xf32>
    %214 = arith.mulf %213, %102 : vector<8x8xf32>
    %215 = arith.addf %212, %214 : vector<8x8xf32>
    %216 = vector.broadcast %37 : f32 to vector<8x8xf32>
    %217 = arith.mulf %216, %112 : vector<8x8xf32>
    %218 = arith.addf %215, %217 : vector<8x8xf32>
    %219 = vector.broadcast %41 : f32 to vector<8x8xf32>
    %220 = arith.mulf %219, %122 : vector<8x8xf32>
    %221 = arith.addf %218, %220 : vector<8x8xf32>
    %222 = vector.broadcast %45 : f32 to vector<8x8xf32>
    %223 = arith.mulf %222, %132 : vector<8x8xf32>
    %224 = arith.addf %221, %223 : vector<8x8xf32>
    %225 = vector.broadcast %49 : f32 to vector<8x8xf32>
    %226 = arith.mulf %225, %142 : vector<8x8xf32>
    %227 = arith.addf %224, %226 : vector<8x8xf32>
    %228 = math.absf %227 : vector<8x8xf32>
    %cst_27 = arith.constant 1.000000e+00 : f32
    %229 = vector.broadcast %cst_27 : f32 to vector<8x8xf32>
    %230 = arith.addf %229, %228 : vector<8x8xf32>
    %231 = tpu.reciprocal %230 {approx = true} : vector<8x8xf32> -> vector<8x8xf32>
    %232 = arith.mulf %227, %231 : vector<8x8xf32>
    %233 = vector.broadcast %22 : f32 to vector<8x8xf32>
    %234 = arith.mulf %233, %72 : vector<8x8xf32>
    %235 = vector.broadcast %54 : f32 to vector<8x8xf32>
    %236 = arith.addf %235, %234 : vector<8x8xf32>
    %237 = vector.broadcast %26 : f32 to vector<8x8xf32>
    %238 = arith.mulf %237, %82 : vector<8x8xf32>
    %239 = arith.addf %236, %238 : vector<8x8xf32>
    %240 = vector.broadcast %30 : f32 to vector<8x8xf32>
    %241 = arith.mulf %240, %92 : vector<8x8xf32>
    %242 = arith.addf %239, %241 : vector<8x8xf32>
    %243 = vector.broadcast %34 : f32 to vector<8x8xf32>
    %244 = arith.mulf %243, %102 : vector<8x8xf32>
    %245 = arith.addf %242, %244 : vector<8x8xf32>
    %246 = vector.broadcast %38 : f32 to vector<8x8xf32>
    %247 = arith.mulf %246, %112 : vector<8x8xf32>
    %248 = arith.addf %245, %247 : vector<8x8xf32>
    %249 = vector.broadcast %42 : f32 to vector<8x8xf32>
    %250 = arith.mulf %249, %122 : vector<8x8xf32>
    %251 = arith.addf %248, %250 : vector<8x8xf32>
    %252 = vector.broadcast %46 : f32 to vector<8x8xf32>
    %253 = arith.mulf %252, %132 : vector<8x8xf32>
    %254 = arith.addf %251, %253 : vector<8x8xf32>
    %255 = vector.broadcast %50 : f32 to vector<8x8xf32>
    %256 = arith.mulf %255, %142 : vector<8x8xf32>
    %257 = arith.addf %254, %256 : vector<8x8xf32>
    %258 = math.absf %257 : vector<8x8xf32>
    %cst_28 = arith.constant 1.000000e+00 : f32
    %259 = vector.broadcast %cst_28 : f32 to vector<8x8xf32>
    %260 = arith.addf %259, %258 : vector<8x8xf32>
    %261 = tpu.reciprocal %260 {approx = true} : vector<8x8xf32> -> vector<8x8xf32>
    %262 = arith.mulf %257, %261 : vector<8x8xf32>
    %263 = vector.broadcast %55 : f32 to vector<8x8xf32>
    %264 = arith.mulf %263, %172 : vector<8x8xf32>
    %265 = vector.broadcast %59 : f32 to vector<8x8xf32>
    %266 = arith.addf %265, %264 : vector<8x8xf32>
    %267 = vector.broadcast %56 : f32 to vector<8x8xf32>
    %268 = arith.mulf %267, %202 : vector<8x8xf32>
    %269 = arith.addf %266, %268 : vector<8x8xf32>
    %270 = vector.broadcast %57 : f32 to vector<8x8xf32>
    %271 = arith.mulf %270, %232 : vector<8x8xf32>
    %272 = arith.addf %269, %271 : vector<8x8xf32>
    %273 = vector.broadcast %58 : f32 to vector<8x8xf32>
    %274 = arith.mulf %273, %262 : vector<8x8xf32>
    %275 = arith.addf %272, %274 : vector<8x8xf32>
    %cst_29 = arith.constant -1.000000e+30 : f32
    %276 = vector.broadcast %cst_29 : f32 to vector<8x8xf32>
    %277 = arith.select %5, %275, %276 : vector<8x8xi1>, vector<8x8xf32>
    %cst_30 = arith.constant dense<0xFF800000> : vector<8xf32>
    %278 = vector.multi_reduction <maximumf>, %277, %cst_30 [1] : vector<8x8xf32> to vector<8xf32>
    %279 = vector.shape_cast %278 : vector<8xf32> to vector<8x1xf32>
    %cst_31 = arith.constant 0.000000e+00 : f32
    %280 = vector.broadcast %cst_31 : f32 to vector<8x1xf32>
    %281 = arith.maximumf %279, %280 : vector<8x1xf32>
    %282 = vector.broadcast %281 : vector<8x1xf32> to vector<8x8xf32>
    %283 = arith.subf %275, %282 : vector<8x8xf32>
    %284 = math.exp %283 : vector<8x8xf32>
    %cst_32 = arith.constant 0.000000e+00 : f32
    %285 = vector.broadcast %cst_32 : f32 to vector<8x8xf32>
    %286 = arith.select %5, %284, %285 : vector<8x8xi1>, vector<8x8xf32>
    %cst_33 = arith.constant dense<0.000000e+00> : vector<8xf32>
    %287 = vector.multi_reduction <add>, %286, %cst_33 [1] : vector<8x8xf32> to vector<8xf32>
    %288 = vector.shape_cast %287 : vector<8xf32> to vector<8x1xf32>
    %289 = arith.mulf %286, %3 : vector<8x8xf32>
    %cst_34 = arith.constant dense<0.000000e+00> : vector<8x16xf32>
    %290 = tpu.matmul %289, %61, %cst_34 {dimension_numbers = #tpu.dot_dimension_numbers<[1], [0], [0], [1], [0, 0, 1, 1], [], []>} : vector<8x8xf32>, vector<8x16xf32>, vector<8x16xf32> -> vector<8x16xf32>
    %cst_35 = arith.constant 1.000000e-30 : f32
    %291 = vector.broadcast %cst_35 : f32 to vector<8x1xf32>
    %292 = arith.maximumf %288, %291 : vector<8x1xf32>
    %293 = tpu.reciprocal %292 {approx = true} : vector<8x1xf32> -> vector<8x1xf32>
    %294 = vector.broadcast %293 : vector<8x1xf32> to vector<8x16xf32>
    %295 = arith.mulf %290, %294 : vector<8x16xf32>
    %cst_36 = arith.constant dense<0.000000e+00> : vector<8x48xf32>
    %296 = tpu.matmul %295, %7, %cst_36 {dimension_numbers = #tpu.dot_dimension_numbers<[1], [0], [0], [1], [0, 0, 1, 1], [], []>} : vector<8x16xf32>, vector<16x48xf32>, vector<8x48xf32> -> vector<8x48xf32>
    %297 = vector.broadcast %9 : vector<1x48xf32> to vector<8x48xf32>
    %298 = arith.addf %296, %297 : vector<8x48xf32>
    %cst_37 = arith.constant dense<0.000000e+00> : vector<8x48xf32>
    %299 = tpu.matmul %1, %8, %cst_37 {dimension_numbers = #tpu.dot_dimension_numbers<[1], [0], [0], [1], [0, 0, 1, 1], [], []>} : vector<8x16xf32>, vector<16x48xf32>, vector<8x48xf32> -> vector<8x48xf32>
    %300 = vector.broadcast %10 : vector<1x48xf32> to vector<8x48xf32>
    %301 = arith.addf %299, %300 : vector<8x48xf32>
    %302 = vector.extract_strided_slice %298 {offsets = [0, 0], sizes = [8, 16], strides = [1, 1]} : vector<8x48xf32> to vector<8x16xf32>
    %303 = vector.extract_strided_slice %301 {offsets = [0, 0], sizes = [8, 16], strides = [1, 1]} : vector<8x48xf32> to vector<8x16xf32>
    %304 = arith.addf %302, %303 : vector<8x16xf32>
    %305 = arith.negf %304 : vector<8x16xf32>
    %306 = math.exp %305 : vector<8x16xf32>
    %cst_38 = arith.constant 1.000000e+00 : f32
    %307 = vector.broadcast %cst_38 : f32 to vector<8x16xf32>
    %308 = arith.addf %307, %306 : vector<8x16xf32>
    %309 = arith.divf %307, %308 : vector<8x16xf32>
    %310 = vector.extract_strided_slice %298 {offsets = [0, 16], sizes = [8, 16], strides = [1, 1]} : vector<8x48xf32> to vector<8x16xf32>
    %311 = vector.extract_strided_slice %301 {offsets = [0, 16], sizes = [8, 16], strides = [1, 1]} : vector<8x48xf32> to vector<8x16xf32>
    %312 = arith.addf %310, %311 : vector<8x16xf32>
    %313 = arith.negf %312 : vector<8x16xf32>
    %314 = math.exp %313 : vector<8x16xf32>
    %cst_39 = arith.constant 1.000000e+00 : f32
    %315 = vector.broadcast %cst_39 : f32 to vector<8x16xf32>
    %316 = arith.addf %315, %314 : vector<8x16xf32>
    %317 = arith.divf %315, %316 : vector<8x16xf32>
    %318 = vector.extract_strided_slice %298 {offsets = [0, 32], sizes = [8, 16], strides = [1, 1]} : vector<8x48xf32> to vector<8x16xf32>
    %319 = vector.extract_strided_slice %301 {offsets = [0, 32], sizes = [8, 16], strides = [1, 1]} : vector<8x48xf32> to vector<8x16xf32>
    %320 = arith.mulf %309, %319 : vector<8x16xf32>
    %321 = arith.addf %318, %320 : vector<8x16xf32>
    %322 = math.tanh %321 : vector<8x16xf32>
    %cst_40 = arith.constant 1.000000e+00 : f32
    %323 = vector.broadcast %cst_40 : f32 to vector<8x16xf32>
    %324 = arith.subf %323, %317 : vector<8x16xf32>
    %325 = arith.mulf %324, %322 : vector<8x16xf32>
    %326 = arith.mulf %317, %1 : vector<8x16xf32>
    %327 = arith.addf %325, %326 : vector<8x16xf32>
    %c0_41 = arith.constant 0 : index
    %c16_42 = arith.constant 16 : index
    %328 = vector.load %arg4[%c0_41, %c16_42] : memref<32x1280xf32, #tpu.memory_space<vmem>>, vector<16x16xf32>
    %cst_43 = arith.constant dense<0.000000e+00> : vector<8x16xf32>
    %329 = tpu.matmul %327, %328, %cst_43 {dimension_numbers = #tpu.dot_dimension_numbers<[1], [0], [0], [1], [0, 0, 1, 1], [], []>} : vector<8x16xf32>, vector<16x16xf32>, vector<8x16xf32> -> vector<8x16xf32>
    %cst_44 = arith.constant dense<0.000000e+00> : vector<8x8xf32>
    %330 = tpu.matmul %6, %329, %cst_44 {dimension_numbers = #tpu.dot_dimension_numbers<[1], [1], [0], [0], [0, 0, 1, 0], [], []>} : vector<8x16xf32>, vector<8x16xf32>, vector<8x8xf32> -> vector<8x8xf32>
    %331 = vector.extract_strided_slice %330 {offsets = [0, 0], sizes = [1, 8], strides = [1, 1]} : vector<8x8xf32> to vector<1x8xf32>
    %332 = vector.broadcast %331 : vector<1x8xf32> to vector<8x8xf32>
    %333 = arith.mulf %3, %332 : vector<8x8xf32>
    %334 = vector.broadcast %11 : f32 to vector<8x8xf32>
    %335 = arith.addf %333, %334 : vector<8x8xf32>
    %336 = math.absf %335 : vector<8x8xf32>
    %cst_45 = arith.constant 1.000000e+00 : f32
    %337 = vector.broadcast %cst_45 : f32 to vector<8x8xf32>
    %338 = arith.addf %337, %336 : vector<8x8xf32>
    %339 = tpu.reciprocal %338 {approx = true} : vector<8x8xf32> -> vector<8x8xf32>
    %340 = arith.mulf %335, %339 : vector<8x8xf32>
    %341 = vector.extract_strided_slice %330 {offsets = [1, 0], sizes = [1, 8], strides = [1, 1]} : vector<8x8xf32> to vector<1x8xf32>
    %342 = vector.broadcast %341 : vector<1x8xf32> to vector<8x8xf32>
    %343 = arith.mulf %3, %342 : vector<8x8xf32>
    %344 = vector.broadcast %12 : f32 to vector<8x8xf32>
    %345 = arith.addf %343, %344 : vector<8x8xf32>
    %346 = math.absf %345 : vector<8x8xf32>
    %cst_46 = arith.constant 1.000000e+00 : f32
    %347 = vector.broadcast %cst_46 : f32 to vector<8x8xf32>
    %348 = arith.addf %347, %346 : vector<8x8xf32>
    %349 = tpu.reciprocal %348 {approx = true} : vector<8x8xf32> -> vector<8x8xf32>
    %350 = arith.mulf %345, %349 : vector<8x8xf32>
    %351 = vector.extract_strided_slice %330 {offsets = [2, 0], sizes = [1, 8], strides = [1, 1]} : vector<8x8xf32> to vector<1x8xf32>
    %352 = vector.broadcast %351 : vector<1x8xf32> to vector<8x8xf32>
    %353 = arith.mulf %3, %352 : vector<8x8xf32>
    %354 = vector.broadcast %13 : f32 to vector<8x8xf32>
    %355 = arith.addf %353, %354 : vector<8x8xf32>
    %356 = math.absf %355 : vector<8x8xf32>
    %cst_47 = arith.constant 1.000000e+00 : f32
    %357 = vector.broadcast %cst_47 : f32 to vector<8x8xf32>
    %358 = arith.addf %357, %356 : vector<8x8xf32>
    %359 = tpu.reciprocal %358 {approx = true} : vector<8x8xf32> -> vector<8x8xf32>
    %360 = arith.mulf %355, %359 : vector<8x8xf32>
    %361 = vector.extract_strided_slice %330 {offsets = [3, 0], sizes = [1, 8], strides = [1, 1]} : vector<8x8xf32> to vector<1x8xf32>
    %362 = vector.broadcast %361 : vector<1x8xf32> to vector<8x8xf32>
    %363 = arith.mulf %3, %362 : vector<8x8xf32>
    %364 = vector.broadcast %14 : f32 to vector<8x8xf32>
    %365 = arith.addf %363, %364 : vector<8x8xf32>
    %366 = math.absf %365 : vector<8x8xf32>
    %cst_48 = arith.constant 1.000000e+00 : f32
    %367 = vector.broadcast %cst_48 : f32 to vector<8x8xf32>
    %368 = arith.addf %367, %366 : vector<8x8xf32>
    %369 = tpu.reciprocal %368 {approx = true} : vector<8x8xf32> -> vector<8x8xf32>
    %370 = arith.mulf %365, %369 : vector<8x8xf32>
    %371 = vector.extract_strided_slice %330 {offsets = [4, 0], sizes = [1, 8], strides = [1, 1]} : vector<8x8xf32> to vector<1x8xf32>
    %372 = vector.broadcast %371 : vector<1x8xf32> to vector<8x8xf32>
    %373 = arith.mulf %3, %372 : vector<8x8xf32>
    %374 = vector.broadcast %15 : f32 to vector<8x8xf32>
    %375 = arith.addf %373, %374 : vector<8x8xf32>
    %376 = math.absf %375 : vector<8x8xf32>
    %cst_49 = arith.constant 1.000000e+00 : f32
    %377 = vector.broadcast %cst_49 : f32 to vector<8x8xf32>
    %378 = arith.addf %377, %376 : vector<8x8xf32>
    %379 = tpu.reciprocal %378 {approx = true} : vector<8x8xf32> -> vector<8x8xf32>
    %380 = arith.mulf %375, %379 : vector<8x8xf32>
    %381 = vector.extract_strided_slice %330 {offsets = [5, 0], sizes = [1, 8], strides = [1, 1]} : vector<8x8xf32> to vector<1x8xf32>
    %382 = vector.broadcast %381 : vector<1x8xf32> to vector<8x8xf32>
    %383 = arith.mulf %3, %382 : vector<8x8xf32>
    %384 = vector.broadcast %16 : f32 to vector<8x8xf32>
    %385 = arith.addf %383, %384 : vector<8x8xf32>
    %386 = math.absf %385 : vector<8x8xf32>
    %cst_50 = arith.constant 1.000000e+00 : f32
    %387 = vector.broadcast %cst_50 : f32 to vector<8x8xf32>
    %388 = arith.addf %387, %386 : vector<8x8xf32>
    %389 = tpu.reciprocal %388 {approx = true} : vector<8x8xf32> -> vector<8x8xf32>
    %390 = arith.mulf %385, %389 : vector<8x8xf32>
    %391 = vector.extract_strided_slice %330 {offsets = [6, 0], sizes = [1, 8], strides = [1, 1]} : vector<8x8xf32> to vector<1x8xf32>
    %392 = vector.broadcast %391 : vector<1x8xf32> to vector<8x8xf32>
    %393 = arith.mulf %3, %392 : vector<8x8xf32>
    %394 = vector.broadcast %17 : f32 to vector<8x8xf32>
    %395 = arith.addf %393, %394 : vector<8x8xf32>
    %396 = math.absf %395 : vector<8x8xf32>
    %cst_51 = arith.constant 1.000000e+00 : f32
    %397 = vector.broadcast %cst_51 : f32 to vector<8x8xf32>
    %398 = arith.addf %397, %396 : vector<8x8xf32>
    %399 = tpu.reciprocal %398 {approx = true} : vector<8x8xf32> -> vector<8x8xf32>
    %400 = arith.mulf %395, %399 : vector<8x8xf32>
    %401 = vector.extract_strided_slice %330 {offsets = [7, 0], sizes = [1, 8], strides = [1, 1]} : vector<8x8xf32> to vector<1x8xf32>
    %402 = vector.broadcast %401 : vector<1x8xf32> to vector<8x8xf32>
    %403 = arith.mulf %3, %402 : vector<8x8xf32>
    %404 = vector.broadcast %18 : f32 to vector<8x8xf32>
    %405 = arith.addf %403, %404 : vector<8x8xf32>
    %406 = math.absf %405 : vector<8x8xf32>
    %cst_52 = arith.constant 1.000000e+00 : f32
    %407 = vector.broadcast %cst_52 : f32 to vector<8x8xf32>
    %408 = arith.addf %407, %406 : vector<8x8xf32>
    %409 = tpu.reciprocal %408 {approx = true} : vector<8x8xf32> -> vector<8x8xf32>
    %410 = arith.mulf %405, %409 : vector<8x8xf32>
    %411 = vector.broadcast %19 : f32 to vector<8x8xf32>
    %412 = arith.mulf %411, %340 : vector<8x8xf32>
    %413 = vector.broadcast %51 : f32 to vector<8x8xf32>
    %414 = arith.addf %413, %412 : vector<8x8xf32>
    %415 = vector.broadcast %23 : f32 to vector<8x8xf32>
    %416 = arith.mulf %415, %350 : vector<8x8xf32>
    %417 = arith.addf %414, %416 : vector<8x8xf32>
    %418 = vector.broadcast %27 : f32 to vector<8x8xf32>
    %419 = arith.mulf %418, %360 : vector<8x8xf32>
    %420 = arith.addf %417, %419 : vector<8x8xf32>
    %421 = vector.broadcast %31 : f32 to vector<8x8xf32>
    %422 = arith.mulf %421, %370 : vector<8x8xf32>
    %423 = arith.addf %420, %422 : vector<8x8xf32>
    %424 = vector.broadcast %35 : f32 to vector<8x8xf32>
    %425 = arith.mulf %424, %380 : vector<8x8xf32>
    %426 = arith.addf %423, %425 : vector<8x8xf32>
    %427 = vector.broadcast %39 : f32 to vector<8x8xf32>
    %428 = arith.mulf %427, %390 : vector<8x8xf32>
    %429 = arith.addf %426, %428 : vector<8x8xf32>
    %430 = vector.broadcast %43 : f32 to vector<8x8xf32>
    %431 = arith.mulf %430, %400 : vector<8x8xf32>
    %432 = arith.addf %429, %431 : vector<8x8xf32>
    %433 = vector.broadcast %47 : f32 to vector<8x8xf32>
    %434 = arith.mulf %433, %410 : vector<8x8xf32>
    %435 = arith.addf %432, %434 : vector<8x8xf32>
    %436 = math.absf %435 : vector<8x8xf32>
    %cst_53 = arith.constant 1.000000e+00 : f32
    %437 = vector.broadcast %cst_53 : f32 to vector<8x8xf32>
    %438 = arith.addf %437, %436 : vector<8x8xf32>
    %439 = tpu.reciprocal %438 {approx = true} : vector<8x8xf32> -> vector<8x8xf32>
    %440 = arith.mulf %435, %439 : vector<8x8xf32>
    %441 = vector.broadcast %20 : f32 to vector<8x8xf32>
    %442 = arith.mulf %441, %340 : vector<8x8xf32>
    %443 = vector.broadcast %52 : f32 to vector<8x8xf32>
    %444 = arith.addf %443, %442 : vector<8x8xf32>
    %445 = vector.broadcast %24 : f32 to vector<8x8xf32>
    %446 = arith.mulf %445, %350 : vector<8x8xf32>
    %447 = arith.addf %444, %446 : vector<8x8xf32>
    %448 = vector.broadcast %28 : f32 to vector<8x8xf32>
    %449 = arith.mulf %448, %360 : vector<8x8xf32>
    %450 = arith.addf %447, %449 : vector<8x8xf32>
    %451 = vector.broadcast %32 : f32 to vector<8x8xf32>
    %452 = arith.mulf %451, %370 : vector<8x8xf32>
    %453 = arith.addf %450, %452 : vector<8x8xf32>
    %454 = vector.broadcast %36 : f32 to vector<8x8xf32>
    %455 = arith.mulf %454, %380 : vector<8x8xf32>
    %456 = arith.addf %453, %455 : vector<8x8xf32>
    %457 = vector.broadcast %40 : f32 to vector<8x8xf32>
    %458 = arith.mulf %457, %390 : vector<8x8xf32>
    %459 = arith.addf %456, %458 : vector<8x8xf32>
    %460 = vector.broadcast %44 : f32 to vector<8x8xf32>
    %461 = arith.mulf %460, %400 : vector<8x8xf32>
    %462 = arith.addf %459, %461 : vector<8x8xf32>
    %463 = vector.broadcast %48 : f32 to vector<8x8xf32>
    %464 = arith.mulf %463, %410 : vector<8x8xf32>
    %465 = arith.addf %462, %464 : vector<8x8xf32>
    %466 = math.absf %465 : vector<8x8xf32>
    %cst_54 = arith.constant 1.000000e+00 : f32
    %467 = vector.broadcast %cst_54 : f32 to vector<8x8xf32>
    %468 = arith.addf %467, %466 : vector<8x8xf32>
    %469 = tpu.reciprocal %468 {approx = true} : vector<8x8xf32> -> vector<8x8xf32>
    %470 = arith.mulf %465, %469 : vector<8x8xf32>
    %471 = vector.broadcast %21 : f32 to vector<8x8xf32>
    %472 = arith.mulf %471, %340 : vector<8x8xf32>
    %473 = vector.broadcast %53 : f32 to vector<8x8xf32>
    %474 = arith.addf %473, %472 : vector<8x8xf32>
    %475 = vector.broadcast %25 : f32 to vector<8x8xf32>
    %476 = arith.mulf %475, %350 : vector<8x8xf32>
    %477 = arith.addf %474, %476 : vector<8x8xf32>
    %478 = vector.broadcast %29 : f32 to vector<8x8xf32>
    %479 = arith.mulf %478, %360 : vector<8x8xf32>
    %480 = arith.addf %477, %479 : vector<8x8xf32>
    %481 = vector.broadcast %33 : f32 to vector<8x8xf32>
    %482 = arith.mulf %481, %370 : vector<8x8xf32>
    %483 = arith.addf %480, %482 : vector<8x8xf32>
    %484 = vector.broadcast %37 : f32 to vector<8x8xf32>
    %485 = arith.mulf %484, %380 : vector<8x8xf32>
    %486 = arith.addf %483, %485 : vector<8x8xf32>
    %487 = vector.broadcast %41 : f32 to vector<8x8xf32>
    %488 = arith.mulf %487, %390 : vector<8x8xf32>
    %489 = arith.addf %486, %488 : vector<8x8xf32>
    %490 = vector.broadcast %45 : f32 to vector<8x8xf32>
    %491 = arith.mulf %490, %400 : vector<8x8xf32>
    %492 = arith.addf %489, %491 : vector<8x8xf32>
    %493 = vector.broadcast %49 : f32 to vector<8x8xf32>
    %494 = arith.mulf %493, %410 : vector<8x8xf32>
    %495 = arith.addf %492, %494 : vector<8x8xf32>
    %496 = math.absf %495 : vector<8x8xf32>
    %cst_55 = arith.constant 1.000000e+00 : f32
    %497 = vector.broadcast %cst_55 : f32 to vector<8x8xf32>
    %498 = arith.addf %497, %496 : vector<8x8xf32>
    %499 = tpu.reciprocal %498 {approx = true} : vector<8x8xf32> -> vector<8x8xf32>
    %500 = arith.mulf %495, %499 : vector<8x8xf32>
    %501 = vector.broadcast %22 : f32 to vector<8x8xf32>
    %502 = arith.mulf %501, %340 : vector<8x8xf32>
    %503 = vector.broadcast %54 : f32 to vector<8x8xf32>
    %504 = arith.addf %503, %502 : vector<8x8xf32>
    %505 = vector.broadcast %26 : f32 to vector<8x8xf32>
    %506 = arith.mulf %505, %350 : vector<8x8xf32>
    %507 = arith.addf %504, %506 : vector<8x8xf32>
    %508 = vector.broadcast %30 : f32 to vector<8x8xf32>
    %509 = arith.mulf %508, %360 : vector<8x8xf32>
    %510 = arith.addf %507, %509 : vector<8x8xf32>
    %511 = vector.broadcast %34 : f32 to vector<8x8xf32>
    %512 = arith.mulf %511, %370 : vector<8x8xf32>
    %513 = arith.addf %510, %512 : vector<8x8xf32>
    %514 = vector.broadcast %38 : f32 to vector<8x8xf32>
    %515 = arith.mulf %514, %380 : vector<8x8xf32>
    %516 = arith.addf %513, %515 : vector<8x8xf32>
    %517 = vector.broadcast %42 : f32 to vector<8x8xf32>
    %518 = arith.mulf %517, %390 : vector<8x8xf32>
    %519 = arith.addf %516, %518 : vector<8x8xf32>
    %520 = vector.broadcast %46 : f32 to vector<8x8xf32>
    %521 = arith.mulf %520, %400 : vector<8x8xf32>
    %522 = arith.addf %519, %521 : vector<8x8xf32>
    %523 = vector.broadcast %50 : f32 to vector<8x8xf32>
    %524 = arith.mulf %523, %410 : vector<8x8xf32>
    %525 = arith.addf %522, %524 : vector<8x8xf32>
    %526 = math.absf %525 : vector<8x8xf32>
    %cst_56 = arith.constant 1.000000e+00 : f32
    %527 = vector.broadcast %cst_56 : f32 to vector<8x8xf32>
    %528 = arith.addf %527, %526 : vector<8x8xf32>
    %529 = tpu.reciprocal %528 {approx = true} : vector<8x8xf32> -> vector<8x8xf32>
    %530 = arith.mulf %525, %529 : vector<8x8xf32>
    %531 = vector.broadcast %55 : f32 to vector<8x8xf32>
    %532 = arith.mulf %531, %440 : vector<8x8xf32>
    %533 = vector.broadcast %59 : f32 to vector<8x8xf32>
    %534 = arith.addf %533, %532 : vector<8x8xf32>
    %535 = vector.broadcast %56 : f32 to vector<8x8xf32>
    %536 = arith.mulf %535, %470 : vector<8x8xf32>
    %537 = arith.addf %534, %536 : vector<8x8xf32>
    %538 = vector.broadcast %57 : f32 to vector<8x8xf32>
    %539 = arith.mulf %538, %500 : vector<8x8xf32>
    %540 = arith.addf %537, %539 : vector<8x8xf32>
    %541 = vector.broadcast %58 : f32 to vector<8x8xf32>
    %542 = arith.mulf %541, %530 : vector<8x8xf32>
    %543 = arith.addf %540, %542 : vector<8x8xf32>
    %cst_57 = arith.constant -1.000000e+30 : f32
    %544 = vector.broadcast %cst_57 : f32 to vector<8x8xf32>
    %545 = arith.select %5, %543, %544 : vector<8x8xi1>, vector<8x8xf32>
    %cst_58 = arith.constant dense<0xFF800000> : vector<8xf32>
    %546 = vector.multi_reduction <maximumf>, %545, %cst_58 [1] : vector<8x8xf32> to vector<8xf32>
    %547 = vector.shape_cast %546 : vector<8xf32> to vector<8x1xf32>
    %cst_59 = arith.constant 0.000000e+00 : f32
    %548 = vector.broadcast %cst_59 : f32 to vector<8x1xf32>
    %549 = arith.maximumf %547, %548 : vector<8x1xf32>
    %550 = vector.broadcast %549 : vector<8x1xf32> to vector<8x8xf32>
    %551 = arith.subf %543, %550 : vector<8x8xf32>
    %552 = math.exp %551 : vector<8x8xf32>
    %cst_60 = arith.constant 0.000000e+00 : f32
    %553 = vector.broadcast %cst_60 : f32 to vector<8x8xf32>
    %554 = arith.select %5, %552, %553 : vector<8x8xi1>, vector<8x8xf32>
    %cst_61 = arith.constant dense<0.000000e+00> : vector<8xf32>
    %555 = vector.multi_reduction <add>, %554, %cst_61 [1] : vector<8x8xf32> to vector<8xf32>
    %556 = vector.shape_cast %555 : vector<8xf32> to vector<8x1xf32>
    %557 = arith.mulf %554, %3 : vector<8x8xf32>
    %cst_62 = arith.constant dense<0.000000e+00> : vector<8x16xf32>
    %558 = tpu.matmul %557, %329, %cst_62 {dimension_numbers = #tpu.dot_dimension_numbers<[1], [0], [0], [1], [0, 0, 1, 1], [], []>} : vector<8x8xf32>, vector<8x16xf32>, vector<8x16xf32> -> vector<8x16xf32>
    %cst_63 = arith.constant 1.000000e-30 : f32
    %559 = vector.broadcast %cst_63 : f32 to vector<8x1xf32>
    %560 = arith.maximumf %556, %559 : vector<8x1xf32>
    %561 = tpu.reciprocal %560 {approx = true} : vector<8x1xf32> -> vector<8x1xf32>
    %562 = vector.broadcast %561 : vector<8x1xf32> to vector<8x16xf32>
    %563 = arith.mulf %558, %562 : vector<8x16xf32>
    %cst_64 = arith.constant dense<0.000000e+00> : vector<8x48xf32>
    %564 = tpu.matmul %563, %7, %cst_64 {dimension_numbers = #tpu.dot_dimension_numbers<[1], [0], [0], [1], [0, 0, 1, 1], [], []>} : vector<8x16xf32>, vector<16x48xf32>, vector<8x48xf32> -> vector<8x48xf32>
    %565 = vector.broadcast %9 : vector<1x48xf32> to vector<8x48xf32>
    %566 = arith.addf %564, %565 : vector<8x48xf32>
    %cst_65 = arith.constant dense<0.000000e+00> : vector<8x48xf32>
    %567 = tpu.matmul %327, %8, %cst_65 {dimension_numbers = #tpu.dot_dimension_numbers<[1], [0], [0], [1], [0, 0, 1, 1], [], []>} : vector<8x16xf32>, vector<16x48xf32>, vector<8x48xf32> -> vector<8x48xf32>
    %568 = vector.broadcast %10 : vector<1x48xf32> to vector<8x48xf32>
    %569 = arith.addf %567, %568 : vector<8x48xf32>
    %570 = vector.extract_strided_slice %566 {offsets = [0, 0], sizes = [8, 16], strides = [1, 1]} : vector<8x48xf32> to vector<8x16xf32>
    %571 = vector.extract_strided_slice %569 {offsets = [0, 0], sizes = [8, 16], strides = [1, 1]} : vector<8x48xf32> to vector<8x16xf32>
    %572 = arith.addf %570, %571 : vector<8x16xf32>
    %573 = arith.negf %572 : vector<8x16xf32>
    %574 = math.exp %573 : vector<8x16xf32>
    %cst_66 = arith.constant 1.000000e+00 : f32
    %575 = vector.broadcast %cst_66 : f32 to vector<8x16xf32>
    %576 = arith.addf %575, %574 : vector<8x16xf32>
    %577 = arith.divf %575, %576 : vector<8x16xf32>
    %578 = vector.extract_strided_slice %566 {offsets = [0, 16], sizes = [8, 16], strides = [1, 1]} : vector<8x48xf32> to vector<8x16xf32>
    %579 = vector.extract_strided_slice %569 {offsets = [0, 16], sizes = [8, 16], strides = [1, 1]} : vector<8x48xf32> to vector<8x16xf32>
    %580 = arith.addf %578, %579 : vector<8x16xf32>
    %581 = arith.negf %580 : vector<8x16xf32>
    %582 = math.exp %581 : vector<8x16xf32>
    %cst_67 = arith.constant 1.000000e+00 : f32
    %583 = vector.broadcast %cst_67 : f32 to vector<8x16xf32>
    %584 = arith.addf %583, %582 : vector<8x16xf32>
    %585 = arith.divf %583, %584 : vector<8x16xf32>
    %586 = vector.extract_strided_slice %566 {offsets = [0, 32], sizes = [8, 16], strides = [1, 1]} : vector<8x48xf32> to vector<8x16xf32>
    %587 = vector.extract_strided_slice %569 {offsets = [0, 32], sizes = [8, 16], strides = [1, 1]} : vector<8x48xf32> to vector<8x16xf32>
    %588 = arith.mulf %577, %587 : vector<8x16xf32>
    %589 = arith.addf %586, %588 : vector<8x16xf32>
    %590 = math.tanh %589 : vector<8x16xf32>
    %cst_68 = arith.constant 1.000000e+00 : f32
    %591 = vector.broadcast %cst_68 : f32 to vector<8x16xf32>
    %592 = arith.subf %591, %585 : vector<8x16xf32>
    %593 = arith.mulf %592, %590 : vector<8x16xf32>
    %594 = arith.mulf %585, %327 : vector<8x16xf32>
    %595 = arith.addf %593, %594 : vector<8x16xf32>
    %c0_69 = arith.constant 0 : index
    %c32_70 = arith.constant 32 : index
    %596 = vector.load %arg4[%c0_69, %c32_70] : memref<32x1280xf32, #tpu.memory_space<vmem>>, vector<16x16xf32>
    %cst_71 = arith.constant dense<0.000000e+00> : vector<8x16xf32>
    %597 = tpu.matmul %595, %596, %cst_71 {dimension_numbers = #tpu.dot_dimension_numbers<[1], [0], [0], [1], [0, 0, 1, 1], [], []>} : vector<8x16xf32>, vector<16x16xf32>, vector<8x16xf32> -> vector<8x16xf32>
    %cst_72 = arith.constant dense<0.000000e+00> : vector<8x8xf32>
    %598 = tpu.matmul %6, %597, %cst_72 {dimension_numbers = #tpu.dot_dimension_numbers<[1], [1], [0], [0], [0, 0, 1, 0], [], []>} : vector<8x16xf32>, vector<8x16xf32>, vector<8x8xf32> -> vector<8x8xf32>
    %599 = vector.extract_strided_slice %598 {offsets = [0, 0], sizes = [1, 8], strides = [1, 1]} : vector<8x8xf32> to vector<1x8xf32>
    %600 = vector.broadcast %599 : vector<1x8xf32> to vector<8x8xf32>
    %601 = arith.mulf %3, %600 : vector<8x8xf32>
    %602 = vector.broadcast %11 : f32 to vector<8x8xf32>
    %603 = arith.addf %601, %602 : vector<8x8xf32>
    %604 = math.absf %603 : vector<8x8xf32>
    %cst_73 = arith.constant 1.000000e+00 : f32
    %605 = vector.broadcast %cst_73 : f32 to vector<8x8xf32>
    %606 = arith.addf %605, %604 : vector<8x8xf32>
    %607 = tpu.reciprocal %606 {approx = true} : vector<8x8xf32> -> vector<8x8xf32>
    %608 = arith.mulf %603, %607 : vector<8x8xf32>
    %609 = vector.extract_strided_slice %598 {offsets = [1, 0], sizes = [1, 8], strides = [1, 1]} : vector<8x8xf32> to vector<1x8xf32>
    %610 = vector.broadcast %609 : vector<1x8xf32> to vector<8x8xf32>
    %611 = arith.mulf %3, %610 : vector<8x8xf32>
    %612 = vector.broadcast %12 : f32 to vector<8x8xf32>
    %613 = arith.addf %611, %612 : vector<8x8xf32>
    %614 = math.absf %613 : vector<8x8xf32>
    %cst_74 = arith.constant 1.000000e+00 : f32
    %615 = vector.broadcast %cst_74 : f32 to vector<8x8xf32>
    %616 = arith.addf %615, %614 : vector<8x8xf32>
    %617 = tpu.reciprocal %616 {approx = true} : vector<8x8xf32> -> vector<8x8xf32>
    %618 = arith.mulf %613, %617 : vector<8x8xf32>
    %619 = vector.extract_strided_slice %598 {offsets = [2, 0], sizes = [1, 8], strides = [1, 1]} : vector<8x8xf32> to vector<1x8xf32>
    %620 = vector.broadcast %619 : vector<1x8xf32> to vector<8x8xf32>
    %621 = arith.mulf %3, %620 : vector<8x8xf32>
    %622 = vector.broadcast %13 : f32 to vector<8x8xf32>
    %623 = arith.addf %621, %622 : vector<8x8xf32>
    %624 = math.absf %623 : vector<8x8xf32>
    %cst_75 = arith.constant 1.000000e+00 : f32
    %625 = vector.broadcast %cst_75 : f32 to vector<8x8xf32>
    %626 = arith.addf %625, %624 : vector<8x8xf32>
    %627 = tpu.reciprocal %626 {approx = true} : vector<8x8xf32> -> vector<8x8xf32>
    %628 = arith.mulf %623, %627 : vector<8x8xf32>
    %629 = vector.extract_strided_slice %598 {offsets = [3, 0], sizes = [1, 8], strides = [1, 1]} : vector<8x8xf32> to vector<1x8xf32>
    %630 = vector.broadcast %629 : vector<1x8xf32> to vector<8x8xf32>
    %631 = arith.mulf %3, %630 : vector<8x8xf32>
    %632 = vector.broadcast %14 : f32 to vector<8x8xf32>
    %633 = arith.addf %631, %632 : vector<8x8xf32>
    %634 = math.absf %633 : vector<8x8xf32>
    %cst_76 = arith.constant 1.000000e+00 : f32
    %635 = vector.broadcast %cst_76 : f32 to vector<8x8xf32>
    %636 = arith.addf %635, %634 : vector<8x8xf32>
    %637 = tpu.reciprocal %636 {approx = true} : vector<8x8xf32> -> vector<8x8xf32>
    %638 = arith.mulf %633, %637 : vector<8x8xf32>
    %639 = vector.extract_strided_slice %598 {offsets = [4, 0], sizes = [1, 8], strides = [1, 1]} : vector<8x8xf32> to vector<1x8xf32>
    %640 = vector.broadcast %639 : vector<1x8xf32> to vector<8x8xf32>
    %641 = arith.mulf %3, %640 : vector<8x8xf32>
    %642 = vector.broadcast %15 : f32 to vector<8x8xf32>
    %643 = arith.addf %641, %642 : vector<8x8xf32>
    %644 = math.absf %643 : vector<8x8xf32>
    %cst_77 = arith.constant 1.000000e+00 : f32
    %645 = vector.broadcast %cst_77 : f32 to vector<8x8xf32>
    %646 = arith.addf %645, %644 : vector<8x8xf32>
    %647 = tpu.reciprocal %646 {approx = true} : vector<8x8xf32> -> vector<8x8xf32>
    %648 = arith.mulf %643, %647 : vector<8x8xf32>
    %649 = vector.extract_strided_slice %598 {offsets = [5, 0], sizes = [1, 8], strides = [1, 1]} : vector<8x8xf32> to vector<1x8xf32>
    %650 = vector.broadcast %649 : vector<1x8xf32> to vector<8x8xf32>
    %651 = arith.mulf %3, %650 : vector<8x8xf32>
    %652 = vector.broadcast %16 : f32 to vector<8x8xf32>
    %653 = arith.addf %651, %652 : vector<8x8xf32>
    %654 = math.absf %653 : vector<8x8xf32>
    %cst_78 = arith.constant 1.000000e+00 : f32
    %655 = vector.broadcast %cst_78 : f32 to vector<8x8xf32>
    %656 = arith.addf %655, %654 : vector<8x8xf32>
    %657 = tpu.reciprocal %656 {approx = true} : vector<8x8xf32> -> vector<8x8xf32>
    %658 = arith.mulf %653, %657 : vector<8x8xf32>
    %659 = vector.extract_strided_slice %598 {offsets = [6, 0], sizes = [1, 8], strides = [1, 1]} : vector<8x8xf32> to vector<1x8xf32>
    %660 = vector.broadcast %659 : vector<1x8xf32> to vector<8x8xf32>
    %661 = arith.mulf %3, %660 : vector<8x8xf32>
    %662 = vector.broadcast %17 : f32 to vector<8x8xf32>
    %663 = arith.addf %661, %662 : vector<8x8xf32>
    %664 = math.absf %663 : vector<8x8xf32>
    %cst_79 = arith.constant 1.000000e+00 : f32
    %665 = vector.broadcast %cst_79 : f32 to vector<8x8xf32>
    %666 = arith.addf %665, %664 : vector<8x8xf32>
    %667 = tpu.reciprocal %666 {approx = true} : vector<8x8xf32> -> vector<8x8xf32>
    %668 = arith.mulf %663, %667 : vector<8x8xf32>
    %669 = vector.extract_strided_slice %598 {offsets = [7, 0], sizes = [1, 8], strides = [1, 1]} : vector<8x8xf32> to vector<1x8xf32>
    %670 = vector.broadcast %669 : vector<1x8xf32> to vector<8x8xf32>
    %671 = arith.mulf %3, %670 : vector<8x8xf32>
    %672 = vector.broadcast %18 : f32 to vector<8x8xf32>
    %673 = arith.addf %671, %672 : vector<8x8xf32>
    %674 = math.absf %673 : vector<8x8xf32>
    %cst_80 = arith.constant 1.000000e+00 : f32
    %675 = vector.broadcast %cst_80 : f32 to vector<8x8xf32>
    %676 = arith.addf %675, %674 : vector<8x8xf32>
    %677 = tpu.reciprocal %676 {approx = true} : vector<8x8xf32> -> vector<8x8xf32>
    %678 = arith.mulf %673, %677 : vector<8x8xf32>
    %679 = vector.broadcast %19 : f32 to vector<8x8xf32>
    %680 = arith.mulf %679, %608 : vector<8x8xf32>
    %681 = vector.broadcast %51 : f32 to vector<8x8xf32>
    %682 = arith.addf %681, %680 : vector<8x8xf32>
    %683 = vector.broadcast %23 : f32 to vector<8x8xf32>
    %684 = arith.mulf %683, %618 : vector<8x8xf32>
    %685 = arith.addf %682, %684 : vector<8x8xf32>
    %686 = vector.broadcast %27 : f32 to vector<8x8xf32>
    %687 = arith.mulf %686, %628 : vector<8x8xf32>
    %688 = arith.addf %685, %687 : vector<8x8xf32>
    %689 = vector.broadcast %31 : f32 to vector<8x8xf32>
    %690 = arith.mulf %689, %638 : vector<8x8xf32>
    %691 = arith.addf %688, %690 : vector<8x8xf32>
    %692 = vector.broadcast %35 : f32 to vector<8x8xf32>
    %693 = arith.mulf %692, %648 : vector<8x8xf32>
    %694 = arith.addf %691, %693 : vector<8x8xf32>
    %695 = vector.broadcast %39 : f32 to vector<8x8xf32>
    %696 = arith.mulf %695, %658 : vector<8x8xf32>
    %697 = arith.addf %694, %696 : vector<8x8xf32>
    %698 = vector.broadcast %43 : f32 to vector<8x8xf32>
    %699 = arith.mulf %698, %668 : vector<8x8xf32>
    %700 = arith.addf %697, %699 : vector<8x8xf32>
    %701 = vector.broadcast %47 : f32 to vector<8x8xf32>
    %702 = arith.mulf %701, %678 : vector<8x8xf32>
    %703 = arith.addf %700, %702 : vector<8x8xf32>
    %704 = math.absf %703 : vector<8x8xf32>
    %cst_81 = arith.constant 1.000000e+00 : f32
    %705 = vector.broadcast %cst_81 : f32 to vector<8x8xf32>
    %706 = arith.addf %705, %704 : vector<8x8xf32>
    %707 = tpu.reciprocal %706 {approx = true} : vector<8x8xf32> -> vector<8x8xf32>
    %708 = arith.mulf %703, %707 : vector<8x8xf32>
    %709 = vector.broadcast %20 : f32 to vector<8x8xf32>
    %710 = arith.mulf %709, %608 : vector<8x8xf32>
    %711 = vector.broadcast %52 : f32 to vector<8x8xf32>
    %712 = arith.addf %711, %710 : vector<8x8xf32>
    %713 = vector.broadcast %24 : f32 to vector<8x8xf32>
    %714 = arith.mulf %713, %618 : vector<8x8xf32>
    %715 = arith.addf %712, %714 : vector<8x8xf32>
    %716 = vector.broadcast %28 : f32 to vector<8x8xf32>
    %717 = arith.mulf %716, %628 : vector<8x8xf32>
    %718 = arith.addf %715, %717 : vector<8x8xf32>
    %719 = vector.broadcast %32 : f32 to vector<8x8xf32>
    %720 = arith.mulf %719, %638 : vector<8x8xf32>
    %721 = arith.addf %718, %720 : vector<8x8xf32>
    %722 = vector.broadcast %36 : f32 to vector<8x8xf32>
    %723 = arith.mulf %722, %648 : vector<8x8xf32>
    %724 = arith.addf %721, %723 : vector<8x8xf32>
    %725 = vector.broadcast %40 : f32 to vector<8x8xf32>
    %726 = arith.mulf %725, %658 : vector<8x8xf32>
    %727 = arith.addf %724, %726 : vector<8x8xf32>
    %728 = vector.broadcast %44 : f32 to vector<8x8xf32>
    %729 = arith.mulf %728, %668 : vector<8x8xf32>
    %730 = arith.addf %727, %729 : vector<8x8xf32>
    %731 = vector.broadcast %48 : f32 to vector<8x8xf32>
    %732 = arith.mulf %731, %678 : vector<8x8xf32>
    %733 = arith.addf %730, %732 : vector<8x8xf32>
    %734 = math.absf %733 : vector<8x8xf32>
    %cst_82 = arith.constant 1.000000e+00 : f32
    %735 = vector.broadcast %cst_82 : f32 to vector<8x8xf32>
    %736 = arith.addf %735, %734 : vector<8x8xf32>
    %737 = tpu.reciprocal %736 {approx = true} : vector<8x8xf32> -> vector<8x8xf32>
    %738 = arith.mulf %733, %737 : vector<8x8xf32>
    %739 = vector.broadcast %21 : f32 to vector<8x8xf32>
    %740 = arith.mulf %739, %608 : vector<8x8xf32>
    %741 = vector.broadcast %53 : f32 to vector<8x8xf32>
    %742 = arith.addf %741, %740 : vector<8x8xf32>
    %743 = vector.broadcast %25 : f32 to vector<8x8xf32>
    %744 = arith.mulf %743, %618 : vector<8x8xf32>
    %745 = arith.addf %742, %744 : vector<8x8xf32>
    %746 = vector.broadcast %29 : f32 to vector<8x8xf32>
    %747 = arith.mulf %746, %628 : vector<8x8xf32>
    %748 = arith.addf %745, %747 : vector<8x8xf32>
    %749 = vector.broadcast %33 : f32 to vector<8x8xf32>
    %750 = arith.mulf %749, %638 : vector<8x8xf32>
    %751 = arith.addf %748, %750 : vector<8x8xf32>
    %752 = vector.broadcast %37 : f32 to vector<8x8xf32>
    %753 = arith.mulf %752, %648 : vector<8x8xf32>
    %754 = arith.addf %751, %753 : vector<8x8xf32>
    %755 = vector.broadcast %41 : f32 to vector<8x8xf32>
    %756 = arith.mulf %755, %658 : vector<8x8xf32>
    %757 = arith.addf %754, %756 : vector<8x8xf32>
    %758 = vector.broadcast %45 : f32 to vector<8x8xf32>
    %759 = arith.mulf %758, %668 : vector<8x8xf32>
    %760 = arith.addf %757, %759 : vector<8x8xf32>
    %761 = vector.broadcast %49 : f32 to vector<8x8xf32>
    %762 = arith.mulf %761, %678 : vector<8x8xf32>
    %763 = arith.addf %760, %762 : vector<8x8xf32>
    %764 = math.absf %763 : vector<8x8xf32>
    %cst_83 = arith.constant 1.000000e+00 : f32
    %765 = vector.broadcast %cst_83 : f32 to vector<8x8xf32>
    %766 = arith.addf %765, %764 : vector<8x8xf32>
    %767 = tpu.reciprocal %766 {approx = true} : vector<8x8xf32> -> vector<8x8xf32>
    %768 = arith.mulf %763, %767 : vector<8x8xf32>
    %769 = vector.broadcast %22 : f32 to vector<8x8xf32>
    %770 = arith.mulf %769, %608 : vector<8x8xf32>
    %771 = vector.broadcast %54 : f32 to vector<8x8xf32>
    %772 = arith.addf %771, %770 : vector<8x8xf32>
    %773 = vector.broadcast %26 : f32 to vector<8x8xf32>
    %774 = arith.mulf %773, %618 : vector<8x8xf32>
    %775 = arith.addf %772, %774 : vector<8x8xf32>
    %776 = vector.broadcast %30 : f32 to vector<8x8xf32>
    %777 = arith.mulf %776, %628 : vector<8x8xf32>
    %778 = arith.addf %775, %777 : vector<8x8xf32>
    %779 = vector.broadcast %34 : f32 to vector<8x8xf32>
    %780 = arith.mulf %779, %638 : vector<8x8xf32>
    %781 = arith.addf %778, %780 : vector<8x8xf32>
    %782 = vector.broadcast %38 : f32 to vector<8x8xf32>
    %783 = arith.mulf %782, %648 : vector<8x8xf32>
    %784 = arith.addf %781, %783 : vector<8x8xf32>
    %785 = vector.broadcast %42 : f32 to vector<8x8xf32>
    %786 = arith.mulf %785, %658 : vector<8x8xf32>
    %787 = arith.addf %784, %786 : vector<8x8xf32>
    %788 = vector.broadcast %46 : f32 to vector<8x8xf32>
    %789 = arith.mulf %788, %668 : vector<8x8xf32>
    %790 = arith.addf %787, %789 : vector<8x8xf32>
    %791 = vector.broadcast %50 : f32 to vector<8x8xf32>
    %792 = arith.mulf %791, %678 : vector<8x8xf32>
    %793 = arith.addf %790, %792 : vector<8x8xf32>
    %794 = math.absf %793 : vector<8x8xf32>
    %cst_84 = arith.constant 1.000000e+00 : f32
    %795 = vector.broadcast %cst_84 : f32 to vector<8x8xf32>
    %796 = arith.addf %795, %794 : vector<8x8xf32>
    %797 = tpu.reciprocal %796 {approx = true} : vector<8x8xf32> -> vector<8x8xf32>
    %798 = arith.mulf %793, %797 : vector<8x8xf32>
    %799 = vector.broadcast %55 : f32 to vector<8x8xf32>
    %800 = arith.mulf %799, %708 : vector<8x8xf32>
    %801 = vector.broadcast %59 : f32 to vector<8x8xf32>
    %802 = arith.addf %801, %800 : vector<8x8xf32>
    %803 = vector.broadcast %56 : f32 to vector<8x8xf32>
    %804 = arith.mulf %803, %738 : vector<8x8xf32>
    %805 = arith.addf %802, %804 : vector<8x8xf32>
    %806 = vector.broadcast %57 : f32 to vector<8x8xf32>
    %807 = arith.mulf %806, %768 : vector<8x8xf32>
    %808 = arith.addf %805, %807 : vector<8x8xf32>
    %809 = vector.broadcast %58 : f32 to vector<8x8xf32>
    %810 = arith.mulf %809, %798 : vector<8x8xf32>
    %811 = arith.addf %808, %810 : vector<8x8xf32>
    %cst_85 = arith.constant -1.000000e+30 : f32
    %812 = vector.broadcast %cst_85 : f32 to vector<8x8xf32>
    %813 = arith.select %5, %811, %812 : vector<8x8xi1>, vector<8x8xf32>
    %cst_86 = arith.constant dense<0xFF800000> : vector<8xf32>
    %814 = vector.multi_reduction <maximumf>, %813, %cst_86 [1] : vector<8x8xf32> to vector<8xf32>
    %815 = vector.shape_cast %814 : vector<8xf32> to vector<8x1xf32>
    %cst_87 = arith.constant 0.000000e+00 : f32
    %816 = vector.broadcast %cst_87 : f32 to vector<8x1xf32>
    %817 = arith.maximumf %815, %816 : vector<8x1xf32>
    %818 = vector.broadcast %817 : vector<8x1xf32> to vector<8x8xf32>
    %819 = arith.subf %811, %818 : vector<8x8xf32>
    %820 = math.exp %819 : vector<8x8xf32>
    %cst_88 = arith.constant 0.000000e+00 : f32
    %821 = vector.broadcast %cst_88 : f32 to vector<8x8xf32>
    %822 = arith.select %5, %820, %821 : vector<8x8xi1>, vector<8x8xf32>
    %cst_89 = arith.constant dense<0.000000e+00> : vector<8xf32>
    %823 = vector.multi_reduction <add>, %822, %cst_89 [1] : vector<8x8xf32> to vector<8xf32>
    %824 = vector.shape_cast %823 : vector<8xf32> to vector<8x1xf32>
    %825 = arith.mulf %822, %3 : vector<8x8xf32>
    %cst_90 = arith.constant dense<0.000000e+00> : vector<8x16xf32>
    %826 = tpu.matmul %825, %597, %cst_90 {dimension_numbers = #tpu.dot_dimension_numbers<[1], [0], [0], [1], [0, 0, 1, 1], [], []>} : vector<8x8xf32>, vector<8x16xf32>, vector<8x16xf32> -> vector<8x16xf32>
    %cst_91 = arith.constant 1.000000e-30 : f32
    %827 = vector.broadcast %cst_91 : f32 to vector<8x1xf32>
    %828 = arith.maximumf %824, %827 : vector<8x1xf32>
    %829 = tpu.reciprocal %828 {approx = true} : vector<8x1xf32> -> vector<8x1xf32>
    %830 = vector.broadcast %829 : vector<8x1xf32> to vector<8x16xf32>
    %831 = arith.mulf %826, %830 : vector<8x16xf32>
    %cst_92 = arith.constant dense<0.000000e+00> : vector<8x48xf32>
    %832 = tpu.matmul %831, %7, %cst_92 {dimension_numbers = #tpu.dot_dimension_numbers<[1], [0], [0], [1], [0, 0, 1, 1], [], []>} : vector<8x16xf32>, vector<16x48xf32>, vector<8x48xf32> -> vector<8x48xf32>
    %833 = vector.broadcast %9 : vector<1x48xf32> to vector<8x48xf32>
    %834 = arith.addf %832, %833 : vector<8x48xf32>
    %cst_93 = arith.constant dense<0.000000e+00> : vector<8x48xf32>
    %835 = tpu.matmul %595, %8, %cst_93 {dimension_numbers = #tpu.dot_dimension_numbers<[1], [0], [0], [1], [0, 0, 1, 1], [], []>} : vector<8x16xf32>, vector<16x48xf32>, vector<8x48xf32> -> vector<8x48xf32>
    %836 = vector.broadcast %10 : vector<1x48xf32> to vector<8x48xf32>
    %837 = arith.addf %835, %836 : vector<8x48xf32>
    %838 = vector.extract_strided_slice %834 {offsets = [0, 0], sizes = [8, 16], strides = [1, 1]} : vector<8x48xf32> to vector<8x16xf32>
    %839 = vector.extract_strided_slice %837 {offsets = [0, 0], sizes = [8, 16], strides = [1, 1]} : vector<8x48xf32> to vector<8x16xf32>
    %840 = arith.addf %838, %839 : vector<8x16xf32>
    %841 = arith.negf %840 : vector<8x16xf32>
    %842 = math.exp %841 : vector<8x16xf32>
    %cst_94 = arith.constant 1.000000e+00 : f32
    %843 = vector.broadcast %cst_94 : f32 to vector<8x16xf32>
    %844 = arith.addf %843, %842 : vector<8x16xf32>
    %845 = arith.divf %843, %844 : vector<8x16xf32>
    %846 = vector.extract_strided_slice %834 {offsets = [0, 16], sizes = [8, 16], strides = [1, 1]} : vector<8x48xf32> to vector<8x16xf32>
    %847 = vector.extract_strided_slice %837 {offsets = [0, 16], sizes = [8, 16], strides = [1, 1]} : vector<8x48xf32> to vector<8x16xf32>
    %848 = arith.addf %846, %847 : vector<8x16xf32>
    %849 = arith.negf %848 : vector<8x16xf32>
    %850 = math.exp %849 : vector<8x16xf32>
    %cst_95 = arith.constant 1.000000e+00 : f32
    %851 = vector.broadcast %cst_95 : f32 to vector<8x16xf32>
    %852 = arith.addf %851, %850 : vector<8x16xf32>
    %853 = arith.divf %851, %852 : vector<8x16xf32>
    %854 = vector.extract_strided_slice %834 {offsets = [0, 32], sizes = [8, 16], strides = [1, 1]} : vector<8x48xf32> to vector<8x16xf32>
    %855 = vector.extract_strided_slice %837 {offsets = [0, 32], sizes = [8, 16], strides = [1, 1]} : vector<8x48xf32> to vector<8x16xf32>
    %856 = arith.mulf %845, %855 : vector<8x16xf32>
    %857 = arith.addf %854, %856 : vector<8x16xf32>
    %858 = math.tanh %857 : vector<8x16xf32>
    %cst_96 = arith.constant 1.000000e+00 : f32
    %859 = vector.broadcast %cst_96 : f32 to vector<8x16xf32>
    %860 = arith.subf %859, %853 : vector<8x16xf32>
    %861 = arith.mulf %860, %858 : vector<8x16xf32>
    %862 = arith.mulf %853, %595 : vector<8x16xf32>
    %863 = arith.addf %861, %862 : vector<8x16xf32>
    %c0_97 = arith.constant 0 : index
    %c48_98 = arith.constant 48 : index
    %864 = vector.load %arg4[%c0_97, %c48_98] : memref<32x1280xf32, #tpu.memory_space<vmem>>, vector<16x16xf32>
    %cst_99 = arith.constant dense<0.000000e+00> : vector<8x16xf32>
    %865 = tpu.matmul %863, %864, %cst_99 {dimension_numbers = #tpu.dot_dimension_numbers<[1], [0], [0], [1], [0, 0, 1, 1], [], []>} : vector<8x16xf32>, vector<16x16xf32>, vector<8x16xf32> -> vector<8x16xf32>
    %cst_100 = arith.constant dense<0.000000e+00> : vector<8x8xf32>
    %866 = tpu.matmul %6, %865, %cst_100 {dimension_numbers = #tpu.dot_dimension_numbers<[1], [1], [0], [0], [0, 0, 1, 0], [], []>} : vector<8x16xf32>, vector<8x16xf32>, vector<8x8xf32> -> vector<8x8xf32>
    %867 = vector.extract_strided_slice %866 {offsets = [0, 0], sizes = [1, 8], strides = [1, 1]} : vector<8x8xf32> to vector<1x8xf32>
    %868 = vector.broadcast %867 : vector<1x8xf32> to vector<8x8xf32>
    %869 = arith.mulf %3, %868 : vector<8x8xf32>
    %870 = vector.broadcast %11 : f32 to vector<8x8xf32>
    %871 = arith.addf %869, %870 : vector<8x8xf32>
    %872 = math.absf %871 : vector<8x8xf32>
    %cst_101 = arith.constant 1.000000e+00 : f32
    %873 = vector.broadcast %cst_101 : f32 to vector<8x8xf32>
    %874 = arith.addf %873, %872 : vector<8x8xf32>
    %875 = tpu.reciprocal %874 {approx = true} : vector<8x8xf32> -> vector<8x8xf32>
    %876 = arith.mulf %871, %875 : vector<8x8xf32>
    %877 = vector.extract_strided_slice %866 {offsets = [1, 0], sizes = [1, 8], strides = [1, 1]} : vector<8x8xf32> to vector<1x8xf32>
    %878 = vector.broadcast %877 : vector<1x8xf32> to vector<8x8xf32>
    %879 = arith.mulf %3, %878 : vector<8x8xf32>
    %880 = vector.broadcast %12 : f32 to vector<8x8xf32>
    %881 = arith.addf %879, %880 : vector<8x8xf32>
    %882 = math.absf %881 : vector<8x8xf32>
    %cst_102 = arith.constant 1.000000e+00 : f32
    %883 = vector.broadcast %cst_102 : f32 to vector<8x8xf32>
    %884 = arith.addf %883, %882 : vector<8x8xf32>
    %885 = tpu.reciprocal %884 {approx = true} : vector<8x8xf32> -> vector<8x8xf32>
    %886 = arith.mulf %881, %885 : vector<8x8xf32>
    %887 = vector.extract_strided_slice %866 {offsets = [2, 0], sizes = [1, 8], strides = [1, 1]} : vector<8x8xf32> to vector<1x8xf32>
    %888 = vector.broadcast %887 : vector<1x8xf32> to vector<8x8xf32>
    %889 = arith.mulf %3, %888 : vector<8x8xf32>
    %890 = vector.broadcast %13 : f32 to vector<8x8xf32>
    %891 = arith.addf %889, %890 : vector<8x8xf32>
    %892 = math.absf %891 : vector<8x8xf32>
    %cst_103 = arith.constant 1.000000e+00 : f32
    %893 = vector.broadcast %cst_103 : f32 to vector<8x8xf32>
    %894 = arith.addf %893, %892 : vector<8x8xf32>
    %895 = tpu.reciprocal %894 {approx = true} : vector<8x8xf32> -> vector<8x8xf32>
    %896 = arith.mulf %891, %895 : vector<8x8xf32>
    %897 = vector.extract_strided_slice %866 {offsets = [3, 0], sizes = [1, 8], strides = [1, 1]} : vector<8x8xf32> to vector<1x8xf32>
    %898 = vector.broadcast %897 : vector<1x8xf32> to vector<8x8xf32>
    %899 = arith.mulf %3, %898 : vector<8x8xf32>
    %900 = vector.broadcast %14 : f32 to vector<8x8xf32>
    %901 = arith.addf %899, %900 : vector<8x8xf32>
    %902 = math.absf %901 : vector<8x8xf32>
    %cst_104 = arith.constant 1.000000e+00 : f32
    %903 = vector.broadcast %cst_104 : f32 to vector<8x8xf32>
    %904 = arith.addf %903, %902 : vector<8x8xf32>
    %905 = tpu.reciprocal %904 {approx = true} : vector<8x8xf32> -> vector<8x8xf32>
    %906 = arith.mulf %901, %905 : vector<8x8xf32>
    %907 = vector.extract_strided_slice %866 {offsets = [4, 0], sizes = [1, 8], strides = [1, 1]} : vector<8x8xf32> to vector<1x8xf32>
    %908 = vector.broadcast %907 : vector<1x8xf32> to vector<8x8xf32>
    %909 = arith.mulf %3, %908 : vector<8x8xf32>
    %910 = vector.broadcast %15 : f32 to vector<8x8xf32>
    %911 = arith.addf %909, %910 : vector<8x8xf32>
    %912 = math.absf %911 : vector<8x8xf32>
    %cst_105 = arith.constant 1.000000e+00 : f32
    %913 = vector.broadcast %cst_105 : f32 to vector<8x8xf32>
    %914 = arith.addf %913, %912 : vector<8x8xf32>
    %915 = tpu.reciprocal %914 {approx = true} : vector<8x8xf32> -> vector<8x8xf32>
    %916 = arith.mulf %911, %915 : vector<8x8xf32>
    %917 = vector.extract_strided_slice %866 {offsets = [5, 0], sizes = [1, 8], strides = [1, 1]} : vector<8x8xf32> to vector<1x8xf32>
    %918 = vector.broadcast %917 : vector<1x8xf32> to vector<8x8xf32>
    %919 = arith.mulf %3, %918 : vector<8x8xf32>
    %920 = vector.broadcast %16 : f32 to vector<8x8xf32>
    %921 = arith.addf %919, %920 : vector<8x8xf32>
    %922 = math.absf %921 : vector<8x8xf32>
    %cst_106 = arith.constant 1.000000e+00 : f32
    %923 = vector.broadcast %cst_106 : f32 to vector<8x8xf32>
    %924 = arith.addf %923, %922 : vector<8x8xf32>
    %925 = tpu.reciprocal %924 {approx = true} : vector<8x8xf32> -> vector<8x8xf32>
    %926 = arith.mulf %921, %925 : vector<8x8xf32>
    %927 = vector.extract_strided_slice %866 {offsets = [6, 0], sizes = [1, 8], strides = [1, 1]} : vector<8x8xf32> to vector<1x8xf32>
    %928 = vector.broadcast %927 : vector<1x8xf32> to vector<8x8xf32>
    %929 = arith.mulf %3, %928 : vector<8x8xf32>
    %930 = vector.broadcast %17 : f32 to vector<8x8xf32>
    %931 = arith.addf %929, %930 : vector<8x8xf32>
    %932 = math.absf %931 : vector<8x8xf32>
    %cst_107 = arith.constant 1.000000e+00 : f32
    %933 = vector.broadcast %cst_107 : f32 to vector<8x8xf32>
    %934 = arith.addf %933, %932 : vector<8x8xf32>
    %935 = tpu.reciprocal %934 {approx = true} : vector<8x8xf32> -> vector<8x8xf32>
    %936 = arith.mulf %931, %935 : vector<8x8xf32>
    %937 = vector.extract_strided_slice %866 {offsets = [7, 0], sizes = [1, 8], strides = [1, 1]} : vector<8x8xf32> to vector<1x8xf32>
    %938 = vector.broadcast %937 : vector<1x8xf32> to vector<8x8xf32>
    %939 = arith.mulf %3, %938 : vector<8x8xf32>
    %940 = vector.broadcast %18 : f32 to vector<8x8xf32>
    %941 = arith.addf %939, %940 : vector<8x8xf32>
    %942 = math.absf %941 : vector<8x8xf32>
    %cst_108 = arith.constant 1.000000e+00 : f32
    %943 = vector.broadcast %cst_108 : f32 to vector<8x8xf32>
    %944 = arith.addf %943, %942 : vector<8x8xf32>
    %945 = tpu.reciprocal %944 {approx = true} : vector<8x8xf32> -> vector<8x8xf32>
    %946 = arith.mulf %941, %945 : vector<8x8xf32>
    %947 = vector.broadcast %19 : f32 to vector<8x8xf32>
    %948 = arith.mulf %947, %876 : vector<8x8xf32>
    %949 = vector.broadcast %51 : f32 to vector<8x8xf32>
    %950 = arith.addf %949, %948 : vector<8x8xf32>
    %951 = vector.broadcast %23 : f32 to vector<8x8xf32>
    %952 = arith.mulf %951, %886 : vector<8x8xf32>
    %953 = arith.addf %950, %952 : vector<8x8xf32>
    %954 = vector.broadcast %27 : f32 to vector<8x8xf32>
    %955 = arith.mulf %954, %896 : vector<8x8xf32>
    %956 = arith.addf %953, %955 : vector<8x8xf32>
    %957 = vector.broadcast %31 : f32 to vector<8x8xf32>
    %958 = arith.mulf %957, %906 : vector<8x8xf32>
    %959 = arith.addf %956, %958 : vector<8x8xf32>
    %960 = vector.broadcast %35 : f32 to vector<8x8xf32>
    %961 = arith.mulf %960, %916 : vector<8x8xf32>
    %962 = arith.addf %959, %961 : vector<8x8xf32>
    %963 = vector.broadcast %39 : f32 to vector<8x8xf32>
    %964 = arith.mulf %963, %926 : vector<8x8xf32>
    %965 = arith.addf %962, %964 : vector<8x8xf32>
    %966 = vector.broadcast %43 : f32 to vector<8x8xf32>
    %967 = arith.mulf %966, %936 : vector<8x8xf32>
    %968 = arith.addf %965, %967 : vector<8x8xf32>
    %969 = vector.broadcast %47 : f32 to vector<8x8xf32>
    %970 = arith.mulf %969, %946 : vector<8x8xf32>
    %971 = arith.addf %968, %970 : vector<8x8xf32>
    %972 = math.absf %971 : vector<8x8xf32>
    %cst_109 = arith.constant 1.000000e+00 : f32
    %973 = vector.broadcast %cst_109 : f32 to vector<8x8xf32>
    %974 = arith.addf %973, %972 : vector<8x8xf32>
    %975 = tpu.reciprocal %974 {approx = true} : vector<8x8xf32> -> vector<8x8xf32>
    %976 = arith.mulf %971, %975 : vector<8x8xf32>
    %977 = vector.broadcast %20 : f32 to vector<8x8xf32>
    %978 = arith.mulf %977, %876 : vector<8x8xf32>
    %979 = vector.broadcast %52 : f32 to vector<8x8xf32>
    %980 = arith.addf %979, %978 : vector<8x8xf32>
    %981 = vector.broadcast %24 : f32 to vector<8x8xf32>
    %982 = arith.mulf %981, %886 : vector<8x8xf32>
    %983 = arith.addf %980, %982 : vector<8x8xf32>
    %984 = vector.broadcast %28 : f32 to vector<8x8xf32>
    %985 = arith.mulf %984, %896 : vector<8x8xf32>
    %986 = arith.addf %983, %985 : vector<8x8xf32>
    %987 = vector.broadcast %32 : f32 to vector<8x8xf32>
    %988 = arith.mulf %987, %906 : vector<8x8xf32>
    %989 = arith.addf %986, %988 : vector<8x8xf32>
    %990 = vector.broadcast %36 : f32 to vector<8x8xf32>
    %991 = arith.mulf %990, %916 : vector<8x8xf32>
    %992 = arith.addf %989, %991 : vector<8x8xf32>
    %993 = vector.broadcast %40 : f32 to vector<8x8xf32>
    %994 = arith.mulf %993, %926 : vector<8x8xf32>
    %995 = arith.addf %992, %994 : vector<8x8xf32>
    %996 = vector.broadcast %44 : f32 to vector<8x8xf32>
    %997 = arith.mulf %996, %936 : vector<8x8xf32>
    %998 = arith.addf %995, %997 : vector<8x8xf32>
    %999 = vector.broadcast %48 : f32 to vector<8x8xf32>
    %1000 = arith.mulf %999, %946 : vector<8x8xf32>
    %1001 = arith.addf %998, %1000 : vector<8x8xf32>
    %1002 = math.absf %1001 : vector<8x8xf32>
    %cst_110 = arith.constant 1.000000e+00 : f32
    %1003 = vector.broadcast %cst_110 : f32 to vector<8x8xf32>
    %1004 = arith.addf %1003, %1002 : vector<8x8xf32>
    %1005 = tpu.reciprocal %1004 {approx = true} : vector<8x8xf32> -> vector<8x8xf32>
    %1006 = arith.mulf %1001, %1005 : vector<8x8xf32>
    %1007 = vector.broadcast %21 : f32 to vector<8x8xf32>
    %1008 = arith.mulf %1007, %876 : vector<8x8xf32>
    %1009 = vector.broadcast %53 : f32 to vector<8x8xf32>
    %1010 = arith.addf %1009, %1008 : vector<8x8xf32>
    %1011 = vector.broadcast %25 : f32 to vector<8x8xf32>
    %1012 = arith.mulf %1011, %886 : vector<8x8xf32>
    %1013 = arith.addf %1010, %1012 : vector<8x8xf32>
    %1014 = vector.broadcast %29 : f32 to vector<8x8xf32>
    %1015 = arith.mulf %1014, %896 : vector<8x8xf32>
    %1016 = arith.addf %1013, %1015 : vector<8x8xf32>
    %1017 = vector.broadcast %33 : f32 to vector<8x8xf32>
    %1018 = arith.mulf %1017, %906 : vector<8x8xf32>
    %1019 = arith.addf %1016, %1018 : vector<8x8xf32>
    %1020 = vector.broadcast %37 : f32 to vector<8x8xf32>
    %1021 = arith.mulf %1020, %916 : vector<8x8xf32>
    %1022 = arith.addf %1019, %1021 : vector<8x8xf32>
    %1023 = vector.broadcast %41 : f32 to vector<8x8xf32>
    %1024 = arith.mulf %1023, %926 : vector<8x8xf32>
    %1025 = arith.addf %1022, %1024 : vector<8x8xf32>
    %1026 = vector.broadcast %45 : f32 to vector<8x8xf32>
    %1027 = arith.mulf %1026, %936 : vector<8x8xf32>
    %1028 = arith.addf %1025, %1027 : vector<8x8xf32>
    %1029 = vector.broadcast %49 : f32 to vector<8x8xf32>
    %1030 = arith.mulf %1029, %946 : vector<8x8xf32>
    %1031 = arith.addf %1028, %1030 : vector<8x8xf32>
    %1032 = math.absf %1031 : vector<8x8xf32>
    %cst_111 = arith.constant 1.000000e+00 : f32
    %1033 = vector.broadcast %cst_111 : f32 to vector<8x8xf32>
    %1034 = arith.addf %1033, %1032 : vector<8x8xf32>
    %1035 = tpu.reciprocal %1034 {approx = true} : vector<8x8xf32> -> vector<8x8xf32>
    %1036 = arith.mulf %1031, %1035 : vector<8x8xf32>
    %1037 = vector.broadcast %22 : f32 to vector<8x8xf32>
    %1038 = arith.mulf %1037, %876 : vector<8x8xf32>
    %1039 = vector.broadcast %54 : f32 to vector<8x8xf32>
    %1040 = arith.addf %1039, %1038 : vector<8x8xf32>
    %1041 = vector.broadcast %26 : f32 to vector<8x8xf32>
    %1042 = arith.mulf %1041, %886 : vector<8x8xf32>
    %1043 = arith.addf %1040, %1042 : vector<8x8xf32>
    %1044 = vector.broadcast %30 : f32 to vector<8x8xf32>
    %1045 = arith.mulf %1044, %896 : vector<8x8xf32>
    %1046 = arith.addf %1043, %1045 : vector<8x8xf32>
    %1047 = vector.broadcast %34 : f32 to vector<8x8xf32>
    %1048 = arith.mulf %1047, %906 : vector<8x8xf32>
    %1049 = arith.addf %1046, %1048 : vector<8x8xf32>
    %1050 = vector.broadcast %38 : f32 to vector<8x8xf32>
    %1051 = arith.mulf %1050, %916 : vector<8x8xf32>
    %1052 = arith.addf %1049, %1051 : vector<8x8xf32>
    %1053 = vector.broadcast %42 : f32 to vector<8x8xf32>
    %1054 = arith.mulf %1053, %926 : vector<8x8xf32>
    %1055 = arith.addf %1052, %1054 : vector<8x8xf32>
    %1056 = vector.broadcast %46 : f32 to vector<8x8xf32>
    %1057 = arith.mulf %1056, %936 : vector<8x8xf32>
    %1058 = arith.addf %1055, %1057 : vector<8x8xf32>
    %1059 = vector.broadcast %50 : f32 to vector<8x8xf32>
    %1060 = arith.mulf %1059, %946 : vector<8x8xf32>
    %1061 = arith.addf %1058, %1060 : vector<8x8xf32>
    %1062 = math.absf %1061 : vector<8x8xf32>
    %cst_112 = arith.constant 1.000000e+00 : f32
    %1063 = vector.broadcast %cst_112 : f32 to vector<8x8xf32>
    %1064 = arith.addf %1063, %1062 : vector<8x8xf32>
    %1065 = tpu.reciprocal %1064 {approx = true} : vector<8x8xf32> -> vector<8x8xf32>
    %1066 = arith.mulf %1061, %1065 : vector<8x8xf32>
    %1067 = vector.broadcast %55 : f32 to vector<8x8xf32>
    %1068 = arith.mulf %1067, %976 : vector<8x8xf32>
    %1069 = vector.broadcast %59 : f32 to vector<8x8xf32>
    %1070 = arith.addf %1069, %1068 : vector<8x8xf32>
    %1071 = vector.broadcast %56 : f32 to vector<8x8xf32>
    %1072 = arith.mulf %1071, %1006 : vector<8x8xf32>
    %1073 = arith.addf %1070, %1072 : vector<8x8xf32>
    %1074 = vector.broadcast %57 : f32 to vector<8x8xf32>
    %1075 = arith.mulf %1074, %1036 : vector<8x8xf32>
    %1076 = arith.addf %1073, %1075 : vector<8x8xf32>
    %1077 = vector.broadcast %58 : f32 to vector<8x8xf32>
    %1078 = arith.mulf %1077, %1066 : vector<8x8xf32>
    %1079 = arith.addf %1076, %1078 : vector<8x8xf32>
    %cst_113 = arith.constant -1.000000e+30 : f32
    %1080 = vector.broadcast %cst_113 : f32 to vector<8x8xf32>
    %1081 = arith.select %5, %1079, %1080 : vector<8x8xi1>, vector<8x8xf32>
    %cst_114 = arith.constant dense<0xFF800000> : vector<8xf32>
    %1082 = vector.multi_reduction <maximumf>, %1081, %cst_114 [1] : vector<8x8xf32> to vector<8xf32>
    %1083 = vector.shape_cast %1082 : vector<8xf32> to vector<8x1xf32>
    %cst_115 = arith.constant 0.000000e+00 : f32
    %1084 = vector.broadcast %cst_115 : f32 to vector<8x1xf32>
    %1085 = arith.maximumf %1083, %1084 : vector<8x1xf32>
    %1086 = vector.broadcast %1085 : vector<8x1xf32> to vector<8x8xf32>
    %1087 = arith.subf %1079, %1086 : vector<8x8xf32>
    %1088 = math.exp %1087 : vector<8x8xf32>
    %cst_116 = arith.constant 0.000000e+00 : f32
    %1089 = vector.broadcast %cst_116 : f32 to vector<8x8xf32>
    %1090 = arith.select %5, %1088, %1089 : vector<8x8xi1>, vector<8x8xf32>
    %cst_117 = arith.constant dense<0.000000e+00> : vector<8xf32>
    %1091 = vector.multi_reduction <add>, %1090, %cst_117 [1] : vector<8x8xf32> to vector<8xf32>
    %1092 = vector.shape_cast %1091 : vector<8xf32> to vector<8x1xf32>
    %1093 = arith.mulf %1090, %3 : vector<8x8xf32>
    %cst_118 = arith.constant dense<0.000000e+00> : vector<8x16xf32>
    %1094 = tpu.matmul %1093, %865, %cst_118 {dimension_numbers = #tpu.dot_dimension_numbers<[1], [0], [0], [1], [0, 0, 1, 1], [], []>} : vector<8x8xf32>, vector<8x16xf32>, vector<8x16xf32> -> vector<8x16xf32>
    %cst_119 = arith.constant 1.000000e-30 : f32
    %1095 = vector.broadcast %cst_119 : f32 to vector<8x1xf32>
    %1096 = arith.maximumf %1092, %1095 : vector<8x1xf32>
    %1097 = tpu.reciprocal %1096 {approx = true} : vector<8x1xf32> -> vector<8x1xf32>
    %1098 = vector.broadcast %1097 : vector<8x1xf32> to vector<8x16xf32>
    %1099 = arith.mulf %1094, %1098 : vector<8x16xf32>
    %cst_120 = arith.constant dense<0.000000e+00> : vector<8x48xf32>
    %1100 = tpu.matmul %1099, %7, %cst_120 {dimension_numbers = #tpu.dot_dimension_numbers<[1], [0], [0], [1], [0, 0, 1, 1], [], []>} : vector<8x16xf32>, vector<16x48xf32>, vector<8x48xf32> -> vector<8x48xf32>
    %1101 = vector.broadcast %9 : vector<1x48xf32> to vector<8x48xf32>
    %1102 = arith.addf %1100, %1101 : vector<8x48xf32>
    %cst_121 = arith.constant dense<0.000000e+00> : vector<8x48xf32>
    %1103 = tpu.matmul %863, %8, %cst_121 {dimension_numbers = #tpu.dot_dimension_numbers<[1], [0], [0], [1], [0, 0, 1, 1], [], []>} : vector<8x16xf32>, vector<16x48xf32>, vector<8x48xf32> -> vector<8x48xf32>
    %1104 = vector.broadcast %10 : vector<1x48xf32> to vector<8x48xf32>
    %1105 = arith.addf %1103, %1104 : vector<8x48xf32>
    %1106 = vector.extract_strided_slice %1102 {offsets = [0, 0], sizes = [8, 16], strides = [1, 1]} : vector<8x48xf32> to vector<8x16xf32>
    %1107 = vector.extract_strided_slice %1105 {offsets = [0, 0], sizes = [8, 16], strides = [1, 1]} : vector<8x48xf32> to vector<8x16xf32>
    %1108 = arith.addf %1106, %1107 : vector<8x16xf32>
    %1109 = arith.negf %1108 : vector<8x16xf32>
    %1110 = math.exp %1109 : vector<8x16xf32>
    %cst_122 = arith.constant 1.000000e+00 : f32
    %1111 = vector.broadcast %cst_122 : f32 to vector<8x16xf32>
    %1112 = arith.addf %1111, %1110 : vector<8x16xf32>
    %1113 = arith.divf %1111, %1112 : vector<8x16xf32>
    %1114 = vector.extract_strided_slice %1102 {offsets = [0, 16], sizes = [8, 16], strides = [1, 1]} : vector<8x48xf32> to vector<8x16xf32>
    %1115 = vector.extract_strided_slice %1105 {offsets = [0, 16], sizes = [8, 16], strides = [1, 1]} : vector<8x48xf32> to vector<8x16xf32>
    %1116 = arith.addf %1114, %1115 : vector<8x16xf32>
    %1117 = arith.negf %1116 : vector<8x16xf32>
    %1118 = math.exp %1117 : vector<8x16xf32>
    %cst_123 = arith.constant 1.000000e+00 : f32
    %1119 = vector.broadcast %cst_123 : f32 to vector<8x16xf32>
    %1120 = arith.addf %1119, %1118 : vector<8x16xf32>
    %1121 = arith.divf %1119, %1120 : vector<8x16xf32>
    %1122 = vector.extract_strided_slice %1102 {offsets = [0, 32], sizes = [8, 16], strides = [1, 1]} : vector<8x48xf32> to vector<8x16xf32>
    %1123 = vector.extract_strided_slice %1105 {offsets = [0, 32], sizes = [8, 16], strides = [1, 1]} : vector<8x48xf32> to vector<8x16xf32>
    %1124 = arith.mulf %1113, %1123 : vector<8x16xf32>
    %1125 = arith.addf %1122, %1124 : vector<8x16xf32>
    %1126 = math.tanh %1125 : vector<8x16xf32>
    %cst_124 = arith.constant 1.000000e+00 : f32
    %1127 = vector.broadcast %cst_124 : f32 to vector<8x16xf32>
    %1128 = arith.subf %1127, %1121 : vector<8x16xf32>
    %1129 = arith.mulf %1128, %1126 : vector<8x16xf32>
    %1130 = arith.mulf %1121, %863 : vector<8x16xf32>
    %1131 = arith.addf %1129, %1130 : vector<8x16xf32>
    %1132 = tpu.concatenate %1131, %1 in 1 : vector<8x16xf32>, vector<8x16xf32> -> vector<8x32xf32>
    %c0_125 = arith.constant 0 : index
    %c512 = arith.constant 512 : index
    %1133 = vector.load %arg4[%c0_125, %c512] : memref<32x1280xf32, #tpu.memory_space<vmem>>, vector<32x16xf32>
    %cst_126 = arith.constant dense<0.000000e+00> : vector<8x16xf32>
    %1134 = tpu.matmul %1132, %1133, %cst_126 {dimension_numbers = #tpu.dot_dimension_numbers<[1], [0], [0], [1], [0, 0, 1, 1], [], []>} : vector<8x32xf32>, vector<32x16xf32>, vector<8x16xf32> -> vector<8x16xf32>
    %c0_127 = arith.constant 0 : index
    %c256_128 = arith.constant 256 : index
    %1135 = vector.load %arg5[%c0_127, %c256_128] : memref<1x1024xf32, #tpu.memory_space<vmem>>, vector<1x16xf32>
    %1136 = vector.broadcast %1135 : vector<1x16xf32> to vector<8x16xf32>
    %1137 = arith.addf %1134, %1136 : vector<8x16xf32>
    %1138 = math.absf %1137 : vector<8x16xf32>
    %cst_129 = arith.constant 1.000000e+00 : f32
    %1139 = vector.broadcast %cst_129 : f32 to vector<8x16xf32>
    %1140 = arith.addf %1139, %1138 : vector<8x16xf32>
    %1141 = tpu.reciprocal %1140 {approx = true} : vector<8x16xf32> -> vector<8x16xf32>
    %1142 = arith.mulf %1137, %1141 : vector<8x16xf32>
    %c0_130 = arith.constant 0 : index
    %c640 = arith.constant 640 : index
    %1143 = vector.load %arg4[%c0_130, %c640] : memref<32x1280xf32, #tpu.memory_space<vmem>>, vector<16x32xf32>
    %cst_131 = arith.constant dense<0.000000e+00> : vector<8x32xf32>
    %1144 = tpu.matmul %1142, %1143, %cst_131 {dimension_numbers = #tpu.dot_dimension_numbers<[1], [0], [0], [1], [0, 0, 1, 1], [], []>} : vector<8x16xf32>, vector<16x32xf32>, vector<8x32xf32> -> vector<8x32xf32>
    %c0_132 = arith.constant 0 : index
    %c384_133 = arith.constant 384 : index
    %1145 = vector.load %arg5[%c0_132, %c384_133] : memref<1x1024xf32, #tpu.memory_space<vmem>>, vector<1x32xf32>
    %1146 = vector.broadcast %1145 : vector<1x32xf32> to vector<8x32xf32>
    %1147 = arith.addf %1144, %1146 : vector<8x32xf32>
    %1148 = math.absf %1147 : vector<8x32xf32>
    %cst_134 = arith.constant 1.000000e+00 : f32
    %1149 = vector.broadcast %cst_134 : f32 to vector<8x32xf32>
    %1150 = arith.addf %1149, %1148 : vector<8x32xf32>
    %1151 = tpu.reciprocal %1150 {approx = true} : vector<8x32xf32> -> vector<8x32xf32>
    %1152 = arith.mulf %1147, %1151 : vector<8x32xf32>
    %cst_135 = arith.constant dense<0xFF800000> : vector<8xf32>
    %1153 = vector.multi_reduction <maximumf>, %1152, %cst_135 [1] : vector<8x32xf32> to vector<8xf32>
    %1154 = vector.shape_cast %1153 : vector<8xf32> to vector<8x1xf32>
    %1155 = vector.broadcast %1154 : vector<8x1xf32> to vector<8x32xf32>
    %1156 = arith.subf %1152, %1155 : vector<8x32xf32>
    %1157 = math.exp %1156 : vector<8x32xf32>
    %cst_136 = arith.constant dense<0.000000e+00> : vector<8xf32>
    %1158 = vector.multi_reduction <add>, %1157, %cst_136 [1] : vector<8x32xf32> to vector<8xf32>
    %1159 = vector.shape_cast %1158 : vector<8xf32> to vector<8x1xf32>
    %1160 = tpu.reciprocal %1159 {approx = true} : vector<8x1xf32> -> vector<8x1xf32>
    %1161 = vector.broadcast %1160 : vector<8x1xf32> to vector<8x32xf32>
    %1162 = arith.mulf %1157, %1161 : vector<8x32xf32>
    %c0_137 = arith.constant 0 : index
    %c768 = arith.constant 768 : index
    %1163 = vector.load %arg4[%c0_137, %c768] : memref<32x1280xf32, #tpu.memory_space<vmem>>, vector<16x32xf32>
    %cst_138 = arith.constant dense<0.000000e+00> : vector<8x32xf32>
    %1164 = tpu.matmul %1, %1163, %cst_138 {dimension_numbers = #tpu.dot_dimension_numbers<[1], [0], [0], [1], [0, 0, 1, 1], [], []>} : vector<8x16xf32>, vector<16x32xf32>, vector<8x32xf32> -> vector<8x32xf32>
    %c0_139 = arith.constant 0 : index
    %c512_140 = arith.constant 512 : index
    %1165 = vector.load %arg5[%c0_139, %c512_140] : memref<1x1024xf32, #tpu.memory_space<vmem>>, vector<1x32xf32>
    %1166 = vector.broadcast %1165 : vector<1x32xf32> to vector<8x32xf32>
    %1167 = arith.addf %1164, %1166 : vector<8x32xf32>
    %1168 = math.absf %1167 : vector<8x32xf32>
    %cst_141 = arith.constant 1.000000e+00 : f32
    %1169 = vector.broadcast %cst_141 : f32 to vector<8x32xf32>
    %1170 = arith.addf %1169, %1168 : vector<8x32xf32>
    %1171 = tpu.reciprocal %1170 {approx = true} : vector<8x32xf32> -> vector<8x32xf32>
    %1172 = arith.mulf %1167, %1171 : vector<8x32xf32>
    %1173 = arith.mulf %1162, %1172 : vector<8x32xf32>
    %c0_142 = arith.constant 0 : index
    %c0_143 = arith.constant 0 : index
    %c0_144 = arith.constant 0 : index
    %1174 = vector.load %arg3[%c0_142, %c0_143, %c0_144] : memref<1x1x8xf32, #tpu.memory_space<vmem>>, vector<1x1x8xf32>
    %1175 = vector.shape_cast %1174 : vector<1x1x8xf32> to vector<1x8xf32>
    %cst_145 = arith.constant dense<0.000000e+00> : vector<1x32xf32>
    %1176 = tpu.matmul %1175, %1173, %cst_145 {dimension_numbers = #tpu.dot_dimension_numbers<[1], [0], [0], [1], [0, 0, 1, 1], [], []>} : vector<1x8xf32>, vector<8x32xf32>, vector<1x32xf32> -> vector<1x32xf32>
    %c0_146 = arith.constant 0 : index
    %c896 = arith.constant 896 : index
    %1177 = vector.load %arg4[%c0_146, %c896] : memref<32x1280xf32, #tpu.memory_space<vmem>>, vector<32x21xf32>
    %cst_147 = arith.constant dense<0.000000e+00> : vector<1x21xf32>
    %1178 = tpu.matmul %1176, %1177, %cst_147 {dimension_numbers = #tpu.dot_dimension_numbers<[1], [0], [0], [1], [0, 0, 1, 1], [], []>} : vector<1x32xf32>, vector<32x21xf32>, vector<1x21xf32> -> vector<1x21xf32>
    %c0_148 = arith.constant 0 : index
    %c640_149 = arith.constant 640 : index
    %1179 = vector.load %arg5[%c0_148, %c640_149] : memref<1x1024xf32, #tpu.memory_space<vmem>>, vector<1x21xf32>
    %1180 = arith.addf %1178, %1179 : vector<1x21xf32>
    %cst_150 = arith.constant 0.000000e+00 : f32
    %1181 = vector.broadcast %cst_150 : f32 to vector<1x21xf32>
    %1182 = arith.maximumf %1180, %1181 : vector<1x21xf32>
    %c0_151 = arith.constant 0 : index
    %c1024 = arith.constant 1024 : index
    %1183 = vector.load %arg4[%c0_151, %c1024] : memref<32x1280xf32, #tpu.memory_space<vmem>>, vector<21x16xf32>
    %cst_152 = arith.constant dense<0.000000e+00> : vector<1x16xf32>
    %1184 = tpu.matmul %1182, %1183, %cst_152 {dimension_numbers = #tpu.dot_dimension_numbers<[1], [0], [0], [1], [0, 0, 1, 1], [], []>} : vector<1x21xf32>, vector<21x16xf32>, vector<1x16xf32> -> vector<1x16xf32>
    %c0_153 = arith.constant 0 : index
    %c768_154 = arith.constant 768 : index
    %1185 = vector.load %arg5[%c0_153, %c768_154] : memref<1x1024xf32, #tpu.memory_space<vmem>>, vector<1x16xf32>
    %1186 = arith.addf %1184, %1185 : vector<1x16xf32>
    %cst_155 = arith.constant 0.000000e+00 : f32
    %1187 = vector.broadcast %cst_155 : f32 to vector<1x16xf32>
    %1188 = arith.maximumf %1186, %1187 : vector<1x16xf32>
    %c0_156 = arith.constant 0 : index
    %c1152 = arith.constant 1152 : index
    %1189 = vector.load %arg4[%c0_156, %c1152] : memref<32x1280xf32, #tpu.memory_space<vmem>>, vector<16x1xf32>
    %cst_157 = arith.constant dense<0.000000e+00> : vector<1x1xf32>
    %1190 = tpu.matmul %1188, %1189, %cst_157 {dimension_numbers = #tpu.dot_dimension_numbers<[1], [0], [0], [1], [0, 0, 1, 1], [], []>} : vector<1x16xf32>, vector<16x1xf32>, vector<1x1xf32> -> vector<1x1xf32>
    %c0_158 = arith.constant 0 : index
    %c896_159 = arith.constant 896 : index
    %1191 = vector.load %arg5[%c0_158, %c896_159] : memref<1x1024xf32, #tpu.memory_space<vmem>>, vector<1x1xf32>
    %1192 = arith.addf %1190, %1191 : vector<1x1xf32>
    %c0_160 = arith.constant 0 : index
    %c0_161 = arith.constant 0 : index
    %c0_162 = arith.constant 0 : index
    %1193 = vector.load %arg7[%c0_160, %c0_161, %c0_162] : memref<1x1x1xf32, #tpu.memory_space<vmem>>, vector<1x1x1xf32>
    %1194 = vector.shape_cast %1193 : vector<1x1x1xf32> to vector<1x1xf32>
    %1195 = vector.shape_cast %1192 : vector<1x1xf32> to vector<1x1x1xf32>
    tpu.vector_store %arg7[%c0_160, %c0_161, %c0_162], %1195 {strides = array<i32>} : memref<1x1x1xf32, #tpu.memory_space<vmem>>, vector<1x1x1xf32>,
    return
  }
  func.func @transform_0(%arg0: i32) -> (i32, i32, i32) {
    %c0_i32 = arith.constant 0 : i32
    %c0_i32_0 = arith.constant 0 : i32
    %c0_i32_1 = arith.constant 0 : i32
    return %arg0, %c0_i32, %c0_i32_0 : i32, i32, i32
  }
  func.func @transform_1(%arg0: i32) -> (i32, i32, i32) {
    %c0_i32 = arith.constant 0 : i32
    %c0_i32_0 = arith.constant 0 : i32
    %c0_i32_1 = arith.constant 0 : i32
    return %arg0, %c0_i32, %c0_i32_0 : i32, i32, i32
  }
  func.func @transform_2(%arg0: i32) -> (i32, i32, i32) {
    %c0_i32 = arith.constant 0 : i32
    %c0_i32_0 = arith.constant 0 : i32
    %c0_i32_1 = arith.constant 0 : i32
    return %arg0, %c0_i32, %c0_i32_0 : i32, i32, i32
  }
  func.func @transform_3(%arg0: i32) -> (i32, i32) {
    %c0_i32 = arith.constant 0 : i32
    %c0_i32_0 = arith.constant 0 : i32
    %c0_i32_1 = arith.constant 0 : i32
    return %c0_i32, %c0_i32_0 : i32, i32
  }
  func.func @transform_4(%arg0: i32) -> (i32, i32) {
    %c0_i32 = arith.constant 0 : i32
    %c0_i32_0 = arith.constant 0 : i32
    %c0_i32_1 = arith.constant 0 : i32
    return %c0_i32, %c0_i32_0 : i32, i32
  }
  func.func @transform_5(%arg0: i32) -> i32 {
    %c0_i32 = arith.constant 0 : i32
    %c0_i32_0 = arith.constant 0 : i32
    return %c0_i32 : i32
  }
  func.func @transform_6(%arg0: i32) -> (i32, i32, i32) {
    %c0_i32 = arith.constant 0 : i32
    %c0_i32_0 = arith.constant 0 : i32
    %c0_i32_1 = arith.constant 0 : i32
    return %arg0, %c0_i32, %c0_i32_0 : i32, i32, i32
  }
}

</mosaic_0001>

<llo_original>
// kernel: tpu_custom_call.1
$region0: #{tpu_custom_call.1}
  #allocation0 [shape = 'u32[]', space=smem, size = 0x4, offset = 0x4, fixed_abs, tag = 'smem constant byte address 0x4 - core index']
  #allocation1 [shape = 'u32[144,128]{1,0:T(1,128)}', space=vmem, size = 0x12000, scoped, tag = 'internal scratch']
  %s0 = inlined_call_operand.hbm [shape: f32[2,8,16], index: 0, kind: input, shape index: {}]
  %s1 = inlined_call_operand.hbm [shape: f32[2,8,8], index: 1, kind: input, shape index: {}]
  %s2 = inlined_call_operand.vmem [shape: f32[2,1,8], index: 2, kind: input, shape index: {}]
  %s3 = inlined_call_operand.hbm [shape: f32[32,1280], index: 3, kind: input, shape index: {}]
  %s4 = inlined_call_operand.hbm [shape: f32[1,1024], index: 4, kind: input, shape index: {}]
  %s5 = inlined_call_operand.vmem [shape: f32[49], index: 5, kind: input, shape index: {}]
  %s6 = inlined_call_operand.vmem [shape: f32[2,1,1], index: 6, kind: output, shape index: {}]
  %s7 = sld [smem:[#allocation0]]
  $region77: #{tpu_custom_call.1} parent=0
    _
  %s9 = ssub.s32 1, %s7
  %s10 = scalar_select 0, %s9, %s7
  $region1: #{tpu_custom_call.1} parent=0
    #allocation2 [shape = 'u8[8192]{0}', space=vmem, size = 0x2000, scoped, tag = 'input window, operand 0']
    #allocation3 [shape = 's32[2]{0}', space=sflag, size = 0x8, scoped, tag = 'scoped memory for tpu_custom_call.1']
    #allocation4 [shape = 's32[2]{0}', space=sflag, size = 0x8, scoped, tag = 'scoped memory for tpu_custom_call.1']
    #allocation5 [shape = 'u8[8192]{0}', space=vmem, size = 0x2000, scoped, tag = 'input window, operand 1']
    #allocation6 [shape = 's32[2]{0}', space=sflag, size = 0x8, scoped, tag = 'scoped memory for tpu_custom_call.1']
    #allocation7 [shape = 'u8[163840]{0}', space=vmem, size = 0x28000, scoped, tag = 'input window, operand 3, single buffered']
    #allocation8 [shape = 'u8[4096]{0}', space=vmem, size = 0x1000, scoped, tag = 'input window, operand 4, single buffered']
    #allocation9 [shape = 's32[1]{0}', space=sflag, size = 0x4, scoped, tag = 'scoped memory for tpu_custom_call.1']
    #allocation10 [shape = 'u8[512]{0}', space=smem, size = 0x200, scoped, tag = 'input window, operand 5, single buffered']
    %11 = vsyncpa [#allocation3], 0
    %s12 = scalar_lea.sflag [#allocation3], 1
    %13 = vsyncpa %s12, 0
    %14 = vsyncpa [#allocation6], 0
    %s15 = scalar_lea.sflag [#allocation6], 1
    %16 = vsyncpa %s15, 0
    %17 = vsyncpa [#allocation9], 0
    %18 = vsyncpa [#allocation4], 0
    loop: start=0, step=1, limit=4
    $region2: #{tpu_custom_call.1} parent=1 // loop_pre_header
      _
    $region3: #{tpu_custom_call.1} parent=1 // loop_header
      %s20 = sphi 0, %s24
      %p21 = scmp.ge.s32.totalorder %s20, 4
      %s30 = sphi 0, %s32
      %s33 = sphi 0, %s30
      %s34 = sphi 0, %s33
      %s50 = sphi 0, %s34
      %s56 = sphi 0, %s58
      %s59 = sphi 0, %s56
      %s60 = sphi 0, %s59
      %s76 = sphi 0, %s60
      %s82 = sphi 0, %s84
      %s85 = sphi 0, %s82
      %s86 = sphi 0, %s85
      %s102 = sphi 0, %s86
      %s106 = sphi 0, %s106
      %s108 = sphi 0, %s106
      %s109 = sphi 0, %s108
      %s123 = sphi 0, %s109
      %s127 = sphi 0, %s127
      %s129 = sphi 0, %s127
      %s130 = sphi 0, %s129
      %s144 = sphi 0, %s130
      %s148 = sphi 0, %s148
      %s150 = sphi 0, %s148
      %s151 = sphi 0, %s150
      %s165 = sphi 0, %s151
      %s171 = sphi 0, %s173
      %s174 = sphi 0, %s171
      %s175 = sphi 0, %s174
      %s191 = sphi 0, %s175
    $region4: #{tpu_custom_call.1} parent=1 // loop_header_branch
      %23 = sbr.rel (%p21) target = $region8
    $region5: #{tpu_custom_call.1} parent=1 // loop_body
      %s25 = ssub.s32 %s20, 1
      %s26 = ssub.s32 %s20, 2
      %s27 = sadd.s32 %s20, 1
      %s28 = ssub.s32 %s20, %s27
      %p29 = scmp.eq.s32.totalorder %s28, 0
      %s31 = sadd.s32 %s30, 1
      %s32 = scalar_select %p29, %s30, %s31
      %p35 = pneg %p29
      %p36 = scmp.eq.s32.totalorder %s20, 1
      %p37 = por %p35, %p36
      %p38 = scmp.ne.s32.totalorder %s30, %s33
      %p39 = scmp.eq.s32.totalorder %s20, 0
      %p40 = por %p38, %p39
      %p41 = scmp.ne.s32.totalorder %s30, %s33
      %p42 = scmp.eq.s32.totalorder %s25, 1
      %p43 = por %p41, %p42
      %p44 = scmp.ne.s32.totalorder %s33, %s34
      %p45 = scmp.eq.s32.totalorder %s25, 0
      %p46 = por %p44, %p45
      %p47 = scmp.ne.s32.totalorder %s33, %s34
      %p48 = scmp.eq.s32.totalorder %s26, 1
      %p49 = por %p47, %p48
      %p51 = scmp.ne.s32.totalorder %s34, %s50
      %p52 = scmp.eq.s32.totalorder %s26, 0
      %p53 = por %p51, %p52
      %s54 = ssub.s32 %s20, %s27
      %p55 = scmp.eq.s32.totalorder %s54, 0
      %s57 = sadd.s32 %s56, 1
      %s58 = scalar_select %p55, %s56, %s57
      %p61 = pneg %p55
      %p62 = scmp.eq.s32.totalorder %s20, 1
      %p63 = por %p61, %p62
      %p64 = scmp.ne.s32.totalorder %s56, %s59
      %p65 = scmp.eq.s32.totalorder %s20, 0
      %p66 = por %p64, %p65
      %p67 = scmp.ne.s32.totalorder %s56, %s59
      %p68 = scmp.eq.s32.totalorder %s25, 1
      %p69 = por %p67, %p68
      %p70 = scmp.ne.s32.totalorder %s59, %s60
      %p71 = scmp.eq.s32.totalorder %s25, 0
      %p72 = por %p70, %p71
      %p73 = scmp.ne.s32.totalorder %s59, %s60
      %p74 = scmp.eq.s32.totalorder %s26, 1
      %p75 = por %p73, %p74
      %p77 = scmp.ne.s32.totalorder %s60, %s76
      %p78 = scmp.eq.s32.totalorder %s26, 0
      %p79 = por %p77, %p78
      %s80 = ssub.s32 %s20, %s27
      %p81 = scmp.eq.s32.totalorder %s80, 0
      %s83 = sadd.s32 %s82, 1
      %s84 = scalar_select %p81, %s82, %s83
      %p87 = pneg %p81
      %p88 = scmp.eq.s32.totalorder %s20, 1
      %p89 = por %p87, %p88
      %p90 = scmp.ne.s32.totalorder %s82, %s85
      %p91 = scmp.eq.s32.totalorder %s20, 0
      %p92 = por %p90, %p91
      %p93 = scmp.ne.s32.totalorder %s82, %s85
      %p94 = scmp.eq.s32.totalorder %s25, 1
      %p95 = por %p93, %p94
      %p96 = scmp.ne.s32.totalorder %s85, %s86
      %p97 = scmp.eq.s32.totalorder %s25, 0
      %p98 = por %p96, %p97
      %p99 = scmp.ne.s32.totalorder %s85, %s86
      %p100 = scmp.eq.s32.totalorder %s26, 1
      %p101 = por %p99, %p100
      %p103 = scmp.ne.s32.totalorder %s86, %s102
      %p104 = scmp.eq.s32.totalorder %s26, 0
      %p105 = por %p103, %p104
      %s107 = sadd.s32 %s106, 1
      %p110 = scmp.eq.s32.totalorder %s20, 1
      %p111 = scmp.ne.s32.totalorder %s106, %s108
      %p112 = scmp.eq.s32.totalorder %s20, 0
      %p113 = por %p111, %p112
      %p114 = scmp.ne.s32.totalorder %s106, %s108
      %p115 = scmp.eq.s32.totalorder %s25, 1
      %p116 = por %p114, %p115
      %p117 = scmp.ne.s32.totalorder %s108, %s109
      %p118 = scmp.eq.s32.totalorder %s25, 0
      %p119 = por %p117, %p118
      %p120 = scmp.ne.s32.totalorder %s108, %s109
      %p121 = scmp.eq.s32.totalorder %s26, 1
      %p122 = por %p120, %p121
      %p124 = scmp.ne.s32.totalorder %s109, %s123
      %p125 = scmp.eq.s32.totalorder %s26, 0
      %p126 = por %p124, %p125
      %s128 = sadd.s32 %s127, 1
      %p131 = scmp.eq.s32.totalorder %s20, 1
      %p132 = scmp.ne.s32.totalorder %s127, %s129
      %p133 = scmp.eq.s32.totalorder %s20, 0
      %p134 = por %p132, %p133
      %p135 = scmp.ne.s32.totalorder %s127, %s129
      %p136 = scmp.eq.s32.totalorder %s25, 1
      %p137 = por %p135, %p136
      %p138 = scmp.ne.s32.totalorder %s129, %s130
      %p139 = scmp.eq.s32.totalorder %s25, 0
      %p140 = por %p138, %p139
      %p141 = scmp.ne.s32.totalorder %s129, %s130
      %p142 = scmp.eq.s32.totalorder %s26, 1
      %p143 = por %p141, %p142
      %p145 = scmp.ne.s32.totalorder %s130, %s144
      %p146 = scmp.eq.s32.totalorder %s26, 0
      %p147 = por %p145, %p146
      %s149 = sadd.s32 %s148, 1
      %p152 = scmp.eq.s32.totalorder %s20, 1
      %p153 = scmp.ne.s32.totalorder %s148, %s150
      %p154 = scmp.eq.s32.totalorder %s20, 0
      %p155 = por %p153, %p154
      %p156 = scmp.ne.s32.totalorder %s148, %s150
      %p157 = scmp.eq.s32.totalorder %s25, 1
      %p158 = por %p156, %p157
      %p159 = scmp.ne.s32.totalorder %s150, %s151
      %p160 = scmp.eq.s32.totalorder %s25, 0
      %p161 = por %p159, %p160
      %p162 = scmp.ne.s32.totalorder %s150, %s151
      %p163 = scmp.eq.s32.totalorder %s26, 1
      %p164 = por %p162, %p163
      %p166 = scmp.ne.s32.totalorder %s151, %s165
      %p167 = scmp.eq.s32.totalorder %s26, 0
      %p168 = por %p166, %p167
      %s169 = ssub.s32 %s20, %s27
      %p170 = scmp.eq.s32.totalorder %s169, 0
      %s172 = sadd.s32 %s171, 1
      %s173 = scalar_select %p170, %s171, %s172
      %p176 = pneg %p170
      %p177 = scmp.eq.s32.totalorder %s20, 1
      %p178 = por %p176, %p177
      %p179 = scmp.ne.s32.totalorder %s171, %s174
      %p180 = scmp.eq.s32.totalorder %s20, 0
      %p181 = por %p179, %p180
      %p182 = scmp.ne.s32.totalorder %s171, %s174
      %p183 = scmp.eq.s32.totalorder %s25, 1
      %p184 = por %p182, %p183
      %p185 = scmp.ne.s32.totalorder %s174, %s175
      %p186 = scmp.eq.s32.totalorder %s25, 0
      %p187 = por %p185, %p186
      %p188 = scmp.ne.s32.totalorder %s174, %s175
      %p189 = scmp.eq.s32.totalorder %s26, 1
      %p190 = por %p188, %p189
      %p192 = scmp.ne.s32.totalorder %s175, %s191
      %p193 = scmp.eq.s32.totalorder %s26, 0
      %p194 = por %p192, %p193
      %p195 = scmp.le.s32.totalorder 1, %s20
      %p196 = scmp.lt.s32.totalorder %s20, 3
      %p197 = pnand %p195, %p196
      %p198 = pneg %p197
      // Predicated region
      $region9: #{tpu_custom_call.1} parent=5 // pred_check
        _
      $region10: #{tpu_custom_call.1} parent=5 // pred_check_branch
        %200 = sbr.rel (%p197) target = $region12
      $region11: #{tpu_custom_call.1} parent=5 // pred_region
        %s201 = ssub.s32 %s20, 1
        // Predicated region
        $region13: #{tpu_custom_call.1} parent=11 // pred_check
          %p202 = pneg %p119
        $region14: #{tpu_custom_call.1} parent=11 // pred_check_branch
          %204 = sbr.rel (%p202) target = $region16
        $region15: #{tpu_custom_call.1} parent=11 // pred_region
          %s206 = ssub.s32 5120, 5120
          %207 = vsyncadd [#allocation6], %s206
          %s208 = sshll.u32 [#allocation7], 4
          %s209 = int_to_ptr.vmem [resolvable:$true] %s208
          %214 = dma.hbm_to_vmem [thread:$0]  %s3, 5120, %s209, [#allocation6], 1280, 1280, 80
        $region16: #{tpu_custom_call.1} parent=11 // pred_fallthru
          _
        // Predicated region
        $region17: #{tpu_custom_call.1} parent=11 // pred_check
          %p215 = pneg %p140
        $region18: #{tpu_custom_call.1} parent=11 // pred_check_branch
          %217 = sbr.rel (%p215) target = $region20
        $region19: #{tpu_custom_call.1} parent=11 // pred_region
          %s219 = ssub.s32 128, 128
          %220 = vsyncadd [#allocation9], %s219
          %s222 = sshll.u32 [#allocation8], 4
          %s223 = int_to_ptr.vmem [resolvable:$true] %s222
          %225 = dma.hbm_to_vmem [thread:$0]  %s4, 128, %s223, [#allocation9]
        $region20: #{tpu_custom_call.1} parent=11 // pred_fallthru
          _
        // Predicated region
        $region21: #{tpu_custom_call.1} parent=11 // pred_check
          %p226 = pneg %p161
        $region22: #{tpu_custom_call.1} parent=11 // pred_check_branch
          %228 = sbr.rel (%p226) target = $region24
        $region23: #{tpu_custom_call.1} parent=11 // pred_region
          %s230 = ssub.s32 16, 16
          %231 = vsyncadd [#allocation4], %s230
          %s233 = sshll.u32 %s5, 4
          %s234 = int_to_ptr.vmem [resolvable:$true] %s233
          %236 = dma.vmem_to_smem %s234, 16, [#allocation10], [#allocation4]
        $region24: #{tpu_custom_call.1} parent=11 // pred_fallthru
          _
      $region12: #{tpu_custom_call.1} parent=5 // pred_fallthru
        _
      %p237 = scmp.lt.s32.totalorder %s20, 2
      // Predicated region
      $region25: #{tpu_custom_call.1} parent=5 // pred_check
        %p238 = pneg %p237
      $region26: #{tpu_custom_call.1} parent=5 // pred_check_branch
        %240 = sbr.rel (%p238) target = $region28
      $region27: #{tpu_custom_call.1} parent=5 // pred_region
        // Predicated region
        $region29: #{tpu_custom_call.1} parent=27 // pred_check
          %p241 = pneg %p40
        $region30: #{tpu_custom_call.1} parent=27 // pred_check_branch
          %243 = sbr.rel (%p241) target = $region32
        $region31: #{tpu_custom_call.1} parent=27 // pred_region
          %s244 = sand.u32 %s30, 1
          %s245 = scalar_lea.sflag [#allocation3], %s244
          %s246 = sand.u32 %s30, 1
          %s247 = smul.addr %s246, 8
          %s248 = scalar_lea.vmem [#allocation2], %s247
          %s250 = ssub.s32 128, 128
          %251 = vsyncadd %s245, %s250
          %s252 = smul.addr %s20, 128
          %s253 = scalar_lea.hbm %s0, %s252
          %s255 = sshll.u32 %s248, 4
          %s256 = int_to_ptr.vmem [resolvable:$true] %s255
          %258 = dma.hbm_to_vmem [thread:$0]  %s253, 128, %s256, %s245
        $region32: #{tpu_custom_call.1} parent=27 // pred_fallthru
          _
        // Predicated region
        $region33: #{tpu_custom_call.1} parent=27 // pred_check
          %p259 = pneg %p66
        $region34: #{tpu_custom_call.1} parent=27 // pred_check_branch
          %261 = sbr.rel (%p259) target = $region36
        $region35: #{tpu_custom_call.1} parent=27 // pred_region
          %s262 = sand.u32 %s20, 1
          %s263 = scalar_lea.sflag [#allocation6], %s262
          %s264 = sand.u32 %s56, 1
          %s265 = smul.addr %s264, 8
          %s266 = scalar_lea.vmem [#allocation5], %s265
          %s268 = ssub.s32 128, 128
          %269 = vsyncadd %s263, %s268
          %s270 = smul.addr %s20, 128
          %s271 = scalar_lea.hbm %s1, %s270
          %s273 = sshll.u32 %s266, 4
          %s274 = int_to_ptr.vmem [resolvable:$true] %s273
          %276 = dma.hbm_to_vmem [thread:$0]  %s271, 128, %s274, %s263
        $region36: #{tpu_custom_call.1} parent=27 // pred_fallthru
          _
        // Predicated region
        $region37: #{tpu_custom_call.1} parent=27 // pred_check
          %p277 = pneg %p92
        $region38: #{tpu_custom_call.1} parent=27 // pred_check_branch
          %279 = sbr.rel (%p277) target = $region40
        $region39: #{tpu_custom_call.1} parent=27 // pred_region
          %p280 = scmp.lt.s32.totalorder %s20, 1
          %s281 = scalar_select %p280, %s20, 1
          %s282 = scalar_lea.vmem %s2, %s281
        $region40: #{tpu_custom_call.1} parent=27 // pred_fallthru
          _
      $region28: #{tpu_custom_call.1} parent=5 // pred_fallthru
        _
      %p283 = scmp.le.s32.totalorder 1, %s20
      %p284 = scmp.lt.s32.totalorder %s20, 3
      %p285 = pnand %p283, %p284
      %p286 = pneg %p285
      // Predicated region
      $region41: #{tpu_custom_call.1} parent=5 // pred_check
        _
      $region42: #{tpu_custom_call.1} parent=5 // pred_check_branch
        %288 = sbr.rel (%p285) target = $region44
      $region43: #{tpu_custom_call.1} parent=5 // pred_region
        %s289 = ssub.s32 %s20, 1
        %s290 = sand.u32 %s33, 1
        %s291 = scalar_lea.sflag [#allocation3], %s290
        %s292 = sand.u32 %s33, 1
        %s293 = smul.addr %s292, 8
        %s294 = scalar_lea.vmem [#allocation2], %s293
        // Predicated region
        $region45: #{tpu_custom_call.1} parent=43 // pred_check
          %p295 = pneg %p46
        $region46: #{tpu_custom_call.1} parent=43 // pred_check_branch
          %297 = sbr.rel (%p295) target = $region48
        $region47: #{tpu_custom_call.1} parent=43 // pred_region
          %298 = dma.done %s291, 128
        $region48: #{tpu_custom_call.1} parent=43 // pred_fallthru
          _
        %s299 = sand.u32 %s25, 1
        %s300 = scalar_lea.sflag [#allocation6], %s299
        %s301 = sand.u32 %s59, 1
        %s302 = smul.addr %s301, 8
        %s303 = scalar_lea.vmem [#allocation5], %s302
        // Predicated region
        $region49: #{tpu_custom_call.1} parent=43 // pred_check
          %p304 = pneg %p72
        $region50: #{tpu_custom_call.1} parent=43 // pred_check_branch
          %306 = sbr.rel (%p304) target = $region52
        $region51: #{tpu_custom_call.1} parent=43 // pred_region
          %307 = dma.done %s300, 128
        $region52: #{tpu_custom_call.1} parent=43 // pred_fallthru
          _
        // Predicated region
        $region53: #{tpu_custom_call.1} parent=43 // pred_check
          %p308 = pneg %p119
        $region54: #{tpu_custom_call.1} parent=43 // pred_check_branch
          %310 = sbr.rel (%p308) target = $region56
        $region55: #{tpu_custom_call.1} parent=43 // pred_region
          %311 = dma.done [#allocation6], 5120
        $region56: #{tpu_custom_call.1} parent=43 // pred_fallthru
          _
        // Predicated region
        $region57: #{tpu_custom_call.1} parent=43 // pred_check
          %p312 = pneg %p140
        $region58: #{tpu_custom_call.1} parent=43 // pred_check_branch
          %314 = sbr.rel (%p312) target = $region60
        $region59: #{tpu_custom_call.1} parent=43 // pred_region
          %315 = dma.done [#allocation9], 128
        $region60: #{tpu_custom_call.1} parent=43 // pred_fallthru
          _
        // Predicated region
        $region61: #{tpu_custom_call.1} parent=43 // pred_check
          %p316 = pneg %p161
        $region62: #{tpu_custom_call.1} parent=43 // pred_check_branch
          %318 = sbr.rel (%p316) target = $region64
        $region63: #{tpu_custom_call.1} parent=43 // pred_region
          %319 = dma.done [#allocation4], 16
        $region64: #{tpu_custom_call.1} parent=43 // pred_fallthru
          _
        %320 = sfence
        %s321 = sand.u32 %s33, 1
        %s322 = scalar_lea.sflag [#allocation3], %s321
        %s323 = sand.u32 %s33, 1
        %s324 = smul.addr %s323, 8
        %s325 = scalar_lea.vmem [#allocation2], %s324
        %p326 = pneg %p46
        %p327 = pneg %p43
        %s328 = sand.u32 %s25, 1
        %s329 = scalar_lea.sflag [#allocation6], %s328
        %s330 = sand.u32 %s59, 1
        %s331 = smul.addr %s330, 8
        %s332 = scalar_lea.vmem [#allocation5], %s331
        %p333 = pneg %p72
        %p334 = pneg %p69
        %p335 = scmp.lt.s32.totalorder %s25, 1
        %s336 = scalar_select %p335, %s25, 1
        %s337 = scalar_lea.vmem %s2, %s336
        %p338 = pneg %p98
        %p339 = pneg %p95
        %p340 = pneg %p119
        %p341 = pneg %p116
        %p342 = pneg %p140
        %p343 = pneg %p137
        %p344 = pneg %p161
        %p345 = pneg %p158
        %p346 = pneg %p187
        %p347 = pneg %p184
        %p348 = scmp.lt.s32.totalorder %s25, 1
        %s349 = scalar_select %p348, %s25, 1
        %s350 = scalar_lea.vmem %s6, %s349
        %p351 = scmp.lt.s32.totalorder %s25, 1
        %s352 = scalar_select %p351, %s25, 1
        %s353 = scalar_lea.vmem %s2, %s352
        %p354 = scmp.lt.s32.totalorder %s25, 1
        %s355 = scalar_select %p354, %s25, 1
        %s356 = scalar_lea.vmem %s6, %s355
        %v357 = vld [vmem:[%s294] sm:$0xff]
        %v358 = vld [vmem:[%s303] sm:$0xff]
        %vm359 = vcmp.gt.f32.partialorder %v358, 0.0
        %v360 = vld [vmem:[#allocation7 + $0x18] sm:$0xff]
        %v361 = vld [vmem:[#allocation7 + $0x8] sm:$0xff]
        %v362 = vld [vmem:[#allocation7 + $0x58] sm:$0xff]
        %v363 = vld [vmem:[#allocation7 + $0x10] sm:$0xff]
        %v364 = vld [vmem:[#allocation7 + $0x60] sm:$0xff]
        %v365 = vld [vmem:[#allocation8] sm:$0x1]
        %v366 = vld [vmem:[#allocation8 + $0x1] sm:$0x1]
        %s367 = sld [smem:[#allocation10]]
        %s368 = sld [smem:[#allocation10 + $0x1]]
        %s369 = sld [smem:[#allocation10 + $0x2]]
        %s370 = sld [smem:[#allocation10 + $0x3]]
        %s371 = sld [smem:[#allocation10 + $0x4]]
        %s372 = sld [smem:[#allocation10 + $0x5]]
        %s373 = sld [smem:[#allocation10 + $0x6]]
        %s374 = sld [smem:[#allocation10 + $0x7]]
        %s375 = sld [smem:[#allocation10 + $0x8]]
        %s376 = sld [smem:[#allocation10 + $0x9]]
        %s377 = sld [smem:[#allocation10 + $0xa]]
        %s378 = sld [smem:[#allocation10 + $0xb]]
        %s379 = sld [smem:[#allocation10 + $0xc]]
        %s380 = sld [smem:[#allocation10 + $0xd]]
        %s381 = sld [smem:[#allocation10 + $0xe]]
        %s382 = sld [smem:[#allocation10 + $0xf]]
        %s383 = sld [smem:[#allocation10 + $0x10]]
        %s384 = sld [smem:[#allocation10 + $0x11]]
        %s385 = sld [smem:[#allocation10 + $0x12]]
        %s386 = sld [smem:[#allocation10 + $0x13]]
        %s387 = sld [smem:[#allocation10 + $0x14]]
        %s388 = sld [smem:[#allocation10 + $0x15]]
        %s389 = sld [smem:[#allocation10 + $0x16]]
        %s390 = sld [smem:[#allocation10 + $0x17]]
        %s391 = sld [smem:[#allocation10 + $0x18]]
        %s392 = sld [smem:[#allocation10 + $0x19]]
        %s393 = sld [smem:[#allocation10 + $0x1a]]
        %s394 = sld [smem:[#allocation10 + $0x1b]]
        %s395 = sld [smem:[#allocation10 + $0x1c]]
        %s396 = sld [smem:[#allocation10 + $0x1d]]
        %s397 = sld [smem:[#allocation10 + $0x1e]]
        %s398 = sld [smem:[#allocation10 + $0x1f]]
        %s399 = sld [smem:[#allocation10 + $0x20]]
        %s400 = sld [smem:[#allocation10 + $0x21]]
        %s401 = sld [smem:[#allocation10 + $0x22]]
        %s402 = sld [smem:[#allocation10 + $0x23]]
        %s403 = sld [smem:[#allocation10 + $0x24]]
        %s404 = sld [smem:[#allocation10 + $0x25]]
        %s405 = sld [smem:[#allocation10 + $0x26]]
        %s406 = sld [smem:[#allocation10 + $0x27]]
        %s407 = sld [smem:[#allocation10 + $0x28]]
        %s408 = sld [smem:[#allocation10 + $0x29]]
        %s409 = sld [smem:[#allocation10 + $0x2a]]
        %s410 = sld [smem:[#allocation10 + $0x2b]]
        %s411 = sld [smem:[#allocation10 + $0x2c]]
        %s412 = sld [smem:[#allocation10 + $0x2d]]
        %s413 = sld [smem:[#allocation10 + $0x2e]]
        %s414 = sld [smem:[#allocation10 + $0x2f]]
        %s415 = sld [smem:[#allocation10 + $0x30]]
        %v416 = vld [vmem:[#allocation7] sm:$0xff]
        %v417 = vld [vmem:[#allocation7 + $0x50] sm:$0xff]
        %vm418 = vcmask 130048
        %v420 = vsel %vm418, %v357, 0
        %422 = vmatprep.subr.mxu0 0.0
        %423 = vmatpush1.msra.mxu0 0.0
        %424 = vmatprep.subr.mxu0 0.0
        %425 = vmatpush1.msra.mxu0 0.0
        %426 = vmatprep.subr.mxu0 0.0
        %427 = vmatpush1.msra.mxu0 0.0
        %428 = vmatprep.subr.mxu0 0.0
        %429 = vmatpush1.msra.mxu0 0.0
        %430 = vmatprep.subr.mxu0 0.0
        %431 = vmatpush1.msra.mxu0 0.0
        %432 = vmatprep.subr.mxu0 0.0
        %433 = vmatpush1.msra.mxu0 0.0
        %434 = vmatprep.subr.mxu0 0.0
        %435 = vmatpush1.msra.mxu0 0.0
        %436 = vmatprep.subr.mxu0 0.0
        %437 = vmatpush1.msra.mxu0 0.0
        %438 = vmatprep.subr.mxu0 0.0
        %439 = vmatpush1.msra.mxu0 0.0
        %440 = vmatprep.subr.mxu0 0.0
        %441 = vmatpush1.msra.mxu0 0.0
        %442 = vmatprep.subr.mxu0 0.0
        %443 = vmatpush1.msra.mxu0 0.0
        %444 = vmatprep.subr.mxu0 0.0
        %445 = vmatpush1.msra.mxu0 0.0
        %446 = vmatprep.subr.mxu0 0.0
        %447 = vmatpush1.msra.mxu0 0.0
        %448 = vmatprep.subr.mxu0 0.0
        %449 = vmatpush1.msra.mxu0 0.0
        %450 = vmatprep.subr.mxu0 0.0
        %451 = vmatpush1.msra.mxu0 %v417
        %452 = vmatprep.subr.mxu0 0.0
        %453 = vmatpush1.msra.mxu0 %v416
        %454 = vmatprep.subr.mxu0 0.0
        %455 = vmatpush2.msra.mxu0 0.0
        %456 = vmatprep.subr.mxu0 0.0
        %457 = vmatpush2.msra.mxu0 0.0
        %458 = vmatprep.subr.mxu0 0.0
        %459 = vmatpush2.msra.mxu0 0.0
        %460 = vmatprep.subr.mxu0 0.0
        %461 = vmatpush2.msra.mxu0 0.0
        %462 = vmatprep.subr.mxu0 0.0
        %463 = vmatpush2.msra.mxu0 0.0
        %464 = vmatprep.subr.mxu0 0.0
        %465 = vmatpush2.msra.mxu0 0.0
        %466 = vmatprep.subr.mxu0 0.0
        %467 = vmatpush2.msra.mxu0 0.0
        %468 = vmatprep.subr.mxu0 0.0
        %469 = vmatpush2.msra.mxu0 0.0
        %470 = vmatprep.subr.mxu0 0.0
        %471 = vmatpush2.msra.mxu0 0.0
        %472 = vmatprep.subr.mxu0 0.0
        %473 = vmatpush2.msra.mxu0 0.0
        %474 = vmatprep.subr.mxu0 0.0
        %475 = vmatpush2.msra.mxu0 0.0
        %476 = vmatprep.subr.mxu0 0.0
        %477 = vmatpush2.msra.mxu0 0.0
        %478 = vmatprep.subr.mxu0 0.0
        %479 = vmatpush2.msra.mxu0 0.0
        %480 = vmatprep.subr.mxu0 0.0
        %481 = vmatpush2.msra.mxu0 0.0
        %482 = vmatprep.subr.mxu0 0.0
        %483 = vmatpush2.msra.mxu0 0.0
        %484 = vmatprep.subr.mxu0 0.0
        %485 = vmatpush2.msra.mxu0 0.0
        %486 = vmatprep.mubr.f32.mxu0 0.0
        %487 = vmatmul.mubr.f32.gmra.mxu0 %v420
        %v488 = vpop.f32.mrf.mxu0
        %v489 = vadd.f32 0.0, %v488
        %v490 = vpop.f32.mrf.mxu0
        %491 = vdwg.mxu0
        %v493 = vsel %vm418, %v360, 0
        %v496 = vsel %vm418, %v489, 0
        %498 = vmatprep.subr.mxu0 0.0
        %499 = vmatpush1.xpose.msra.mxu0 0.0
        %500 = vmatprep.subr.mxu0 0.0
        %501 = vmatpush1.xpose.msra.mxu0 0.0
        %502 = vmatprep.subr.mxu0 0.0
        %503 = vmatpush1.xpose.msra.mxu0 0.0
        %504 = vmatprep.subr.mxu0 0.0
        %505 = vmatpush1.xpose.msra.mxu0 0.0
        %506 = vmatprep.subr.mxu0 0.0
        %507 = vmatpush1.xpose.msra.mxu0 0.0
        %508 = vmatprep.subr.mxu0 0.0
        %509 = vmatpush1.xpose.msra.mxu0 0.0
        %510 = vmatprep.subr.mxu0 0.0
        %511 = vmatpush1.xpose.msra.mxu0 0.0
        %512 = vmatprep.subr.mxu0 0.0
        %513 = vmatpush1.xpose.msra.mxu0 0.0
        %514 = vmatprep.subr.mxu0 0.0
        %515 = vmatpush1.xpose.msra.mxu0 0.0
        %516 = vmatprep.subr.mxu0 0.0
        %517 = vmatpush1.xpose.msra.mxu0 0.0
        %518 = vmatprep.subr.mxu0 0.0
        %519 = vmatpush1.xpose.msra.mxu0 0.0
        %520 = vmatprep.subr.mxu0 0.0
        %521 = vmatpush1.xpose.msra.mxu0 0.0
        %522 = vmatprep.subr.mxu0 0.0
        %523 = vmatpush1.xpose.msra.mxu0 0.0
        %524 = vmatprep.subr.mxu0 0.0
        %525 = vmatpush1.xpose.msra.mxu0 0.0
        %526 = vmatprep.subr.mxu0 0.0
        %527 = vmatpush1.xpose.msra.mxu0 0.0
        %528 = vmatprep.subr.mxu0 0.0
        %529 = vmatpush1.xpose.msra.mxu0 %v496
        %530 = vmatprep.subr.mxu0 0.0
        %531 = vmatpush2.xpose.msra.mxu0 0.0
        %532 = vmatprep.subr.mxu0 0.0
        %533 = vmatpush2.xpose.msra.mxu0 0.0
        %534 = vmatprep.subr.mxu0 0.0
        %535 = vmatpush2.xpose.msra.mxu0 0.0
        %536 = vmatprep.subr.mxu0 0.0
        %537 = vmatpush2.xpose.msra.mxu0 0.0
        %538 = vmatprep.subr.mxu0 0.0
        %539 = vmatpush2.xpose.msra.mxu0 0.0
        %540 = vmatprep.subr.mxu0 0.0
        %541 = vmatpush2.xpose.msra.mxu0 0.0
        %542 = vmatprep.subr.mxu0 0.0
        %543 = vmatpush2.xpose.msra.mxu0 0.0
        %544 = vmatprep.subr.mxu0 0.0
        %545 = vmatpush2.xpose.msra.mxu0 0.0
        %546 = vmatprep.subr.mxu0 0.0
        %547 = vmatpush2.xpose.msra.mxu0 0.0
        %548 = vmatprep.subr.mxu0 0.0
        %549 = vmatpush2.xpose.msra.mxu0 0.0
        %550 = vmatprep.subr.mxu0 0.0
        %551 = vmatpush2.xpose.msra.mxu0 0.0
        %552 = vmatprep.subr.mxu0 0.0
        %553 = vmatpush2.xpose.msra.mxu0 0.0
        %554 = vmatprep.subr.mxu0 0.0
        %555 = vmatpush2.xpose.msra.mxu0 0.0
        %556 = vmatprep.subr.mxu0 0.0
        %557 = vmatpush2.xpose.msra.mxu0 0.0
        %558 = vmatprep.subr.mxu0 0.0
        %559 = vmatpush2.xpose.msra.mxu0 0.0
        %560 = vmatprep.subr.mxu0 0.0
        %561 = vmatpush2.xpose.msra.mxu0 0.0
        %562 = vmatprep.mubr.f32.mxu0 0.0
        %563 = vmatmul.mubr.f32.gmra.mxu0 %v493
        %v564 = vpop.f32.mrf.mxu0
        %v565 = vadd.f32 0.0, %v564
        %v566 = vpop.f32.mrf.mxu0
        %567 = vdwg.mxu0
        %v568 = vlaneseq
        %v569 = vshrl.u32 %v568, 7
        %v570 = vsub.s32 0, %v569
        %v571 = vrot.slane %v565, %v570
        %v572 = vmul.f32 %v358, %v571
        %v573 = vstv %s367
        %v574 = vadd.f32 %v572, %v573
        %v575 = vand.u32 2147483647, %v574
        %v576 = vadd.f32 %v575, 1.0
        %v577 = vrcp.pop %v576
        %v578 = vmul.f32 %v574, %v577
        %v579 = vlaneseq
        %v580 = vshrl.u32 %v579, 7
        %v581 = vsub.s32 1, %v580
        %v582 = vrot.slane %v565, %v581
        %v583 = vmul.f32 %v358, %v582
        %v584 = vstv %s368
        %v585 = vadd.f32 %v583, %v584
        %v586 = vand.u32 2147483647, %v585
        %v587 = vadd.f32 %v586, 1.0
        %v588 = vrcp.pop %v587
        %v589 = vmul.f32 %v585, %v588
        %v590 = vlaneseq
        %v591 = vshrl.u32 %v590, 7
        %v592 = vsub.s32 2, %v591
        %v593 = vrot.slane %v565, %v592
        %v594 = vmul.f32 %v358, %v593
        %v595 = vstv %s369
        %v596 = vadd.f32 %v594, %v595
        %v597 = vand.u32 2147483647, %v596
        %v598 = vadd.f32 %v597, 1.0
        %v599 = vrcp.pop %v598
        %v600 = vmul.f32 %v596, %v599
        %v601 = vlaneseq
        %v602 = vshrl.u32 %v601, 7
        %v603 = vsub.s32 3, %v602
        %v604 = vrot.slane %v565, %v603
        %v605 = vmul.f32 %v358, %v604
        %v606 = vstv %s370
        %v607 = vadd.f32 %v605, %v606
        %v608 = vand.u32 2147483647, %v607
        %v609 = vadd.f32 %v608, 1.0
        %v610 = vrcp.pop %v609
        %v611 = vmul.f32 %v607, %v610
        %v612 = vlaneseq
        %v613 = vshrl.u32 %v612, 7
        %v614 = vsub.s32 4, %v613
        %v615 = vrot.slane %v565, %v614
        %v616 = vmul.f32 %v358, %v615
        %v617 = vstv %s371
        %v618 = vadd.f32 %v616, %v617
        %v619 = vand.u32 2147483647, %v618
        %v620 = vadd.f32 %v619, 1.0
        %v621 = vrcp.pop %v620
        %v622 = vmul.f32 %v618, %v621
        %v623 = vlaneseq
        %v624 = vshrl.u32 %v623, 7
        %v625 = vsub.s32 5, %v624
        %v626 = vrot.slane %v565, %v625
        %v627 = vmul.f32 %v358, %v626
        %v628 = vstv %s372
        %v629 = vadd.f32 %v627, %v628
        %v630 = vand.u32 2147483647, %v629
        %v631 = vadd.f32 %v630, 1.0
        %v632 = vrcp.pop %v631
        %v633 = vmul.f32 %v629, %v632
        %v634 = vlaneseq
        %v635 = vshrl.u32 %v634, 7
        %v636 = vsub.s32 6, %v635
        %v637 = vrot.slane %v565, %v636
        %v638 = vmul.f32 %v358, %v637
        %v639 = vstv %s373
        %v640 = vadd.f32 %v638, %v639
        %v641 = vand.u32 2147483647, %v640
        %v642 = vadd.f32 %v641, 1.0
        %v643 = vrcp.pop %v642
        %v644 = vmul.f32 %v640, %v643
        %v645 = vlaneseq
        %v646 = vshrl.u32 %v645, 7
        %v647 = vsub.s32 7, %v646
        %v648 = vrot.slane %v565, %v647
        %v649 = vmul.f32 %v358, %v648
        %v650 = vstv %s374
        %v651 = vadd.f32 %v649, %v650
        %v652 = vand.u32 2147483647, %v651
        %v653 = vadd.f32 %v652, 1.0
        %v654 = vrcp.pop %v653
        %v655 = vmul.f32 %v651, %v654
        %v656 = vstv %s375
        %v657 = vmul.f32 %v656, %v578
        %v658 = vstv %s407
        %v659 = vadd.f32 %v658, %v657
        %v660 = vstv %s379
        %v661 = vmul.f32 %v660, %v589
        %v662 = vadd.f32 %v659, %v661
        %v663 = vstv %s383
        %v664 = vmul.f32 %v663, %v600
        %v665 = vadd.f32 %v662, %v664
        %v666 = vstv %s387
        %v667 = vmul.f32 %v666, %v611
        %v668 = vadd.f32 %v665, %v667
        %v669 = vstv %s391
        %v670 = vmul.f32 %v669, %v622
        %v671 = vadd.f32 %v668, %v670
        %v672 = vstv %s395
        %v673 = vmul.f32 %v672, %v633
        %v674 = vadd.f32 %v671, %v673
        %v675 = vstv %s399
        %v676 = vmul.f32 %v675, %v644
        %v677 = vadd.f32 %v674, %v676
        %v678 = vstv %s403
        %v679 = vmul.f32 %v678, %v655
        %v680 = vadd.f32 %v677, %v679
        %v681 = vand.u32 2147483647, %v680
        %v682 = vadd.f32 %v681, 1.0
        %v683 = vrcp.pop %v682
        %v684 = vmul.f32 %v680, %v683
        %v685 = vstv %s376
        %v686 = vmul.f32 %v685, %v578
        %v687 = vstv %s408
        %v688 = vadd.f32 %v687, %v686
        %v689 = vstv %s380
        %v690 = vmul.f32 %v689, %v589
        %v691 = vadd.f32 %v688, %v690
        %v692 = vstv %s384
        %v693 = vmul.f32 %v692, %v600
        %v694 = vadd.f32 %v691, %v693
        %v695 = vstv %s388
        %v696 = vmul.f32 %v695, %v611
        %v697 = vadd.f32 %v694, %v696
        %v698 = vstv %s392
        %v699 = vmul.f32 %v698, %v622
        %v700 = vadd.f32 %v697, %v699
        %v701 = vstv %s396
        %v702 = vmul.f32 %v701, %v633
        %v703 = vadd.f32 %v700, %v702
        %v704 = vstv %s400
        %v705 = vmul.f32 %v704, %v644
        %v706 = vadd.f32 %v703, %v705
        %v707 = vstv %s404
        %v708 = vmul.f32 %v707, %v655
        %v709 = vadd.f32 %v706, %v708
        %v710 = vand.u32 2147483647, %v709
        %v711 = vadd.f32 %v710, 1.0
        %v712 = vrcp.pop %v711
        %v713 = vmul.f32 %v709, %v712
        %v714 = vstv %s377
        %v715 = vmul.f32 %v714, %v578
        %v716 = vstv %s409
        %v717 = vadd.f32 %v716, %v715
        %v718 = vstv %s381
        %v719 = vmul.f32 %v718, %v589
        %v720 = vadd.f32 %v717, %v719
        %v721 = vstv %s385
        %v722 = vmul.f32 %v721, %v600
        %v723 = vadd.f32 %v720, %v722
        %v724 = vstv %s389
        %v725 = vmul.f32 %v724, %v611
        %v726 = vadd.f32 %v723, %v725
        %v727 = vstv %s393
        %v728 = vmul.f32 %v727, %v622
        %v729 = vadd.f32 %v726, %v728
        %v730 = vstv %s397
        %v731 = vmul.f32 %v730, %v633
        %v732 = vadd.f32 %v729, %v731
        %v733 = vstv %s401
        %v734 = vmul.f32 %v733, %v644
        %v735 = vadd.f32 %v732, %v734
        %v736 = vstv %s405
        %v737 = vmul.f32 %v736, %v655
        %v738 = vadd.f32 %v735, %v737
        %v739 = vand.u32 2147483647, %v738
        %v740 = vadd.f32 %v739, 1.0
        %v741 = vrcp.pop %v740
        %v742 = vmul.f32 %v738, %v741
        %v743 = vstv %s378
        %v744 = vmul.f32 %v743, %v578
        %v745 = vstv %s410
        %v746 = vadd.f32 %v745, %v744
        %v747 = vstv %s382
        %v748 = vmul.f32 %v747, %v589
        %v749 = vadd.f32 %v746, %v748
        %v750 = vstv %s386
        %v751 = vmul.f32 %v750, %v600
        %v752 = vadd.f32 %v749, %v751
        %v753 = vstv %s390
        %v754 = vmul.f32 %v753, %v611
        %v755 = vadd.f32 %v752, %v754
        %v756 = vstv %s394
        %v757 = vmul.f32 %v756, %v622
        %v758 = vadd.f32 %v755, %v757
        %v759 = vstv %s398
        %v760 = vmul.f32 %v759, %v633
        %v761 = vadd.f32 %v758, %v760
        %v762 = vstv %s402
        %v763 = vmul.f32 %v762, %v644
        %v764 = vadd.f32 %v761, %v763
        %v765 = vstv %s406
        %v766 = vmul.f32 %v765, %v655
        %v767 = vadd.f32 %v764, %v766
        %v768 = vand.u32 2147483647, %v767
        %v769 = vadd.f32 %v768, 1.0
        %v770 = vrcp.pop %v769
        %v771 = vmul.f32 %v767, %v770
        %v772 = vstv %s411
        %v773 = vmul.f32 %v772, %v684
        %v774 = vstv %s415
        %v775 = vadd.f32 %v774, %v773
        %v776 = vstv %s412
        %v777 = vmul.f32 %v776, %v713
        %v778 = vadd.f32 %v775, %v777
        %v779 = vstv %s413
        %v780 = vmul.f32 %v779, %v742
        %v781 = vadd.f32 %v778, %v780
        %v782 = vstv %s414
        %v783 = vmul.f32 %v782, %v771
        %v784 = vadd.f32 %v781, %v783
        %v785 = vsel %vm359, %v784, -1e+30
        %vm786 = vcmask 64512
        %v787 = vsel %vm786, %v785, -inf
        %788 = vmax.xlane.f32.xlu0 %v787
        %v789 = vpop.xlane.xlu0 %788
        %v790 = vmax.f32 %v789, 0.0
        %v791 = vsub.f32 %v784, %v790
        %v792 = vmul.f32 %v791, 1.442695
        %v793 = vpow.pop %v792
        %v794 = vsel %vm359, %v793, 0.0
        %v795 = vsel %vm786, %v794, 0.0
        %796 = vadd.xlane.f32.xlu0 %v795
        %v797 = vpop.xlane.xlu0 %796
        %v798 = vmul.f32 %v794, %v358
        %v800 = vsel %vm786, %v798, 0
        %802 = vmatprep.subr.mxu0 0.0
        %803 = vmatpush1.msra.mxu0 0.0
        %804 = vmatprep.subr.mxu0 0.0
        %805 = vmatpush1.msra.mxu0 0.0
        %806 = vmatprep.subr.mxu0 0.0
        %807 = vmatpush1.msra.mxu0 0.0
        %808 = vmatprep.subr.mxu0 0.0
        %809 = vmatpush1.msra.mxu0 0.0
        %810 = vmatprep.subr.mxu0 0.0
        %811 = vmatpush1.msra.mxu0 0.0
        %812 = vmatprep.subr.mxu0 0.0
        %813 = vmatpush1.msra.mxu0 0.0
        %814 = vmatprep.subr.mxu0 0.0
        %815 = vmatpush1.msra.mxu0 0.0
        %816 = vmatprep.subr.mxu0 0.0
        %817 = vmatpush1.msra.mxu0 0.0
        %818 = vmatprep.subr.mxu0 0.0
        %819 = vmatpush1.msra.mxu0 0.0
        %820 = vmatprep.subr.mxu0 0.0
        %821 = vmatpush1.msra.mxu0 0.0
        %822 = vmatprep.subr.mxu0 0.0
        %823 = vmatpush1.msra.mxu0 0.0
        %824 = vmatprep.subr.mxu0 0.0
        %825 = vmatpush1.msra.mxu0 0.0
        %826 = vmatprep.subr.mxu0 0.0
        %827 = vmatpush1.msra.mxu0 0.0
        %828 = vmatprep.subr.mxu0 0.0
        %829 = vmatpush1.msra.mxu0 0.0
        %830 = vmatprep.subr.mxu0 0.0
        %831 = vmatpush1.msra.mxu0 0.0
        %832 = vmatprep.subr.mxu0 0.0
        %833 = vmatpush1.msra.mxu0 %v489
        %834 = vmatprep.subr.mxu0 0.0
        %835 = vmatpush2.msra.mxu0 0.0
        %836 = vmatprep.subr.mxu0 0.0
        %837 = vmatpush2.msra.mxu0 0.0
        %838 = vmatprep.subr.mxu0 0.0
        %839 = vmatpush2.msra.mxu0 0.0
        %840 = vmatprep.subr.mxu0 0.0
        %841 = vmatpush2.msra.mxu0 0.0
        %842 = vmatprep.subr.mxu0 0.0
        %843 = vmatpush2.msra.mxu0 0.0
        %844 = vmatprep.subr.mxu0 0.0
        %845 = vmatpush2.msra.mxu0 0.0
        %846 = vmatprep.subr.mxu0 0.0
        %847 = vmatpush2.msra.mxu0 0.0
        %848 = vmatprep.subr.mxu0 0.0
        %849 = vmatpush2.msra.mxu0 0.0
        %850 = vmatprep.subr.mxu0 0.0
        %851 = vmatpush2.msra.mxu0 0.0
        %852 = vmatprep.subr.mxu0 0.0
        %853 = vmatpush2.msra.mxu0 0.0
        %854 = vmatprep.subr.mxu0 0.0
        %855 = vmatpush2.msra.mxu0 0.0
        %856 = vmatprep.subr.mxu0 0.0
        %857 = vmatpush2.msra.mxu0 0.0
        %858 = vmatprep.subr.mxu0 0.0
        %859 = vmatpush2.msra.mxu0 0.0
        %860 = vmatprep.subr.mxu0 0.0
        %861 = vmatpush2.msra.mxu0 0.0
        %862 = vmatprep.subr.mxu0 0.0
        %863 = vmatpush2.msra.mxu0 0.0
        %864 = vmatprep.subr.mxu0 0.0
        %865 = vmatpush2.msra.mxu0 0.0
        %866 = vmatprep.mubr.f32.mxu0 0.0
        %867 = vmatmul.mubr.f32.gmra.mxu0 %v800
        %v868 = vpop.f32.mrf.mxu0
        %v869 = vadd.f32 0.0, %v868
        %v870 = vpop.f32.mrf.mxu0
        %871 = vdwg.mxu0
        %v872 = vmax.f32 %v797, 1e-30
        %v873 = vrcp.pop %v872
        %v874 = vmul.f32 %v869, %v873
        %v876 = vlaneseq
        %v877 = vshrl.u32 %v876, 7
        %v878 = vsub.s32 0, %v877
        %v879 = vrot.slane %v365, %v878
        %v882 = vsel %vm418, %v874, 0
        %884 = vmatprep.subr.mxu0 0.0
        %885 = vmatpush1.msra.mxu0 0.0
        %886 = vmatprep.subr.mxu0 0.0
        %887 = vmatpush1.msra.mxu0 0.0
        %888 = vmatprep.subr.mxu0 0.0
        %889 = vmatpush1.msra.mxu0 0.0
        %890 = vmatprep.subr.mxu0 0.0
        %891 = vmatpush1.msra.mxu0 0.0
        %892 = vmatprep.subr.mxu0 0.0
        %893 = vmatpush1.msra.mxu0 0.0
        %894 = vmatprep.subr.mxu0 0.0
        %895 = vmatpush1.msra.mxu0 0.0
        %896 = vmatprep.subr.mxu0 0.0
        %897 = vmatpush1.msra.mxu0 0.0
        %898 = vmatprep.subr.mxu0 0.0
        %899 = vmatpush1.msra.mxu0 0.0
        %900 = vmatprep.subr.mxu0 0.0
        %901 = vmatpush1.msra.mxu0 0.0
        %902 = vmatprep.subr.mxu0 0.0
        %903 = vmatpush1.msra.mxu0 0.0
        %904 = vmatprep.subr.mxu0 0.0
        %905 = vmatpush1.msra.mxu0 0.0
        %906 = vmatprep.subr.mxu0 0.0
        %907 = vmatpush1.msra.mxu0 0.0
        %908 = vmatprep.subr.mxu0 0.0
        %909 = vmatpush1.msra.mxu0 0.0
        %910 = vmatprep.subr.mxu0 0.0
        %911 = vmatpush1.msra.mxu0 0.0
        %912 = vmatprep.subr.mxu0 0.0
        %913 = vmatpush1.msra.mxu0 %v362
        %914 = vmatprep.subr.mxu0 0.0
        %915 = vmatpush1.msra.mxu0 %v361
        %916 = vmatprep.subr.mxu0 0.0
        %917 = vmatpush2.msra.mxu0 0.0
        %918 = vmatprep.subr.mxu0 0.0
        %919 = vmatpush2.msra.mxu0 0.0
        %920 = vmatprep.subr.mxu0 0.0
        %921 = vmatpush2.msra.mxu0 0.0
        %922 = vmatprep.subr.mxu0 0.0
        %923 = vmatpush2.msra.mxu0 0.0
        %924 = vmatprep.subr.mxu0 0.0
        %925 = vmatpush2.msra.mxu0 0.0
        %926 = vmatprep.subr.mxu0 0.0
        %927 = vmatpush2.msra.mxu0 0.0
        %928 = vmatprep.subr.mxu0 0.0
        %929 = vmatpush2.msra.mxu0 0.0
        %930 = vmatprep.subr.mxu0 0.0
        %931 = vmatpush2.msra.mxu0 0.0
        %932 = vmatprep.subr.mxu0 0.0
        %933 = vmatpush2.msra.mxu0 0.0
        %934 = vmatprep.subr.mxu0 0.0
        %935 = vmatpush2.msra.mxu0 0.0
        %936 = vmatprep.subr.mxu0 0.0
        %937 = vmatpush2.msra.mxu0 0.0
        %938 = vmatprep.subr.mxu0 0.0
        %939 = vmatpush2.msra.mxu0 0.0
        %940 = vmatprep.subr.mxu0 0.0
        %941 = vmatpush2.msra.mxu0 0.0
        %942 = vmatprep.subr.mxu0 0.0
        %943 = vmatpush2.msra.mxu0 0.0
        %944 = vmatprep.subr.mxu0 0.0
        %945 = vmatpush2.msra.mxu0 0.0
        %946 = vmatprep.subr.mxu0 0.0
        %947 = vmatpush2.msra.mxu0 0.0
        %948 = vmatprep.mubr.f32.mxu0 0.0
        %949 = vmatmul.mubr.f32.gmra.mxu0 %v882
        %v950 = vpop.f32.mrf.mxu0
        %v951 = vadd.f32 %v879, %v950
        %v952 = vpop.f32.mrf.mxu0
        %953 = vdwg.mxu0
        %v955 = vlaneseq
        %v956 = vshrl.u32 %v955, 7
        %v957 = vsub.s32 0, %v956
        %v958 = vrot.slane %v366, %v957
        %960 = vmatprep.subr.mxu0 0.0
        %961 = vmatpush1.msra.mxu0 0.0
        %962 = vmatprep.subr.mxu0 0.0
        %963 = vmatpush1.msra.mxu0 0.0
        %964 = vmatprep.subr.mxu0 0.0
        %965 = vmatpush1.msra.mxu0 0.0
        %966 = vmatprep.subr.mxu0 0.0
        %967 = vmatpush1.msra.mxu0 0.0
        %968 = vmatprep.subr.mxu0 0.0
        %969 = vmatpush1.msra.mxu0 0.0
        %970 = vmatprep.subr.mxu0 0.0
        %971 = vmatpush1.msra.mxu0 0.0
        %972 = vmatprep.subr.mxu0 0.0
        %973 = vmatpush1.msra.mxu0 0.0
        %974 = vmatprep.subr.mxu0 0.0
        %975 = vmatpush1.msra.mxu0 0.0
        %976 = vmatprep.subr.mxu0 0.0
        %977 = vmatpush1.msra.mxu0 0.0
        %978 = vmatprep.subr.mxu0 0.0
        %979 = vmatpush1.msra.mxu0 0.0
        %980 = vmatprep.subr.mxu0 0.0
        %981 = vmatpush1.msra.mxu0 0.0
        %982 = vmatprep.subr.mxu0 0.0
        %983 = vmatpush1.msra.mxu0 0.0
        %984 = vmatprep.subr.mxu0 0.0
        %985 = vmatpush1.msra.mxu0 0.0
        %986 = vmatprep.subr.mxu0 0.0
        %987 = vmatpush1.msra.mxu0 0.0
        %988 = vmatprep.subr.mxu0 0.0
        %989 = vmatpush1.msra.mxu0 %v364
        %990 = vmatprep.subr.mxu0 0.0
        %991 = vmatpush1.msra.mxu0 %v363
        %992 = vmatprep.subr.mxu0 0.0
        %993 = vmatpush2.msra.mxu0 0.0
        %994 = vmatprep.subr.mxu0 0.0
        %995 = vmatpush2.msra.mxu0 0.0
        %996 = vmatprep.subr.mxu0 0.0
        %997 = vmatpush2.msra.mxu0 0.0
        %998 = vmatprep.subr.mxu0 0.0
        %999 = vmatpush2.msra.mxu0 0.0
        %1000 = vmatprep.subr.mxu0 0.0
        %1001 = vmatpush2.msra.mxu0 0.0
        %1002 = vmatprep.subr.mxu0 0.0
        %1003 = vmatpush2.msra.mxu0 0.0
        %1004 = vmatprep.subr.mxu0 0.0
        %1005 = vmatpush2.msra.mxu0 0.0
        %1006 = vmatprep.subr.mxu0 0.0
        %1007 = vmatpush2.msra.mxu0 0.0
        %1008 = vmatprep.subr.mxu0 0.0
        %1009 = vmatpush2.msra.mxu0 0.0
        %1010 = vmatprep.subr.mxu0 0.0
        %1011 = vmatpush2.msra.mxu0 0.0
        %1012 = vmatprep.subr.mxu0 0.0
        %1013 = vmatpush2.msra.mxu0 0.0
        %1014 = vmatprep.subr.mxu0 0.0
        %1015 = vmatpush2.msra.mxu0 0.0
        %1016 = vmatprep.subr.mxu0 0.0
        %1017 = vmatpush2.msra.mxu0 0.0
        %1018 = vmatprep.subr.mxu0 0.0
        %1019 = vmatpush2.msra.mxu0 0.0
        %1020 = vmatprep.subr.mxu0 0.0
        %1021 = vmatpush2.msra.mxu0 0.0
        %1022 = vmatprep.subr.mxu0 0.0
        %1023 = vmatpush2.msra.mxu0 0.0
        %1024 = vmatprep.mubr.f32.mxu0 0.0
        %1025 = vmatmul.mubr.f32.gmra.mxu0 %v420
        %v1026 = vpop.f32.mrf.mxu0
        %v1027 = vadd.f32 %v958, %v1026
        %v1028 = vpop.f32.mrf.mxu0
        %1029 = vdwg.mxu0
        %v1030 = vadd.f32 %v951, %v1027
        %v1031 = vxor.u32 %v1030, 2147483648
        %v1032 = vmul.f32 %v1031, 1.442695
        %v1033 = vpow.pop %v1032
        %v1034 = vadd.f32 %v1033, 1.0
        %v1035 = vrcp.pop %v1034
        %v1036 = vmul.f32 1.0, %v1035
        %1038 = vrot.lane.b32.xlu0 %v1027, 96
        %v1039 = vpop.permute.xlu0 %1038
        %v1041 = vmul.f32 %v1036, %v1039
        %1043 = vrot.lane.b32.xlu0 %v1041, 32
        %v1044 = vpop.permute.xlu0 %1043
        %v1046 = vadd.f32 %v951, %v1044
        %v1047 = vtanh.pop %v1046
        %v1048 = vsub.f32 1.0, %v1036
        %1050 = vrot.lane.b32.xlu0 %v1047, 112
        %v1051 = vpop.permute.xlu0 %1050
        %v1053 = vmul.f32 %v1048, %v1051
        %1054 = vrot.lane.b32.xlu0 %v357, 16
        %v1055 = vpop.permute.xlu0 %1054
        %v1057 = vmul.f32 %v1036, %v1055
        %v1058 = vadd.f32 %v1053, %v1057
        %1060 = vrot.lane.b32.xlu0 %v1058, 112
        %v1061 = vpop.permute.xlu0 %1060
        %1064 = vrot.lane.b32.xlu0 %v416, 112
        %v1065 = vpop.permute.xlu0 %1064
        %1066 = vrot.lane.b32.xlu0 %v417, 112
        %v1067 = vpop.permute.xlu0 %1066
        %v1070 = vsel %vm418, %v1061, 0
        %1072 = vmatprep.subr.mxu0 0.0
        %1073 = vmatpush1.msra.mxu0 0.0
        %1074 = vmatprep.subr.mxu0 0.0
        %1075 = vmatpush1.msra.mxu0 0.0
        %1076 = vmatprep.subr.mxu0 0.0
        %1077 = vmatpush1.msra.mxu0 0.0
        %1078 = vmatprep.subr.mxu0 0.0
        %1079 = vmatpush1.msra.mxu0 0.0
        %1080 = vmatprep.subr.mxu0 0.0
        %1081 = vmatpush1.msra.mxu0 0.0
        %1082 = vmatprep.subr.mxu0 0.0
        %1083 = vmatpush1.msra.mxu0 0.0
        %1084 = vmatprep.subr.mxu0 0.0
        %1085 = vmatpush1.msra.mxu0 0.0
        %1086 = vmatprep.subr.mxu0 0.0
        %1087 = vmatpush1.msra.mxu0 0.0
        %1088 = vmatprep.subr.mxu0 0.0
        %1089 = vmatpush1.msra.mxu0 0.0
        %1090 = vmatprep.subr.mxu0 0.0
        %1091 = vmatpush1.msra.mxu0 0.0
        %1092 = vmatprep.subr.mxu0 0.0
        %1093 = vmatpush1.msra.mxu0 0.0
        %1094 = vmatprep.subr.mxu0 0.0
        %1095 = vmatpush1.msra.mxu0 0.0
        %1096 = vmatprep.subr.mxu0 0.0
        %1097 = vmatpush1.msra.mxu0 0.0
        %1098 = vmatprep.subr.mxu0 0.0
        %1099 = vmatpush1.msra.mxu0 0.0
        %1100 = vmatprep.subr.mxu0 0.0
        %1101 = vmatpush1.msra.mxu0 %v1067
        %1102 = vmatprep.subr.mxu0 0.0
        %1103 = vmatpush1.msra.mxu0 %v1065
        %1104 = vmatprep.subr.mxu0 0.0
        %1105 = vmatpush2.msra.mxu0 0.0
        %1106 = vmatprep.subr.mxu0 0.0
        %1107 = vmatpush2.msra.mxu0 0.0
        %1108 = vmatprep.subr.mxu0 0.0
        %1109 = vmatpush2.msra.mxu0 0.0
        %1110 = vmatprep.subr.mxu0 0.0
        %1111 = vmatpush2.msra.mxu0 0.0
        %1112 = vmatprep.subr.mxu0 0.0
        %1113 = vmatpush2.msra.mxu0 0.0
        %1114 = vmatprep.subr.mxu0 0.0
        %1115 = vmatpush2.msra.mxu0 0.0
        %1116 = vmatprep.subr.mxu0 0.0
        %1117 = vmatpush2.msra.mxu0 0.0
        %1118 = vmatprep.subr.mxu0 0.0
        %1119 = vmatpush2.msra.mxu0 0.0
        %1120 = vmatprep.subr.mxu0 0.0
        %1121 = vmatpush2.msra.mxu0 0.0
        %1122 = vmatprep.subr.mxu0 0.0
        %1123 = vmatpush2.msra.mxu0 0.0
        %1124 = vmatprep.subr.mxu0 0.0
        %1125 = vmatpush2.msra.mxu0 0.0
        %1126 = vmatprep.subr.mxu0 0.0
        %1127 = vmatpush2.msra.mxu0 0.0
        %1128 = vmatprep.subr.mxu0 0.0
        %1129 = vmatpush2.msra.mxu0 0.0
        %1130 = vmatprep.subr.mxu0 0.0
        %1131 = vmatpush2.msra.mxu0 0.0
        %1132 = vmatprep.subr.mxu0 0.0
        %1133 = vmatpush2.msra.mxu0 0.0
        %1134 = vmatprep.subr.mxu0 0.0
        %1135 = vmatpush2.msra.mxu0 0.0
        %1136 = vmatprep.mubr.f32.mxu0 0.0
        %1137 = vmatmul.mubr.f32.gmra.mxu0 %v1070
        %v1138 = vpop.f32.mrf.mxu0
        %v1139 = vadd.f32 0.0, %v1138
        %v1140 = vpop.f32.mrf.mxu0
        %1141 = vdwg.mxu0
        %v1143 = vsel %vm418, %v1139, 0
        %1145 = vmatprep.subr.mxu0 0.0
        %1146 = vmatpush1.xpose.msra.mxu0 0.0
        %1147 = vmatprep.subr.mxu0 0.0
        %1148 = vmatpush1.xpose.msra.mxu0 0.0
        %1149 = vmatprep.subr.mxu0 0.0
        %1150 = vmatpush1.xpose.msra.mxu0 0.0
        %1151 = vmatprep.subr.mxu0 0.0
        %1152 = vmatpush1.xpose.msra.mxu0 0.0
        %1153 = vmatprep.subr.mxu0 0.0
        %1154 = vmatpush1.xpose.msra.mxu0 0.0
        %1155 = vmatprep.subr.mxu0 0.0
        %1156 = vmatpush1.xpose.msra.mxu0 0.0
        %1157 = vmatprep.subr.mxu0 0.0
        %1158 = vmatpush1.xpose.msra.mxu0 0.0
        %1159 = vmatprep.subr.mxu0 0.0
        %1160 = vmatpush1.xpose.msra.mxu0 0.0
        %1161 = vmatprep.subr.mxu0 0.0
        %1162 = vmatpush1.xpose.msra.mxu0 0.0
        %1163 = vmatprep.subr.mxu0 0.0
        %1164 = vmatpush1.xpose.msra.mxu0 0.0
        %1165 = vmatprep.subr.mxu0 0.0
        %1166 = vmatpush1.xpose.msra.mxu0 0.0
        %1167 = vmatprep.subr.mxu0 0.0
        %1168 = vmatpush1.xpose.msra.mxu0 0.0
        %1169 = vmatprep.subr.mxu0 0.0
        %1170 = vmatpush1.xpose.msra.mxu0 0.0
        %1171 = vmatprep.subr.mxu0 0.0
        %1172 = vmatpush1.xpose.msra.mxu0 0.0
        %1173 = vmatprep.subr.mxu0 0.0
        %1174 = vmatpush1.xpose.msra.mxu0 0.0
        %1175 = vmatprep.subr.mxu0 0.0
        %1176 = vmatpush1.xpose.msra.mxu0 %v1143
        %1177 = vmatprep.subr.mxu0 0.0
        %1178 = vmatpush2.xpose.msra.mxu0 0.0
        %1179 = vmatprep.subr.mxu0 0.0
        %1180 = vmatpush2.xpose.msra.mxu0 0.0
        %1181 = vmatprep.subr.mxu0 0.0
        %1182 = vmatpush2.xpose.msra.mxu0 0.0
        %1183 = vmatprep.subr.mxu0 0.0
        %1184 = vmatpush2.xpose.msra.mxu0 0.0
        %1185 = vmatprep.subr.mxu0 0.0
        %1186 = vmatpush2.xpose.msra.mxu0 0.0
        %1187 = vmatprep.subr.mxu0 0.0
        %1188 = vmatpush2.xpose.msra.mxu0 0.0
        %1189 = vmatprep.subr.mxu0 0.0
        %1190 = vmatpush2.xpose.msra.mxu0 0.0
        %1191 = vmatprep.subr.mxu0 0.0
        %1192 = vmatpush2.xpose.msra.mxu0 0.0
        %1193 = vmatprep.subr.mxu0 0.0
        %1194 = vmatpush2.xpose.msra.mxu0 0.0
        %1195 = vmatprep.subr.mxu0 0.0
        %1196 = vmatpush2.xpose.msra.mxu0 0.0
        %1197 = vmatprep.subr.mxu0 0.0
        %1198 = vmatpush2.xpose.msra.mxu0 0.0
        %1199 = vmatprep.subr.mxu0 0.0
        %1200 = vmatpush2.xpose.msra.mxu0 0.0
        %1201 = vmatprep.subr.mxu0 0.0
        %1202 = vmatpush2.xpose.msra.mxu0 0.0
        %1203 = vmatprep.subr.mxu0 0.0
        %1204 = vmatpush2.xpose.msra.mxu0 0.0
        %1205 = vmatprep.subr.mxu0 0.0
        %1206 = vmatpush2.xpose.msra.mxu0 0.0
        %1207 = vmatprep.subr.mxu0 0.0
        %1208 = vmatpush2.xpose.msra.mxu0 0.0
        %1209 = vmatprep.mubr.f32.mxu0 0.0
        %1210 = vmatmul.mubr.f32.gmra.mxu0 %v493
        %v1211 = vpop.f32.mrf.mxu0
        %v1212 = vadd.f32 0.0, %v1211
        %v1213 = vpop.f32.mrf.mxu0
        %1214 = vdwg.mxu0
        %v1215 = vlaneseq
        %v1216 = vshrl.u32 %v1215, 7
        %v1217 = vsub.s32 0, %v1216
        %v1218 = vrot.slane %v1212, %v1217
        %v1219 = vmul.f32 %v358, %v1218
        %v1220 = vadd.f32 %v1219, %v573
        %v1221 = vand.u32 2147483647, %v1220
        %v1222 = vadd.f32 %v1221, 1.0
        %v1223 = vrcp.pop %v1222
        %v1224 = vmul.f32 %v1220, %v1223
        %v1225 = vlaneseq
        %v1226 = vshrl.u32 %v1225, 7
        %v1227 = vsub.s32 1, %v1226
        %v1228 = vrot.slane %v1212, %v1227
        %v1229 = vmul.f32 %v358, %v1228
        %v1230 = vadd.f32 %v1229, %v584
        %v1231 = vand.u32 2147483647, %v1230
        %v1232 = vadd.f32 %v1231, 1.0
        %v1233 = vrcp.pop %v1232
        %v1234 = vmul.f32 %v1230, %v1233
        %v1235 = vlaneseq
        %v1236 = vshrl.u32 %v1235, 7
        %v1237 = vsub.s32 2, %v1236
        %v1238 = vrot.slane %v1212, %v1237
        %v1239 = vmul.f32 %v358, %v1238
        %v1240 = vadd.f32 %v1239, %v595
        %v1241 = vand.u32 2147483647, %v1240
        %v1242 = vadd.f32 %v1241, 1.0
        %v1243 = vrcp.pop %v1242
        %v1244 = vmul.f32 %v1240, %v1243
        %v1245 = vlaneseq
        %v1246 = vshrl.u32 %v1245, 7
        %v1247 = vsub.s32 3, %v1246
        %v1248 = vrot.slane %v1212, %v1247
        %v1249 = vmul.f32 %v358, %v1248
        %v1250 = vadd.f32 %v1249, %v606
        %v1251 = vand.u32 2147483647, %v1250
        %v1252 = vadd.f32 %v1251, 1.0
        %v1253 = vrcp.pop %v1252
        %v1254 = vmul.f32 %v1250, %v1253
        %v1255 = vlaneseq
        %v1256 = vshrl.u32 %v1255, 7
        %v1257 = vsub.s32 4, %v1256
        %v1258 = vrot.slane %v1212, %v1257
        %v1259 = vmul.f32 %v358, %v1258
        %v1260 = vadd.f32 %v1259, %v617
        %v1261 = vand.u32 2147483647, %v1260
        %v1262 = vadd.f32 %v1261, 1.0
        %v1263 = vrcp.pop %v1262
        %v1264 = vmul.f32 %v1260, %v1263
        %v1265 = vlaneseq
        %v1266 = vshrl.u32 %v1265, 7
        %v1267 = vsub.s32 5, %v1266
        %v1268 = vrot.slane %v1212, %v1267
        %v1269 = vmul.f32 %v358, %v1268
        %v1270 = vadd.f32 %v1269, %v628
        %v1271 = vand.u32 2147483647, %v1270
        %v1272 = vadd.f32 %v1271, 1.0
        %v1273 = vrcp.pop %v1272
        %v1274 = vmul.f32 %v1270, %v1273
        %v1275 = vlaneseq
        %v1276 = vshrl.u32 %v1275, 7
        %v1277 = vsub.s32 6, %v1276
        %v1278 = vrot.slane %v1212, %v1277
        %v1279 = vmul.f32 %v358, %v1278
        %v1280 = vadd.f32 %v1279, %v639
        %v1281 = vand.u32 2147483647, %v1280
        %v1282 = vadd.f32 %v1281, 1.0
        %v1283 = vrcp.pop %v1282
        %v1284 = vmul.f32 %v1280, %v1283
        %v1285 = vlaneseq
        %v1286 = vshrl.u32 %v1285, 7
        %v1287 = vsub.s32 7, %v1286
        %v1288 = vrot.slane %v1212, %v1287
        %v1289 = vmul.f32 %v358, %v1288
        %v1290 = vadd.f32 %v1289, %v650
        %v1291 = vand.u32 2147483647, %v1290
        %v1292 = vadd.f32 %v1291, 1.0
        %v1293 = vrcp.pop %v1292
        %v1294 = vmul.f32 %v1290, %v1293
        %v1295 = vmul.f32 %v656, %v1224
        %v1296 = vadd.f32 %v658, %v1295
        %v1297 = vmul.f32 %v660, %v1234
        %v1298 = vadd.f32 %v1296, %v1297
        %v1299 = vmul.f32 %v663, %v1244
        %v1300 = vadd.f32 %v1298, %v1299
        %v1301 = vmul.f32 %v666, %v1254
        %v1302 = vadd.f32 %v1300, %v1301
        %v1303 = vmul.f32 %v669, %v1264
        %v1304 = vadd.f32 %v1302, %v1303
        %v1305 = vmul.f32 %v672, %v1274
        %v1306 = vadd.f32 %v1304, %v1305
        %v1307 = vmul.f32 %v675, %v1284
        %v1308 = vadd.f32 %v1306, %v1307
        %v1309 = vmul.f32 %v678, %v1294
        %v1310 = vadd.f32 %v1308, %v1309
        %v1311 = vand.u32 2147483647, %v1310
        %v1312 = vadd.f32 %v1311, 1.0
        %v1313 = vrcp.pop %v1312
        %v1314 = vmul.f32 %v1310, %v1313
        %v1315 = vmul.f32 %v685, %v1224
        %v1316 = vadd.f32 %v687, %v1315
        %v1317 = vmul.f32 %v689, %v1234
        %v1318 = vadd.f32 %v1316, %v1317
        %v1319 = vmul.f32 %v692, %v1244
        %v1320 = vadd.f32 %v1318, %v1319
        %v1321 = vmul.f32 %v695, %v1254
        %v1322 = vadd.f32 %v1320, %v1321
        %v1323 = vmul.f32 %v698, %v1264
        %v1324 = vadd.f32 %v1322, %v1323
        %v1325 = vmul.f32 %v701, %v1274
        %v1326 = vadd.f32 %v1324, %v1325
        %v1327 = vmul.f32 %v704, %v1284
        %v1328 = vadd.f32 %v1326, %v1327
        %v1329 = vmul.f32 %v707, %v1294
        %v1330 = vadd.f32 %v1328, %v1329
        %v1331 = vand.u32 2147483647, %v1330
        %v1332 = vadd.f32 %v1331, 1.0
        %v1333 = vrcp.pop %v1332
        %v1334 = vmul.f32 %v1330, %v1333
        %v1335 = vmul.f32 %v714, %v1224
        %v1336 = vadd.f32 %v716, %v1335
        %v1337 = vmul.f32 %v718, %v1234
        %v1338 = vadd.f32 %v1336, %v1337
        %v1339 = vmul.f32 %v721, %v1244
        %v1340 = vadd.f32 %v1338, %v1339
        %v1341 = vmul.f32 %v724, %v1254
        %v1342 = vadd.f32 %v1340, %v1341
        %v1343 = vmul.f32 %v727, %v1264
        %v1344 = vadd.f32 %v1342, %v1343
        %v1345 = vmul.f32 %v730, %v1274
        %v1346 = vadd.f32 %v1344, %v1345
        %v1347 = vmul.f32 %v733, %v1284
        %v1348 = vadd.f32 %v1346, %v1347
        %v1349 = vmul.f32 %v736, %v1294
        %v1350 = vadd.f32 %v1348, %v1349
        %v1351 = vand.u32 2147483647, %v1350
        %v1352 = vadd.f32 %v1351, 1.0
        %v1353 = vrcp.pop %v1352
        %v1354 = vmul.f32 %v1350, %v1353
        %v1355 = vmul.f32 %v743, %v1224
        %v1356 = vadd.f32 %v745, %v1355
        %v1357 = vmul.f32 %v747, %v1234
        %v1358 = vadd.f32 %v1356, %v1357
        %v1359 = vmul.f32 %v750, %v1244
        %v1360 = vadd.f32 %v1358, %v1359
        %v1361 = vmul.f32 %v753, %v1254
        %v1362 = vadd.f32 %v1360, %v1361
        %v1363 = vmul.f32 %v756, %v1264
        %v1364 = vadd.f32 %v1362, %v1363
        %v1365 = vmul.f32 %v759, %v1274
        %v1366 = vadd.f32 %v1364, %v1365
        %v1367 = vmul.f32 %v762, %v1284
        %v1368 = vadd.f32 %v1366, %v1367
        %v1369 = vmul.f32 %v765, %v1294
        %v1370 = vadd.f32 %v1368, %v1369
        %v1371 = vand.u32 2147483647, %v1370
        %v1372 = vadd.f32 %v1371, 1.0
        %v1373 = vrcp.pop %v1372
        %v1374 = vmul.f32 %v1370, %v1373
        %v1375 = vmul.f32 %v772, %v1314
        %v1376 = vadd.f32 %v774, %v1375
        %v1377 = vmul.f32 %v776, %v1334
        %v1378 = vadd.f32 %v1376, %v1377
        %v1379 = vmul.f32 %v779, %v1354
        %v1380 = vadd.f32 %v1378, %v1379
        %v1381 = vmul.f32 %v782, %v1374
        %v1382 = vadd.f32 %v1380, %v1381
        %v1383 = vsel %vm359, %v1382, -1e+30
        %v1384 = vsel %vm786, %v1383, -inf
        %1385 = vmax.xlane.f32.xlu0 %v1384
        %v1386 = vpop.xlane.xlu0 %1385
        %v1387 = vmax.f32 %v1386, 0.0
        %v1388 = vsub.f32 %v1382, %v1387
        %v1389 = vmul.f32 %v1388, 1.442695
        %v1390 = vpow.pop %v1389
        %v1391 = vsel %vm359, %v1390, 0.0
        %v1392 = vsel %vm786, %v1391, 0.0
        %1393 = vadd.xlane.f32.xlu0 %v1392
        %v1394 = vpop.xlane.xlu0 %1393
        %v1395 = vmul.f32 %v1391, %v358
        %v1397 = vsel %vm786, %v1395, 0
        %1399 = vmatprep.subr.mxu0 0.0
        %1400 = vmatpush1.msra.mxu0 0.0
        %1401 = vmatprep.subr.mxu0 0.0
        %1402 = vmatpush1.msra.mxu0 0.0
        %1403 = vmatprep.subr.mxu0 0.0
        %1404 = vmatpush1.msra.mxu0 0.0
        %1405 = vmatprep.subr.mxu0 0.0
        %1406 = vmatpush1.msra.mxu0 0.0
        %1407 = vmatprep.subr.mxu0 0.0
        %1408 = vmatpush1.msra.mxu0 0.0
        %1409 = vmatprep.subr.mxu0 0.0
        %1410 = vmatpush1.msra.mxu0 0.0
        %1411 = vmatprep.subr.mxu0 0.0
        %1412 = vmatpush1.msra.mxu0 0.0
        %1413 = vmatprep.subr.mxu0 0.0
        %1414 = vmatpush1.msra.mxu0 0.0
        %1415 = vmatprep.subr.mxu0 0.0
        %1416 = vmatpush1.msra.mxu0 0.0
        %1417 = vmatprep.subr.mxu0 0.0
        %1418 = vmatpush1.msra.mxu0 0.0
        %1419 = vmatprep.subr.mxu0 0.0
        %1420 = vmatpush1.msra.mxu0 0.0
        %1421 = vmatprep.subr.mxu0 0.0
        %1422 = vmatpush1.msra.mxu0 0.0
        %1423 = vmatprep.subr.mxu0 0.0
        %1424 = vmatpush1.msra.mxu0 0.0
        %1425 = vmatprep.subr.mxu0 0.0
        %1426 = vmatpush1.msra.mxu0 0.0
        %1427 = vmatprep.subr.mxu0 0.0
        %1428 = vmatpush1.msra.mxu0 0.0
        %1429 = vmatprep.subr.mxu0 0.0
        %1430 = vmatpush1.msra.mxu0 %v1139
        %1431 = vmatprep.subr.mxu0 0.0
        %1432 = vmatpush2.msra.mxu0 0.0
        %1433 = vmatprep.subr.mxu0 0.0
        %1434 = vmatpush2.msra.mxu0 0.0
        %1435 = vmatprep.subr.mxu0 0.0
        %1436 = vmatpush2.msra.mxu0 0.0
        %1437 = vmatprep.subr.mxu0 0.0
        %1438 = vmatpush2.msra.mxu0 0.0
        %1439 = vmatprep.subr.mxu0 0.0
        %1440 = vmatpush2.msra.mxu0 0.0
        %1441 = vmatprep.subr.mxu0 0.0
        %1442 = vmatpush2.msra.mxu0 0.0
        %1443 = vmatprep.subr.mxu0 0.0
        %1444 = vmatpush2.msra.mxu0 0.0
        %1445 = vmatprep.subr.mxu0 0.0
        %1446 = vmatpush2.msra.mxu0 0.0
        %1447 = vmatprep.subr.mxu0 0.0
        %1448 = vmatpush2.msra.mxu0 0.0
        %1449 = vmatprep.subr.mxu0 0.0
        %1450 = vmatpush2.msra.mxu0 0.0
        %1451 = vmatprep.subr.mxu0 0.0
        %1452 = vmatpush2.msra.mxu0 0.0
        %1453 = vmatprep.subr.mxu0 0.0
        %1454 = vmatpush2.msra.mxu0 0.0
        %1455 = vmatprep.subr.mxu0 0.0
        %1456 = vmatpush2.msra.mxu0 0.0
        %1457 = vmatprep.subr.mxu0 0.0
        %1458 = vmatpush2.msra.mxu0 0.0
        %1459 = vmatprep.subr.mxu0 0.0
        %1460 = vmatpush2.msra.mxu0 0.0
        %1461 = vmatprep.subr.mxu0 0.0
        %1462 = vmatpush2.msra.mxu0 0.0
        %1463 = vmatprep.mubr.f32.mxu0 0.0
        %1464 = vmatmul.mubr.f32.gmra.mxu0 %v1397
        %v1465 = vpop.f32.mrf.mxu0
        %v1466 = vadd.f32 0.0, %v1465
        %v1467 = vpop.f32.mrf.mxu0
        %1468 = vdwg.mxu0
        %v1469 = vmax.f32 %v1394, 1e-30
        %v1470 = vrcp.pop %v1469
        %v1471 = vmul.f32 %v1466, %v1470
        %v1473 = vsel %vm418, %v1471, 0
        %1475 = vmatprep.subr.mxu0 0.0
        %1476 = vmatpush1.msra.mxu0 0.0
        %1477 = vmatprep.subr.mxu0 0.0
        %1478 = vmatpush1.msra.mxu0 0.0
        %1479 = vmatprep.subr.mxu0 0.0
        %1480 = vmatpush1.msra.mxu0 0.0
        %1481 = vmatprep.subr.mxu0 0.0
        %1482 = vmatpush1.msra.mxu0 0.0
        %1483 = vmatprep.subr.mxu0 0.0
        %1484 = vmatpush1.msra.mxu0 0.0
        %1485 = vmatprep.subr.mxu0 0.0
        %1486 = vmatpush1.msra.mxu0 0.0
        %1487 = vmatprep.subr.mxu0 0.0
        %1488 = vmatpush1.msra.mxu0 0.0
        %1489 = vmatprep.subr.mxu0 0.0
        %1490 = vmatpush1.msra.mxu0 0.0
        %1491 = vmatprep.subr.mxu0 0.0
        %1492 = vmatpush1.msra.mxu0 0.0
        %1493 = vmatprep.subr.mxu0 0.0
        %1494 = vmatpush1.msra.mxu0 0.0
        %1495 = vmatprep.subr.mxu0 0.0
        %1496 = vmatpush1.msra.mxu0 0.0
        %1497 = vmatprep.subr.mxu0 0.0
        %1498 = vmatpush1.msra.mxu0 0.0
        %1499 = vmatprep.subr.mxu0 0.0
        %1500 = vmatpush1.msra.mxu0 0.0
        %1501 = vmatprep.subr.mxu0 0.0
        %1502 = vmatpush1.msra.mxu0 0.0
        %1503 = vmatprep.subr.mxu0 0.0
        %1504 = vmatpush1.msra.mxu0 %v362
        %1505 = vmatprep.subr.mxu0 0.0
        %1506 = vmatpush1.msra.mxu0 %v361
        %1507 = vmatprep.subr.mxu0 0.0
        %1508 = vmatpush2.msra.mxu0 0.0
        %1509 = vmatprep.subr.mxu0 0.0
        %1510 = vmatpush2.msra.mxu0 0.0
        %1511 = vmatprep.subr.mxu0 0.0
        %1512 = vmatpush2.msra.mxu0 0.0
        %1513 = vmatprep.subr.mxu0 0.0
        %1514 = vmatpush2.msra.mxu0 0.0
        %1515 = vmatprep.subr.mxu0 0.0
        %1516 = vmatpush2.msra.mxu0 0.0
        %1517 = vmatprep.subr.mxu0 0.0
        %1518 = vmatpush2.msra.mxu0 0.0
        %1519 = vmatprep.subr.mxu0 0.0
        %1520 = vmatpush2.msra.mxu0 0.0
        %1521 = vmatprep.subr.mxu0 0.0
        %1522 = vmatpush2.msra.mxu0 0.0
        %1523 = vmatprep.subr.mxu0 0.0
        %1524 = vmatpush2.msra.mxu0 0.0
        %1525 = vmatprep.subr.mxu0 0.0
        %1526 = vmatpush2.msra.mxu0 0.0
        %1527 = vmatprep.subr.mxu0 0.0
        %1528 = vmatpush2.msra.mxu0 0.0
        %1529 = vmatprep.subr.mxu0 0.0
        %1530 = vmatpush2.msra.mxu0 0.0
        %1531 = vmatprep.subr.mxu0 0.0
        %1532 = vmatpush2.msra.mxu0 0.0
        %1533 = vmatprep.subr.mxu0 0.0
        %1534 = vmatpush2.msra.mxu0 0.0
        %1535 = vmatprep.subr.mxu0 0.0
        %1536 = vmatpush2.msra.mxu0 0.0
        %1537 = vmatprep.subr.mxu0 0.0
        %1538 = vmatpush2.msra.mxu0 0.0
        %1539 = vmatprep.mubr.f32.mxu0 0.0
        %1540 = vmatmul.mubr.f32.gmra.mxu0 %v1473
        %v1541 = vpop.f32.mrf.mxu0
        %v1542 = vadd.f32 %v879, %v1541
        %v1543 = vpop.f32.mrf.mxu0
        %1544 = vdwg.mxu0
        %1545 = vmatprep.subr.mxu0 0.0
        %1546 = vmatpush1.msra.mxu0 0.0
        %1547 = vmatprep.subr.mxu0 0.0
        %1548 = vmatpush1.msra.mxu0 0.0
        %1549 = vmatprep.subr.mxu0 0.0
        %1550 = vmatpush1.msra.mxu0 0.0
        %1551 = vmatprep.subr.mxu0 0.0
        %1552 = vmatpush1.msra.mxu0 0.0
        %1553 = vmatprep.subr.mxu0 0.0
        %1554 = vmatpush1.msra.mxu0 0.0
        %1555 = vmatprep.subr.mxu0 0.0
        %1556 = vmatpush1.msra.mxu0 0.0
        %1557 = vmatprep.subr.mxu0 0.0
        %1558 = vmatpush1.msra.mxu0 0.0
        %1559 = vmatprep.subr.mxu0 0.0
        %1560 = vmatpush1.msra.mxu0 0.0
        %1561 = vmatprep.subr.mxu0 0.0
        %1562 = vmatpush1.msra.mxu0 0.0
        %1563 = vmatprep.subr.mxu0 0.0
        %1564 = vmatpush1.msra.mxu0 0.0
        %1565 = vmatprep.subr.mxu0 0.0
        %1566 = vmatpush1.msra.mxu0 0.0
        %1567 = vmatprep.subr.mxu0 0.0
        %1568 = vmatpush1.msra.mxu0 0.0
        %1569 = vmatprep.subr.mxu0 0.0
        %1570 = vmatpush1.msra.mxu0 0.0
        %1571 = vmatprep.subr.mxu0 0.0
        %1572 = vmatpush1.msra.mxu0 0.0
        %1573 = vmatprep.subr.mxu0 0.0
        %1574 = vmatpush1.msra.mxu0 %v364
        %1575 = vmatprep.subr.mxu0 0.0
        %1576 = vmatpush1.msra.mxu0 %v363
        %1577 = vmatprep.subr.mxu0 0.0
        %1578 = vmatpush2.msra.mxu0 0.0
        %1579 = vmatprep.subr.mxu0 0.0
        %1580 = vmatpush2.msra.mxu0 0.0
        %1581 = vmatprep.subr.mxu0 0.0
        %1582 = vmatpush2.msra.mxu0 0.0
        %1583 = vmatprep.subr.mxu0 0.0
        %1584 = vmatpush2.msra.mxu0 0.0
        %1585 = vmatprep.subr.mxu0 0.0
        %1586 = vmatpush2.msra.mxu0 0.0
        %1587 = vmatprep.subr.mxu0 0.0
        %1588 = vmatpush2.msra.mxu0 0.0
        %1589 = vmatprep.subr.mxu0 0.0
        %1590 = vmatpush2.msra.mxu0 0.0
        %1591 = vmatprep.subr.mxu0 0.0
        %1592 = vmatpush2.msra.mxu0 0.0
        %1593 = vmatprep.subr.mxu0 0.0
        %1594 = vmatpush2.msra.mxu0 0.0
        %1595 = vmatprep.subr.mxu0 0.0
        %1596 = vmatpush2.msra.mxu0 0.0
        %1597 = vmatprep.subr.mxu0 0.0
        %1598 = vmatpush2.msra.mxu0 0.0
        %1599 = vmatprep.subr.mxu0 0.0
        %1600 = vmatpush2.msra.mxu0 0.0
        %1601 = vmatprep.subr.mxu0 0.0
        %1602 = vmatpush2.msra.mxu0 0.0
        %1603 = vmatprep.subr.mxu0 0.0
        %1604 = vmatpush2.msra.mxu0 0.0
        %1605 = vmatprep.subr.mxu0 0.0
        %1606 = vmatpush2.msra.mxu0 0.0
        %1607 = vmatprep.subr.mxu0 0.0
        %1608 = vmatpush2.msra.mxu0 0.0
        %1609 = vmatprep.mubr.f32.mxu0 0.0
        %1610 = vmatmul.mubr.f32.gmra.mxu0 %v1070
        %v1611 = vpop.f32.mrf.mxu0
        %v1612 = vadd.f32 %v958, %v1611
        %v1613 = vpop.f32.mrf.mxu0
        %1614 = vdwg.mxu0
        %v1615 = vadd.f32 %v1542, %v1612
        %v1616 = vxor.u32 %v1615, 2147483648
        %v1617 = vmul.f32 %v1616, 1.442695
        %v1618 = vpow.pop %v1617
        %v1619 = vadd.f32 %v1618, 1.0
        %v1620 = vrcp.pop %v1619
        %v1621 = vmul.f32 1.0, %v1620
        %1623 = vrot.lane.b32.xlu0 %v1612, 96
        %v1624 = vpop.permute.xlu0 %1623
        %v1626 = vmul.f32 %v1621, %v1624
        %1628 = vrot.lane.b32.xlu0 %v1626, 32
        %v1629 = vpop.permute.xlu0 %1628
        %v1631 = vadd.f32 %v1542, %v1629
        %v1632 = vtanh.pop %v1631
        %v1633 = vsub.f32 1.0, %v1621
        %1635 = vrot.lane.b32.xlu0 %v1632, 112
        %v1636 = vpop.permute.xlu0 %1635
        %v1638 = vmul.f32 %v1633, %v1636
        %v1639 = vmul.f32 %v1621, %v1058
        %v1640 = vadd.f32 %v1638, %v1639
        %1642 = vrot.lane.b32.xlu0 %v1640, 112
        %v1643 = vpop.permute.xlu0 %1642
        %1644 = vrot.lane.b32.xlu0 %v416, 96
        %v1645 = vpop.permute.xlu0 %1644
        %1646 = vrot.lane.b32.xlu0 %v417, 96
        %v1647 = vpop.permute.xlu0 %1646
        %v1650 = vsel %vm418, %v1643, 0
        %1652 = vmatprep.subr.mxu0 0.0
        %1653 = vmatpush1.msra.mxu0 0.0
        %1654 = vmatprep.subr.mxu0 0.0
        %1655 = vmatpush1.msra.mxu0 0.0
        %1656 = vmatprep.subr.mxu0 0.0
        %1657 = vmatpush1.msra.mxu0 0.0
        %1658 = vmatprep.subr.mxu0 0.0
        %1659 = vmatpush1.msra.mxu0 0.0
        %1660 = vmatprep.subr.mxu0 0.0
        %1661 = vmatpush1.msra.mxu0 0.0
        %1662 = vmatprep.subr.mxu0 0.0
        %1663 = vmatpush1.msra.mxu0 0.0
        %1664 = vmatprep.subr.mxu0 0.0
        %1665 = vmatpush1.msra.mxu0 0.0
        %1666 = vmatprep.subr.mxu0 0.0
        %1667 = vmatpush1.msra.mxu0 0.0
        %1668 = vmatprep.subr.mxu0 0.0
        %1669 = vmatpush1.msra.mxu0 0.0
        %1670 = vmatprep.subr.mxu0 0.0
        %1671 = vmatpush1.msra.mxu0 0.0
        %1672 = vmatprep.subr.mxu0 0.0
        %1673 = vmatpush1.msra.mxu0 0.0
        %1674 = vmatprep.subr.mxu0 0.0
        %1675 = vmatpush1.msra.mxu0 0.0
        %1676 = vmatprep.subr.mxu0 0.0
        %1677 = vmatpush1.msra.mxu0 0.0
        %1678 = vmatprep.subr.mxu0 0.0
        %1679 = vmatpush1.msra.mxu0 0.0
        %1680 = vmatprep.subr.mxu0 0.0
        %1681 = vmatpush1.msra.mxu0 %v1647
        %1682 = vmatprep.subr.mxu0 0.0
        %1683 = vmatpush1.msra.mxu0 %v1645
        %1684 = vmatprep.subr.mxu0 0.0
        %1685 = vmatpush2.msra.mxu0 0.0
        %1686 = vmatprep.subr.mxu0 0.0
        %1687 = vmatpush2.msra.mxu0 0.0
        %1688 = vmatprep.subr.mxu0 0.0
        %1689 = vmatpush2.msra.mxu0 0.0
        %1690 = vmatprep.subr.mxu0 0.0
        %1691 = vmatpush2.msra.mxu0 0.0
        %1692 = vmatprep.subr.mxu0 0.0
        %1693 = vmatpush2.msra.mxu0 0.0
        %1694 = vmatprep.subr.mxu0 0.0
        %1695 = vmatpush2.msra.mxu0 0.0
        %1696 = vmatprep.subr.mxu0 0.0
        %1697 = vmatpush2.msra.mxu0 0.0
        %1698 = vmatprep.subr.mxu0 0.0
        %1699 = vmatpush2.msra.mxu0 0.0
        %1700 = vmatprep.subr.mxu0 0.0
        %1701 = vmatpush2.msra.mxu0 0.0
        %1702 = vmatprep.subr.mxu0 0.0
        %1703 = vmatpush2.msra.mxu0 0.0
        %1704 = vmatprep.subr.mxu0 0.0
        %1705 = vmatpush2.msra.mxu0 0.0
        %1706 = vmatprep.subr.mxu0 0.0
        %1707 = vmatpush2.msra.mxu0 0.0
        %1708 = vmatprep.subr.mxu0 0.0
        %1709 = vmatpush2.msra.mxu0 0.0
        %1710 = vmatprep.subr.mxu0 0.0
        %1711 = vmatpush2.msra.mxu0 0.0
        %1712 = vmatprep.subr.mxu0 0.0
        %1713 = vmatpush2.msra.mxu0 0.0
        %1714 = vmatprep.subr.mxu0 0.0
        %1715 = vmatpush2.msra.mxu0 0.0
        %1716 = vmatprep.mubr.f32.mxu0 0.0
        %1717 = vmatmul.mubr.f32.gmra.mxu0 %v1650
        %v1718 = vpop.f32.mrf.mxu0
        %v1719 = vadd.f32 0.0, %v1718
        %v1720 = vpop.f32.mrf.mxu0
        %1721 = vdwg.mxu0
        %v1723 = vsel %vm418, %v1719, 0
        %1725 = vmatprep.subr.mxu0 0.0
        %1726 = vmatpush1.xpose.msra.mxu0 0.0
        %1727 = vmatprep.subr.mxu0 0.0
        %1728 = vmatpush1.xpose.msra.mxu0 0.0
        %1729 = vmatprep.subr.mxu0 0.0
        %1730 = vmatpush1.xpose.msra.mxu0 0.0
        %1731 = vmatprep.subr.mxu0 0.0
        %1732 = vmatpush1.xpose.msra.mxu0 0.0
        %1733 = vmatprep.subr.mxu0 0.0
        %1734 = vmatpush1.xpose.msra.mxu0 0.0
        %1735 = vmatprep.subr.mxu0 0.0
        %1736 = vmatpush1.xpose.msra.mxu0 0.0
        %1737 = vmatprep.subr.mxu0 0.0
        %1738 = vmatpush1.xpose.msra.mxu0 0.0
        %1739 = vmatprep.subr.mxu0 0.0
        %1740 = vmatpush1.xpose.msra.mxu0 0.0
        %1741 = vmatprep.subr.mxu0 0.0
        %1742 = vmatpush1.xpose.msra.mxu0 0.0
        %1743 = vmatprep.subr.mxu0 0.0
        %1744 = vmatpush1.xpose.msra.mxu0 0.0
        %1745 = vmatprep.subr.mxu0 0.0
        %1746 = vmatpush1.xpose.msra.mxu0 0.0
        %1747 = vmatprep.subr.mxu0 0.0
        %1748 = vmatpush1.xpose.msra.mxu0 0.0
        %1749 = vmatprep.subr.mxu0 0.0
        %1750 = vmatpush1.xpose.msra.mxu0 0.0
        %1751 = vmatprep.subr.mxu0 0.0
        %1752 = vmatpush1.xpose.msra.mxu0 0.0
        %1753 = vmatprep.subr.mxu0 0.0
        %1754 = vmatpush1.xpose.msra.mxu0 0.0
        %1755 = vmatprep.subr.mxu0 0.0
        %1756 = vmatpush1.xpose.msra.mxu0 %v1723
        %1757 = vmatprep.subr.mxu0 0.0
        %1758 = vmatpush2.xpose.msra.mxu0 0.0
        %1759 = vmatprep.subr.mxu0 0.0
        %1760 = vmatpush2.xpose.msra.mxu0 0.0
        %1761 = vmatprep.subr.mxu0 0.0
        %1762 = vmatpush2.xpose.msra.mxu0 0.0
        %1763 = vmatprep.subr.mxu0 0.0
        %1764 = vmatpush2.xpose.msra.mxu0 0.0
        %1765 = vmatprep.subr.mxu0 0.0
        %1766 = vmatpush2.xpose.msra.mxu0 0.0
        %1767 = vmatprep.subr.mxu0 0.0
        %1768 = vmatpush2.xpose.msra.mxu0 0.0
        %1769 = vmatprep.subr.mxu0 0.0
        %1770 = vmatpush2.xpose.msra.mxu0 0.0
        %1771 = vmatprep.subr.mxu0 0.0
        %1772 = vmatpush2.xpose.msra.mxu0 0.0
        %1773 = vmatprep.subr.mxu0 0.0
        %1774 = vmatpush2.xpose.msra.mxu0 0.0
        %1775 = vmatprep.subr.mxu0 0.0
        %1776 = vmatpush2.xpose.msra.mxu0 0.0
        %1777 = vmatprep.subr.mxu0 0.0
        %1778 = vmatpush2.xpose.msra.mxu0 0.0
        %1779 = vmatprep.subr.mxu0 0.0
        %1780 = vmatpush2.xpose.msra.mxu0 0.0
        %1781 = vmatprep.subr.mxu0 0.0
        %1782 = vmatpush2.xpose.msra.mxu0 0.0
        %1783 = vmatprep.subr.mxu0 0.0
        %1784 = vmatpush2.xpose.msra.mxu0 0.0
        %1785 = vmatprep.subr.mxu0 0.0
        %1786 = vmatpush2.xpose.msra.mxu0 0.0
        %1787 = vmatprep.subr.mxu0 0.0
        %1788 = vmatpush2.xpose.msra.mxu0 0.0
        %1789 = vmatprep.mubr.f32.mxu0 0.0
        %1790 = vmatmul.mubr.f32.gmra.mxu0 %v493
        %v1791 = vpop.f32.mrf.mxu0
        %v1792 = vadd.f32 0.0, %v1791
        %v1793 = vpop.f32.mrf.mxu0
        %1794 = vdwg.mxu0
        %v1795 = vlaneseq
        %v1796 = vshrl.u32 %v1795, 7
        %v1797 = vsub.s32 0, %v1796
        %v1798 = vrot.slane %v1792, %v1797
        %v1799 = vmul.f32 %v358, %v1798
        %v1800 = vadd.f32 %v1799, %v573
        %v1801 = vand.u32 2147483647, %v1800
        %v1802 = vadd.f32 %v1801, 1.0
        %v1803 = vrcp.pop %v1802
        %v1804 = vmul.f32 %v1800, %v1803
        %v1805 = vlaneseq
        %v1806 = vshrl.u32 %v1805, 7
        %v1807 = vsub.s32 1, %v1806
        %v1808 = vrot.slane %v1792, %v1807
        %v1809 = vmul.f32 %v358, %v1808
        %v1810 = vadd.f32 %v1809, %v584
        %v1811 = vand.u32 2147483647, %v1810
        %v1812 = vadd.f32 %v1811, 1.0
        %v1813 = vrcp.pop %v1812
        %v1814 = vmul.f32 %v1810, %v1813
        %v1815 = vlaneseq
        %v1816 = vshrl.u32 %v1815, 7
        %v1817 = vsub.s32 2, %v1816
        %v1818 = vrot.slane %v1792, %v1817
        %v1819 = vmul.f32 %v358, %v1818
        %v1820 = vadd.f32 %v1819, %v595
        %v1821 = vand.u32 2147483647, %v1820
        %v1822 = vadd.f32 %v1821, 1.0
        %v1823 = vrcp.pop %v1822
        %v1824 = vmul.f32 %v1820, %v1823
        %v1825 = vlaneseq
        %v1826 = vshrl.u32 %v1825, 7
        %v1827 = vsub.s32 3, %v1826
        %v1828 = vrot.slane %v1792, %v1827
        %v1829 = vmul.f32 %v358, %v1828
        %v1830 = vadd.f32 %v1829, %v606
        %v1831 = vand.u32 2147483647, %v1830
        %v1832 = vadd.f32 %v1831, 1.0
        %v1833 = vrcp.pop %v1832
        %v1834 = vmul.f32 %v1830, %v1833
        %v1835 = vlaneseq
        %v1836 = vshrl.u32 %v1835, 7
        %v1837 = vsub.s32 4, %v1836
        %v1838 = vrot.slane %v1792, %v1837
        %v1839 = vmul.f32 %v358, %v1838
        %v1840 = vadd.f32 %v1839, %v617
        %v1841 = vand.u32 2147483647, %v1840
        %v1842 = vadd.f32 %v1841, 1.0
        %v1843 = vrcp.pop %v1842
        %v1844 = vmul.f32 %v1840, %v1843
        %v1845 = vlaneseq
        %v1846 = vshrl.u32 %v1845, 7
        %v1847 = vsub.s32 5, %v1846
        %v1848 = vrot.slane %v1792, %v1847
        %v1849 = vmul.f32 %v358, %v1848
        %v1850 = vadd.f32 %v1849, %v628
        %v1851 = vand.u32 2147483647, %v1850
        %v1852 = vadd.f32 %v1851, 1.0
        %v1853 = vrcp.pop %v1852
        %v1854 = vmul.f32 %v1850, %v1853
        %v1855 = vlaneseq
        %v1856 = vshrl.u32 %v1855, 7
        %v1857 = vsub.s32 6, %v1856
        %v1858 = vrot.slane %v1792, %v1857
        %v1859 = vmul.f32 %v358, %v1858
        %v1860 = vadd.f32 %v1859, %v639
        %v1861 = vand.u32 2147483647, %v1860
        %v1862 = vadd.f32 %v1861, 1.0
        %v1863 = vrcp.pop %v1862
        %v1864 = vmul.f32 %v1860, %v1863
        %v1865 = vlaneseq
        %v1866 = vshrl.u32 %v1865, 7
        %v1867 = vsub.s32 7, %v1866
        %v1868 = vrot.slane %v1792, %v1867
        %v1869 = vmul.f32 %v358, %v1868
        %v1870 = vadd.f32 %v1869, %v650
        %v1871 = vand.u32 2147483647, %v1870
        %v1872 = vadd.f32 %v1871, 1.0
        %v1873 = vrcp.pop %v1872
        %v1874 = vmul.f32 %v1870, %v1873
        %v1875 = vmul.f32 %v656, %v1804
        %v1876 = vadd.f32 %v658, %v1875
        %v1877 = vmul.f32 %v660, %v1814
        %v1878 = vadd.f32 %v1876, %v1877
        %v1879 = vmul.f32 %v663, %v1824
        %v1880 = vadd.f32 %v1878, %v1879
        %v1881 = vmul.f32 %v666, %v1834
        %v1882 = vadd.f32 %v1880, %v1881
        %v1883 = vmul.f32 %v669, %v1844
        %v1884 = vadd.f32 %v1882, %v1883
        %v1885 = vmul.f32 %v672, %v1854
        %v1886 = vadd.f32 %v1884, %v1885
        %v1887 = vmul.f32 %v675, %v1864
        %v1888 = vadd.f32 %v1886, %v1887
        %v1889 = vmul.f32 %v678, %v1874
        %v1890 = vadd.f32 %v1888, %v1889
        %v1891 = vand.u32 2147483647, %v1890
        %v1892 = vadd.f32 %v1891, 1.0
        %v1893 = vrcp.pop %v1892
        %v1894 = vmul.f32 %v1890, %v1893
        %v1895 = vmul.f32 %v685, %v1804
        %v1896 = vadd.f32 %v687, %v1895
        %v1897 = vmul.f32 %v689, %v1814
        %v1898 = vadd.f32 %v1896, %v1897
        %v1899 = vmul.f32 %v692, %v1824
        %v1900 = vadd.f32 %v1898, %v1899
        %v1901 = vmul.f32 %v695, %v1834
        %v1902 = vadd.f32 %v1900, %v1901
        %v1903 = vmul.f32 %v698, %v1844
        %v1904 = vadd.f32 %v1902, %v1903
        %v1905 = vmul.f32 %v701, %v1854
        %v1906 = vadd.f32 %v1904, %v1905
        %v1907 = vmul.f32 %v704, %v1864
        %v1908 = vadd.f32 %v1906, %v1907
        %v1909 = vmul.f32 %v707, %v1874
        %v1910 = vadd.f32 %v1908, %v1909
        %v1911 = vand.u32 2147483647, %v1910
        %v1912 = vadd.f32 %v1911, 1.0
        %v1913 = vrcp.pop %v1912
        %v1914 = vmul.f32 %v1910, %v1913
        %v1915 = vmul.f32 %v714, %v1804
        %v1916 = vadd.f32 %v716, %v1915
        %v1917 = vmul.f32 %v718, %v1814
        %v1918 = vadd.f32 %v1916, %v1917
        %v1919 = vmul.f32 %v721, %v1824
        %v1920 = vadd.f32 %v1918, %v1919
        %v1921 = vmul.f32 %v724, %v1834
        %v1922 = vadd.f32 %v1920, %v1921
        %v1923 = vmul.f32 %v727, %v1844
        %v1924 = vadd.f32 %v1922, %v1923
        %v1925 = vmul.f32 %v730, %v1854
        %v1926 = vadd.f32 %v1924, %v1925
        %v1927 = vmul.f32 %v733, %v1864
        %v1928 = vadd.f32 %v1926, %v1927
        %v1929 = vmul.f32 %v736, %v1874
        %v1930 = vadd.f32 %v1928, %v1929
        %v1931 = vand.u32 2147483647, %v1930
        %v1932 = vadd.f32 %v1931, 1.0
        %v1933 = vrcp.pop %v1932
        %v1934 = vmul.f32 %v1930, %v1933
        %v1935 = vmul.f32 %v743, %v1804
        %v1936 = vadd.f32 %v745, %v1935
        %v1937 = vmul.f32 %v747, %v1814
        %v1938 = vadd.f32 %v1936, %v1937
        %v1939 = vmul.f32 %v750, %v1824
        %v1940 = vadd.f32 %v1938, %v1939
        %v1941 = vmul.f32 %v753, %v1834
        %v1942 = vadd.f32 %v1940, %v1941
        %v1943 = vmul.f32 %v756, %v1844
        %v1944 = vadd.f32 %v1942, %v1943
        %v1945 = vmul.f32 %v759, %v1854
        %v1946 = vadd.f32 %v1944, %v1945
        %v1947 = vmul.f32 %v762, %v1864
        %v1948 = vadd.f32 %v1946, %v1947
        %v1949 = vmul.f32 %v765, %v1874
        %v1950 = vadd.f32 %v1948, %v1949
        %v1951 = vand.u32 2147483647, %v1950
        %v1952 = vadd.f32 %v1951, 1.0
        %v1953 = vrcp.pop %v1952
        %v1954 = vmul.f32 %v1950, %v1953
        %v1955 = vmul.f32 %v772, %v1894
        %v1956 = vadd.f32 %v774, %v1955
        %v1957 = vmul.f32 %v776, %v1914
        %v1958 = vadd.f32 %v1956, %v1957
        %v1959 = vmul.f32 %v779, %v1934
        %v1960 = vadd.f32 %v1958, %v1959
        %v1961 = vmul.f32 %v782, %v1954
        %v1962 = vadd.f32 %v1960, %v1961
        %v1963 = vsel %vm359, %v1962, -1e+30
        %v1964 = vsel %vm786, %v1963, -inf
        %1965 = vmax.xlane.f32.xlu0 %v1964
        %v1966 = vpop.xlane.xlu0 %1965
        %v1967 = vmax.f32 %v1966, 0.0
        %v1968 = vsub.f32 %v1962, %v1967
        %v1969 = vmul.f32 %v1968, 1.442695
        %v1970 = vpow.pop %v1969
        %v1971 = vsel %vm359, %v1970, 0.0
        %v1972 = vsel %vm786, %v1971, 0.0
        %1973 = vadd.xlane.f32.xlu0 %v1972
        %v1974 = vpop.xlane.xlu0 %1973
        %v1975 = vmul.f32 %v1971, %v358
        %v1977 = vsel %vm786, %v1975, 0
        %1979 = vmatprep.subr.mxu0 0.0
        %1980 = vmatpush1.msra.mxu0 0.0
        %1981 = vmatprep.subr.mxu0 0.0
        %1982 = vmatpush1.msra.mxu0 0.0
        %1983 = vmatprep.subr.mxu0 0.0
        %1984 = vmatpush1.msra.mxu0 0.0
        %1985 = vmatprep.subr.mxu0 0.0
        %1986 = vmatpush1.msra.mxu0 0.0
        %1987 = vmatprep.subr.mxu0 0.0
        %1988 = vmatpush1.msra.mxu0 0.0
        %1989 = vmatprep.subr.mxu0 0.0
        %1990 = vmatpush1.msra.mxu0 0.0
        %1991 = vmatprep.subr.mxu0 0.0
        %1992 = vmatpush1.msra.mxu0 0.0
        %1993 = vmatprep.subr.mxu0 0.0
        %1994 = vmatpush1.msra.mxu0 0.0
        %1995 = vmatprep.subr.mxu0 0.0
        %1996 = vmatpush1.msra.mxu0 0.0
        %1997 = vmatprep.subr.mxu0 0.0
        %1998 = vmatpush1.msra.mxu0 0.0
        %1999 = vmatprep.subr.mxu0 0.0
        %2000 = vmatpush1.msra.mxu0 0.0
        %2001 = vmatprep.subr.mxu0 0.0
        %2002 = vmatpush1.msra.mxu0 0.0
        %2003 = vmatprep.subr.mxu0 0.0
        %2004 = vmatpush1.msra.mxu0 0.0
        %2005 = vmatprep.subr.mxu0 0.0
        %2006 = vmatpush1.msra.mxu0 0.0
        %2007 = vmatprep.subr.mxu0 0.0
        %2008 = vmatpush1.msra.mxu0 0.0
        %2009 = vmatprep.subr.mxu0 0.0
        %2010 = vmatpush1.msra.mxu0 %v1719
        %2011 = vmatprep.subr.mxu0 0.0
        %2012 = vmatpush2.msra.mxu0 0.0
        %2013 = vmatprep.subr.mxu0 0.0
        %2014 = vmatpush2.msra.mxu0 0.0
        %2015 = vmatprep.subr.mxu0 0.0
        %2016 = vmatpush2.msra.mxu0 0.0
        %2017 = vmatprep.subr.mxu0 0.0
        %2018 = vmatpush2.msra.mxu0 0.0
        %2019 = vmatprep.subr.mxu0 0.0
        %2020 = vmatpush2.msra.mxu0 0.0
        %2021 = vmatprep.subr.mxu0 0.0
        %2022 = vmatpush2.msra.mxu0 0.0
        %2023 = vmatprep.subr.mxu0 0.0
        %2024 = vmatpush2.msra.mxu0 0.0
        %2025 = vmatprep.subr.mxu0 0.0
        %2026 = vmatpush2.msra.mxu0 0.0
        %2027 = vmatprep.subr.mxu0 0.0
        %2028 = vmatpush2.msra.mxu0 0.0
        %2029 = vmatprep.subr.mxu0 0.0
        %2030 = vmatpush2.msra.mxu0 0.0
        %2031 = vmatprep.subr.mxu0 0.0
        %2032 = vmatpush2.msra.mxu0 0.0
        %2033 = vmatprep.subr.mxu0 0.0
        %2034 = vmatpush2.msra.mxu0 0.0
        %2035 = vmatprep.subr.mxu0 0.0
        %2036 = vmatpush2.msra.mxu0 0.0
        %2037 = vmatprep.subr.mxu0 0.0
        %2038 = vmatpush2.msra.mxu0 0.0
        %2039 = vmatprep.subr.mxu0 0.0
        %2040 = vmatpush2.msra.mxu0 0.0
        %2041 = vmatprep.subr.mxu0 0.0
        %2042 = vmatpush2.msra.mxu0 0.0
        %2043 = vmatprep.mubr.f32.mxu0 0.0
        %2044 = vmatmul.mubr.f32.gmra.mxu0 %v1977
        %v2045 = vpop.f32.mrf.mxu0
        %v2046 = vadd.f32 0.0, %v2045
        %v2047 = vpop.f32.mrf.mxu0
        %2048 = vdwg.mxu0
        %v2049 = vmax.f32 %v1974, 1e-30
        %v2050 = vrcp.pop %v2049
        %v2051 = vmul.f32 %v2046, %v2050
        %v2053 = vsel %vm418, %v2051, 0
        %2055 = vmatprep.subr.mxu0 0.0
        %2056 = vmatpush1.msra.mxu0 0.0
        %2057 = vmatprep.subr.mxu0 0.0
        %2058 = vmatpush1.msra.mxu0 0.0
        %2059 = vmatprep.subr.mxu0 0.0
        %2060 = vmatpush1.msra.mxu0 0.0
        %2061 = vmatprep.subr.mxu0 0.0
        %2062 = vmatpush1.msra.mxu0 0.0
        %2063 = vmatprep.subr.mxu0 0.0
        %2064 = vmatpush1.msra.mxu0 0.0
        %2065 = vmatprep.subr.mxu0 0.0
        %2066 = vmatpush1.msra.mxu0 0.0
        %2067 = vmatprep.subr.mxu0 0.0
        %2068 = vmatpush1.msra.mxu0 0.0
        %2069 = vmatprep.subr.mxu0 0.0
        %2070 = vmatpush1.msra.mxu0 0.0
        %2071 = vmatprep.subr.mxu0 0.0
        %2072 = vmatpush1.msra.mxu0 0.0
        %2073 = vmatprep.subr.mxu0 0.0
        %2074 = vmatpush1.msra.mxu0 0.0
        %2075 = vmatprep.subr.mxu0 0.0
        %2076 = vmatpush1.msra.mxu0 0.0
        %2077 = vmatprep.subr.mxu0 0.0
        %2078 = vmatpush1.msra.mxu0 0.0
        %2079 = vmatprep.subr.mxu0 0.0
        %2080 = vmatpush1.msra.mxu0 0.0
        %2081 = vmatprep.subr.mxu0 0.0
        %2082 = vmatpush1.msra.mxu0 0.0
        %2083 = vmatprep.subr.mxu0 0.0
        %2084 = vmatpush1.msra.mxu0 %v362
        %2085 = vmatprep.subr.mxu0 0.0
        %2086 = vmatpush1.msra.mxu0 %v361
        %2087 = vmatprep.subr.mxu0 0.0
        %2088 = vmatpush2.msra.mxu0 0.0
        %2089 = vmatprep.subr.mxu0 0.0
        %2090 = vmatpush2.msra.mxu0 0.0
        %2091 = vmatprep.subr.mxu0 0.0
        %2092 = vmatpush2.msra.mxu0 0.0
        %2093 = vmatprep.subr.mxu0 0.0
        %2094 = vmatpush2.msra.mxu0 0.0
        %2095 = vmatprep.subr.mxu0 0.0
        %2096 = vmatpush2.msra.mxu0 0.0
        %2097 = vmatprep.subr.mxu0 0.0
        %2098 = vmatpush2.msra.mxu0 0.0
        %2099 = vmatprep.subr.mxu0 0.0
        %2100 = vmatpush2.msra.mxu0 0.0
        %2101 = vmatprep.subr.mxu0 0.0
        %2102 = vmatpush2.msra.mxu0 0.0
        %2103 = vmatprep.subr.mxu0 0.0
        %2104 = vmatpush2.msra.mxu0 0.0
        %2105 = vmatprep.subr.mxu0 0.0
        %2106 = vmatpush2.msra.mxu0 0.0
        %2107 = vmatprep.subr.mxu0 0.0
        %2108 = vmatpush2.msra.mxu0 0.0
        %2109 = vmatprep.subr.mxu0 0.0
        %2110 = vmatpush2.msra.mxu0 0.0
        %2111 = vmatprep.subr.mxu0 0.0
        %2112 = vmatpush2.msra.mxu0 0.0
        %2113 = vmatprep.subr.mxu0 0.0
        %2114 = vmatpush2.msra.mxu0 0.0
        %2115 = vmatprep.subr.mxu0 0.0
        %2116 = vmatpush2.msra.mxu0 0.0
        %2117 = vmatprep.subr.mxu0 0.0
        %2118 = vmatpush2.msra.mxu0 0.0
        %2119 = vmatprep.mubr.f32.mxu0 0.0
        %2120 = vmatmul.mubr.f32.gmra.mxu0 %v2053
        %v2121 = vpop.f32.mrf.mxu0
        %v2122 = vadd.f32 %v879, %v2121
        %v2123 = vpop.f32.mrf.mxu0
        %2124 = vdwg.mxu0
        %2125 = vmatprep.subr.mxu0 0.0
        %2126 = vmatpush1.msra.mxu0 0.0
        %2127 = vmatprep.subr.mxu0 0.0
        %2128 = vmatpush1.msra.mxu0 0.0
        %2129 = vmatprep.subr.mxu0 0.0
        %2130 = vmatpush1.msra.mxu0 0.0
        %2131 = vmatprep.subr.mxu0 0.0
        %2132 = vmatpush1.msra.mxu0 0.0
        %2133 = vmatprep.subr.mxu0 0.0
        %2134 = vmatpush1.msra.mxu0 0.0
        %2135 = vmatprep.subr.mxu0 0.0
        %2136 = vmatpush1.msra.mxu0 0.0
        %2137 = vmatprep.subr.mxu0 0.0
        %2138 = vmatpush1.msra.mxu0 0.0
        %2139 = vmatprep.subr.mxu0 0.0
        %2140 = vmatpush1.msra.mxu0 0.0
        %2141 = vmatprep.subr.mxu0 0.0
        %2142 = vmatpush1.msra.mxu0 0.0
        %2143 = vmatprep.subr.mxu0 0.0
        %2144 = vmatpush1.msra.mxu0 0.0
        %2145 = vmatprep.subr.mxu0 0.0
        %2146 = vmatpush1.msra.mxu0 0.0
        %2147 = vmatprep.subr.mxu0 0.0
        %2148 = vmatpush1.msra.mxu0 0.0
        %2149 = vmatprep.subr.mxu0 0.0
        %2150 = vmatpush1.msra.mxu0 0.0
        %2151 = vmatprep.subr.mxu0 0.0
        %2152 = vmatpush1.msra.mxu0 0.0
        %2153 = vmatprep.subr.mxu0 0.0
        %2154 = vmatpush1.msra.mxu0 %v364
        %2155 = vmatprep.subr.mxu0 0.0
        %2156 = vmatpush1.msra.mxu0 %v363
        %2157 = vmatprep.subr.mxu0 0.0
        %2158 = vmatpush2.msra.mxu0 0.0
        %2159 = vmatprep.subr.mxu0 0.0
        %2160 = vmatpush2.msra.mxu0 0.0
        %2161 = vmatprep.subr.mxu0 0.0
        %2162 = vmatpush2.msra.mxu0 0.0
        %2163 = vmatprep.subr.mxu0 0.0
        %2164 = vmatpush2.msra.mxu0 0.0
        %2165 = vmatprep.subr.mxu0 0.0
        %2166 = vmatpush2.msra.mxu0 0.0
        %2167 = vmatprep.subr.mxu0 0.0
        %2168 = vmatpush2.msra.mxu0 0.0
        %2169 = vmatprep.subr.mxu0 0.0
        %2170 = vmatpush2.msra.mxu0 0.0
        %2171 = vmatprep.subr.mxu0 0.0
        %2172 = vmatpush2.msra.mxu0 0.0
        %2173 = vmatprep.subr.mxu0 0.0
        %2174 = vmatpush2.msra.mxu0 0.0
        %2175 = vmatprep.subr.mxu0 0.0
        %2176 = vmatpush2.msra.mxu0 0.0
        %2177 = vmatprep.subr.mxu0 0.0
        %2178 = vmatpush2.msra.mxu0 0.0
        %2179 = vmatprep.subr.mxu0 0.0
        %2180 = vmatpush2.msra.mxu0 0.0
        %2181 = vmatprep.subr.mxu0 0.0
        %2182 = vmatpush2.msra.mxu0 0.0
        %2183 = vmatprep.subr.mxu0 0.0
        %2184 = vmatpush2.msra.mxu0 0.0
        %2185 = vmatprep.subr.mxu0 0.0
        %2186 = vmatpush2.msra.mxu0 0.0
        %2187 = vmatprep.subr.mxu0 0.0
        %2188 = vmatpush2.msra.mxu0 0.0
        %2189 = vmatprep.mubr.f32.mxu0 0.0
        %2190 = vmatmul.mubr.f32.gmra.mxu0 %v1650
        %v2191 = vpop.f32.mrf.mxu0
        %v2192 = vadd.f32 %v958, %v2191
        %v2193 = vpop.f32.mrf.mxu0
        %2194 = vdwg.mxu0
        %v2195 = vadd.f32 %v2122, %v2192
        %v2196 = vxor.u32 %v2195, 2147483648
        %v2197 = vmul.f32 %v2196, 1.442695
        %v2198 = vpow.pop %v2197
        %v2199 = vadd.f32 %v2198, 1.0
        %v2200 = vrcp.pop %v2199
        %v2201 = vmul.f32 1.0, %v2200
        %2203 = vrot.lane.b32.xlu0 %v2192, 96
        %v2204 = vpop.permute.xlu0 %2203
        %v2206 = vmul.f32 %v2201, %v2204
        %2208 = vrot.lane.b32.xlu0 %v2206, 32
        %v2209 = vpop.permute.xlu0 %2208
        %v2211 = vadd.f32 %v2122, %v2209
        %v2212 = vtanh.pop %v2211
        %v2213 = vsub.f32 1.0, %v2201
        %2215 = vrot.lane.b32.xlu0 %v2212, 112
        %v2216 = vpop.permute.xlu0 %2215
        %v2218 = vmul.f32 %v2213, %v2216
        %v2219 = vmul.f32 %v2201, %v1640
        %v2220 = vadd.f32 %v2218, %v2219
        %2222 = vrot.lane.b32.xlu0 %v2220, 112
        %v2223 = vpop.permute.xlu0 %2222
        %2224 = vrot.lane.b32.xlu0 %v416, 80
        %v2225 = vpop.permute.xlu0 %2224
        %2226 = vrot.lane.b32.xlu0 %v417, 80
        %v2227 = vpop.permute.xlu0 %2226
        %v2230 = vsel %vm418, %v2223, 0
        %2232 = vmatprep.subr.mxu0 0.0
        %2233 = vmatpush1.msra.mxu0 0.0
        %2234 = vmatprep.subr.mxu0 0.0
        %2235 = vmatpush1.msra.mxu0 0.0
        %2236 = vmatprep.subr.mxu0 0.0
        %2237 = vmatpush1.msra.mxu0 0.0
        %2238 = vmatprep.subr.mxu0 0.0
        %2239 = vmatpush1.msra.mxu0 0.0
        %2240 = vmatprep.subr.mxu0 0.0
        %2241 = vmatpush1.msra.mxu0 0.0
        %2242 = vmatprep.subr.mxu0 0.0
        %2243 = vmatpush1.msra.mxu0 0.0
        %2244 = vmatprep.subr.mxu0 0.0
        %2245 = vmatpush1.msra.mxu0 0.0
        %2246 = vmatprep.subr.mxu0 0.0
        %2247 = vmatpush1.msra.mxu0 0.0
        %2248 = vmatprep.subr.mxu0 0.0
        %2249 = vmatpush1.msra.mxu0 0.0
        %2250 = vmatprep.subr.mxu0 0.0
        %2251 = vmatpush1.msra.mxu0 0.0
        %2252 = vmatprep.subr.mxu0 0.0
        %2253 = vmatpush1.msra.mxu0 0.0
        %2254 = vmatprep.subr.mxu0 0.0
        %2255 = vmatpush1.msra.mxu0 0.0
        %2256 = vmatprep.subr.mxu0 0.0
        %2257 = vmatpush1.msra.mxu0 0.0
        %2258 = vmatprep.subr.mxu0 0.0
        %2259 = vmatpush1.msra.mxu0 0.0
        %2260 = vmatprep.subr.mxu0 0.0
        %2261 = vmatpush1.msra.mxu0 %v2227
        %2262 = vmatprep.subr.mxu0 0.0
        %2263 = vmatpush1.msra.mxu0 %v2225
        %2264 = vmatprep.subr.mxu0 0.0
        %2265 = vmatpush2.msra.mxu0 0.0
        %2266 = vmatprep.subr.mxu0 0.0
        %2267 = vmatpush2.msra.mxu0 0.0
        %2268 = vmatprep.subr.mxu0 0.0
        %2269 = vmatpush2.msra.mxu0 0.0
        %2270 = vmatprep.subr.mxu0 0.0
        %2271 = vmatpush2.msra.mxu0 0.0
        %2272 = vmatprep.subr.mxu0 0.0
        %2273 = vmatpush2.msra.mxu0 0.0
        %2274 = vmatprep.subr.mxu0 0.0
        %2275 = vmatpush2.msra.mxu0 0.0
        %2276 = vmatprep.subr.mxu0 0.0
        %2277 = vmatpush2.msra.mxu0 0.0
        %2278 = vmatprep.subr.mxu0 0.0
        %2279 = vmatpush2.msra.mxu0 0.0
        %2280 = vmatprep.subr.mxu0 0.0
        %2281 = vmatpush2.msra.mxu0 0.0
        %2282 = vmatprep.subr.mxu0 0.0
        %2283 = vmatpush2.msra.mxu0 0.0
        %2284 = vmatprep.subr.mxu0 0.0
        %2285 = vmatpush2.msra.mxu0 0.0
        %2286 = vmatprep.subr.mxu0 0.0
        %2287 = vmatpush2.msra.mxu0 0.0
        %2288 = vmatprep.subr.mxu0 0.0
        %2289 = vmatpush2.msra.mxu0 0.0
        %2290 = vmatprep.subr.mxu0 0.0
        %2291 = vmatpush2.msra.mxu0 0.0
        %2292 = vmatprep.subr.mxu0 0.0
        %2293 = vmatpush2.msra.mxu0 0.0
        %2294 = vmatprep.subr.mxu0 0.0
        %2295 = vmatpush2.msra.mxu0 0.0
        %2296 = vmatprep.mubr.f32.mxu0 0.0
        %2297 = vmatmul.mubr.f32.gmra.mxu0 %v2230
        %v2298 = vpop.f32.mrf.mxu0
        %v2299 = vadd.f32 0.0, %v2298
        %v2300 = vpop.f32.mrf.mxu0
        %2301 = vdwg.mxu0
        %v2303 = vsel %vm418, %v2299, 0
        %2305 = vmatprep.subr.mxu0 0.0
        %2306 = vmatpush1.xpose.msra.mxu0 0.0
        %2307 = vmatprep.subr.mxu0 0.0
        %2308 = vmatpush1.xpose.msra.mxu0 0.0
        %2309 = vmatprep.subr.mxu0 0.0
        %2310 = vmatpush1.xpose.msra.mxu0 0.0
        %2311 = vmatprep.subr.mxu0 0.0
        %2312 = vmatpush1.xpose.msra.mxu0 0.0
        %2313 = vmatprep.subr.mxu0 0.0
        %2314 = vmatpush1.xpose.msra.mxu0 0.0
        %2315 = vmatprep.subr.mxu0 0.0
        %2316 = vmatpush1.xpose.msra.mxu0 0.0
        %2317 = vmatprep.subr.mxu0 0.0
        %2318 = vmatpush1.xpose.msra.mxu0 0.0
        %2319 = vmatprep.subr.mxu0 0.0
        %2320 = vmatpush1.xpose.msra.mxu0 0.0
        %2321 = vmatprep.subr.mxu0 0.0
        %2322 = vmatpush1.xpose.msra.mxu0 0.0
        %2323 = vmatprep.subr.mxu0 0.0
        %2324 = vmatpush1.xpose.msra.mxu0 0.0
        %2325 = vmatprep.subr.mxu0 0.0
        %2326 = vmatpush1.xpose.msra.mxu0 0.0
        %2327 = vmatprep.subr.mxu0 0.0
        %2328 = vmatpush1.xpose.msra.mxu0 0.0
        %2329 = vmatprep.subr.mxu0 0.0
        %2330 = vmatpush1.xpose.msra.mxu0 0.0
        %2331 = vmatprep.subr.mxu0 0.0
        %2332 = vmatpush1.xpose.msra.mxu0 0.0
        %2333 = vmatprep.subr.mxu0 0.0
        %2334 = vmatpush1.xpose.msra.mxu0 0.0
        %2335 = vmatprep.subr.mxu0 0.0
        %2336 = vmatpush1.xpose.msra.mxu0 %v2303
        %2337 = vmatprep.subr.mxu0 0.0
        %2338 = vmatpush2.xpose.msra.mxu0 0.0
        %2339 = vmatprep.subr.mxu0 0.0
        %2340 = vmatpush2.xpose.msra.mxu0 0.0
        %2341 = vmatprep.subr.mxu0 0.0
        %2342 = vmatpush2.xpose.msra.mxu0 0.0
        %2343 = vmatprep.subr.mxu0 0.0
        %2344 = vmatpush2.xpose.msra.mxu0 0.0
        %2345 = vmatprep.subr.mxu0 0.0
        %2346 = vmatpush2.xpose.msra.mxu0 0.0
        %2347 = vmatprep.subr.mxu0 0.0
        %2348 = vmatpush2.xpose.msra.mxu0 0.0
        %2349 = vmatprep.subr.mxu0 0.0
        %2350 = vmatpush2.xpose.msra.mxu0 0.0
        %2351 = vmatprep.subr.mxu0 0.0
        %2352 = vmatpush2.xpose.msra.mxu0 0.0
        %2353 = vmatprep.subr.mxu0 0.0
        %2354 = vmatpush2.xpose.msra.mxu0 0.0
        %2355 = vmatprep.subr.mxu0 0.0
        %2356 = vmatpush2.xpose.msra.mxu0 0.0
        %2357 = vmatprep.subr.mxu0 0.0
        %2358 = vmatpush2.xpose.msra.mxu0 0.0
        %2359 = vmatprep.subr.mxu0 0.0
        %2360 = vmatpush2.xpose.msra.mxu0 0.0
        %2361 = vmatprep.subr.mxu0 0.0
        %2362 = vmatpush2.xpose.msra.mxu0 0.0
        %2363 = vmatprep.subr.mxu0 0.0
        %2364 = vmatpush2.xpose.msra.mxu0 0.0
        %2365 = vmatprep.subr.mxu0 0.0
        %2366 = vmatpush2.xpose.msra.mxu0 0.0
        %2367 = vmatprep.subr.mxu0 0.0
        %2368 = vmatpush2.xpose.msra.mxu0 0.0
        %2369 = vmatprep.mubr.f32.mxu0 0.0
        %2370 = vmatmul.mubr.f32.gmra.mxu0 %v493
        %v2371 = vpop.f32.mrf.mxu0
        %v2372 = vadd.f32 0.0, %v2371
        %v2373 = vpop.f32.mrf.mxu0
        %2374 = vdwg.mxu0
        %v2375 = vlaneseq
        %v2376 = vshrl.u32 %v2375, 7
        %v2377 = vsub.s32 0, %v2376
        %v2378 = vrot.slane %v2372, %v2377
        %v2379 = vmul.f32 %v358, %v2378
        %v2380 = vadd.f32 %v2379, %v573
        %v2381 = vand.u32 2147483647, %v2380
        %v2382 = vadd.f32 %v2381, 1.0
        %v2383 = vrcp.pop %v2382
        %v2384 = vmul.f32 %v2380, %v2383
        %v2385 = vlaneseq
        %v2386 = vshrl.u32 %v2385, 7
        %v2387 = vsub.s32 1, %v2386
        %v2388 = vrot.slane %v2372, %v2387
        %v2389 = vmul.f32 %v358, %v2388
        %v2390 = vadd.f32 %v2389, %v584
        %v2391 = vand.u32 2147483647, %v2390
        %v2392 = vadd.f32 %v2391, 1.0
        %v2393 = vrcp.pop %v2392
        %v2394 = vmul.f32 %v2390, %v2393
        %v2395 = vlaneseq
        %v2396 = vshrl.u32 %v2395, 7
        %v2397 = vsub.s32 2, %v2396
        %v2398 = vrot.slane %v2372, %v2397
        %v2399 = vmul.f32 %v358, %v2398
        %v2400 = vadd.f32 %v2399, %v595
        %v2401 = vand.u32 2147483647, %v2400
        %v2402 = vadd.f32 %v2401, 1.0
        %v2403 = vrcp.pop %v2402
        %v2404 = vmul.f32 %v2400, %v2403
        %v2405 = vlaneseq
        %v2406 = vshrl.u32 %v2405, 7
        %v2407 = vsub.s32 3, %v2406
        %v2408 = vrot.slane %v2372, %v2407
        %v2409 = vmul.f32 %v358, %v2408
        %v2410 = vadd.f32 %v2409, %v606
        %v2411 = vand.u32 2147483647, %v2410
        %v2412 = vadd.f32 %v2411, 1.0
        %v2413 = vrcp.pop %v2412
        %v2414 = vmul.f32 %v2410, %v2413
        %v2415 = vlaneseq
        %v2416 = vshrl.u32 %v2415, 7
        %v2417 = vsub.s32 4, %v2416
        %v2418 = vrot.slane %v2372, %v2417
        %v2419 = vmul.f32 %v358, %v2418
        %v2420 = vadd.f32 %v2419, %v617
        %v2421 = vand.u32 2147483647, %v2420
        %v2422 = vadd.f32 %v2421, 1.0
        %v2423 = vrcp.pop %v2422
        %v2424 = vmul.f32 %v2420, %v2423
        %v2425 = vlaneseq
        %v2426 = vshrl.u32 %v2425, 7
        %v2427 = vsub.s32 5, %v2426
        %v2428 = vrot.slane %v2372, %v2427
        %v2429 = vmul.f32 %v358, %v2428
        %v2430 = vadd.f32 %v2429, %v628
        %v2431 = vand.u32 2147483647, %v2430
        %v2432 = vadd.f32 %v2431, 1.0
        %v2433 = vrcp.pop %v2432
        %v2434 = vmul.f32 %v2430, %v2433
        %v2435 = vlaneseq
        %v2436 = vshrl.u32 %v2435, 7
        %v2437 = vsub.s32 6, %v2436
        %v2438 = vrot.slane %v2372, %v2437
        %v2439 = vmul.f32 %v358, %v2438
        %v2440 = vadd.f32 %v2439, %v639
        %v2441 = vand.u32 2147483647, %v2440
        %v2442 = vadd.f32 %v2441, 1.0
        %v2443 = vrcp.pop %v2442
        %v2444 = vmul.f32 %v2440, %v2443
        %v2445 = vlaneseq
        %v2446 = vshrl.u32 %v2445, 7
        %v2447 = vsub.s32 7, %v2446
        %v2448 = vrot.slane %v2372, %v2447
        %v2449 = vmul.f32 %v358, %v2448
        %v2450 = vadd.f32 %v2449, %v650
        %v2451 = vand.u32 2147483647, %v2450
        %v2452 = vadd.f32 %v2451, 1.0
        %v2453 = vrcp.pop %v2452
        %v2454 = vmul.f32 %v2450, %v2453
        %v2455 = vmul.f32 %v656, %v2384
        %v2456 = vadd.f32 %v658, %v2455
        %v2457 = vmul.f32 %v660, %v2394
        %v2458 = vadd.f32 %v2456, %v2457
        %v2459 = vmul.f32 %v663, %v2404
        %v2460 = vadd.f32 %v2458, %v2459
        %v2461 = vmul.f32 %v666, %v2414
        %v2462 = vadd.f32 %v2460, %v2461
        %v2463 = vmul.f32 %v669, %v2424
        %v2464 = vadd.f32 %v2462, %v2463
        %v2465 = vmul.f32 %v672, %v2434
        %v2466 = vadd.f32 %v2464, %v2465
        %v2467 = vmul.f32 %v675, %v2444
        %v2468 = vadd.f32 %v2466, %v2467
        %v2469 = vmul.f32 %v678, %v2454
        %v2470 = vadd.f32 %v2468, %v2469
        %v2471 = vand.u32 2147483647, %v2470
        %v2472 = vadd.f32 %v2471, 1.0
        %v2473 = vrcp.pop %v2472
        %v2474 = vmul.f32 %v2470, %v2473
        %v2475 = vmul.f32 %v685, %v2384
        %v2476 = vadd.f32 %v687, %v2475
        %v2477 = vmul.f32 %v689, %v2394
        %v2478 = vadd.f32 %v2476, %v2477
        %v2479 = vmul.f32 %v692, %v2404
        %v2480 = vadd.f32 %v2478, %v2479
        %v2481 = vmul.f32 %v695, %v2414
        %v2482 = vadd.f32 %v2480, %v2481
        %v2483 = vmul.f32 %v698, %v2424
        %v2484 = vadd.f32 %v2482, %v2483
        %v2485 = vmul.f32 %v701, %v2434
        %v2486 = vadd.f32 %v2484, %v2485
        %v2487 = vmul.f32 %v704, %v2444
        %v2488 = vadd.f32 %v2486, %v2487
        %v2489 = vmul.f32 %v707, %v2454
        %v2490 = vadd.f32 %v2488, %v2489
        %v2491 = vand.u32 2147483647, %v2490
        %v2492 = vadd.f32 %v2491, 1.0
        %v2493 = vrcp.pop %v2492
        %v2494 = vmul.f32 %v2490, %v2493
        %v2495 = vmul.f32 %v714, %v2384
        %v2496 = vadd.f32 %v716, %v2495
        %v2497 = vmul.f32 %v718, %v2394
        %v2498 = vadd.f32 %v2496, %v2497
        %v2499 = vmul.f32 %v721, %v2404
        %v2500 = vadd.f32 %v2498, %v2499
        %v2501 = vmul.f32 %v724, %v2414
        %v2502 = vadd.f32 %v2500, %v2501
        %v2503 = vmul.f32 %v727, %v2424
        %v2504 = vadd.f32 %v2502, %v2503
        %v2505 = vmul.f32 %v730, %v2434
        %v2506 = vadd.f32 %v2504, %v2505
        %v2507 = vmul.f32 %v733, %v2444
        %v2508 = vadd.f32 %v2506, %v2507
        %v2509 = vmul.f32 %v736, %v2454
        %v2510 = vadd.f32 %v2508, %v2509
        %v2511 = vand.u32 2147483647, %v2510
        %v2512 = vadd.f32 %v2511, 1.0
        %v2513 = vrcp.pop %v2512
        %v2514 = vmul.f32 %v2510, %v2513
        %v2515 = vmul.f32 %v743, %v2384
        %v2516 = vadd.f32 %v745, %v2515
        %v2517 = vmul.f32 %v747, %v2394
        %v2518 = vadd.f32 %v2516, %v2517
        %v2519 = vmul.f32 %v750, %v2404
        %v2520 = vadd.f32 %v2518, %v2519
        %v2521 = vmul.f32 %v753, %v2414
        %v2522 = vadd.f32 %v2520, %v2521
        %v2523 = vmul.f32 %v756, %v2424
        %v2524 = vadd.f32 %v2522, %v2523
        %v2525 = vmul.f32 %v759, %v2434
        %v2526 = vadd.f32 %v2524, %v2525
        %v2527 = vmul.f32 %v762, %v2444
        %v2528 = vadd.f32 %v2526, %v2527
        %v2529 = vmul.f32 %v765, %v2454
        %v2530 = vadd.f32 %v2528, %v2529
        %v2531 = vand.u32 2147483647, %v2530
        %v2532 = vadd.f32 %v2531, 1.0
        %v2533 = vrcp.pop %v2532
        %v2534 = vmul.f32 %v2530, %v2533
        %v2535 = vmul.f32 %v772, %v2474
        %v2536 = vadd.f32 %v774, %v2535
        %v2537 = vmul.f32 %v776, %v2494
        %v2538 = vadd.f32 %v2536, %v2537
        %v2539 = vmul.f32 %v779, %v2514
        %v2540 = vadd.f32 %v2538, %v2539
        %v2541 = vmul.f32 %v782, %v2534
        %v2542 = vadd.f32 %v2540, %v2541
        %v2543 = vsel %vm359, %v2542, -1e+30
        %v2544 = vsel %vm786, %v2543, -inf
        %2545 = vmax.xlane.f32.xlu0 %v2544
        %v2546 = vpop.xlane.xlu0 %2545
        %v2547 = vmax.f32 %v2546, 0.0
        %v2548 = vsub.f32 %v2542, %v2547
        %v2549 = vmul.f32 %v2548, 1.442695
        %v2550 = vpow.pop %v2549
        %v2551 = vsel %vm359, %v2550, 0.0
        %v2552 = vsel %vm786, %v2551, 0.0
        %2553 = vadd.xlane.f32.xlu0 %v2552
        %v2554 = vpop.xlane.xlu0 %2553
        %v2555 = vmul.f32 %v2551, %v358
        %v2557 = vsel %vm786, %v2555, 0
        %2559 = vmatprep.subr.mxu0 0.0
        %2560 = vmatpush1.msra.mxu0 0.0
        %2561 = vmatprep.subr.mxu0 0.0
        %2562 = vmatpush1.msra.mxu0 0.0
        %2563 = vmatprep.subr.mxu0 0.0
        %2564 = vmatpush1.msra.mxu0 0.0
        %2565 = vmatprep.subr.mxu0 0.0
        %2566 = vmatpush1.msra.mxu0 0.0
        %2567 = vmatprep.subr.mxu0 0.0
        %2568 = vmatpush1.msra.mxu0 0.0
        %2569 = vmatprep.subr.mxu0 0.0
        %2570 = vmatpush1.msra.mxu0 0.0
        %2571 = vmatprep.subr.mxu0 0.0
        %2572 = vmatpush1.msra.mxu0 0.0
        %2573 = vmatprep.subr.mxu0 0.0
        %2574 = vmatpush1.msra.mxu0 0.0
        %2575 = vmatprep.subr.mxu0 0.0
        %2576 = vmatpush1.msra.mxu0 0.0
        %2577 = vmatprep.subr.mxu0 0.0
        %2578 = vmatpush1.msra.mxu0 0.0
        %2579 = vmatprep.subr.mxu0 0.0
        %2580 = vmatpush1.msra.mxu0 0.0
        %2581 = vmatprep.subr.mxu0 0.0
        %2582 = vmatpush1.msra.mxu0 0.0
        %2583 = vmatprep.subr.mxu0 0.0
        %2584 = vmatpush1.msra.mxu0 0.0
        %2585 = vmatprep.subr.mxu0 0.0
        %2586 = vmatpush1.msra.mxu0 0.0
        %2587 = vmatprep.subr.mxu0 0.0
        %2588 = vmatpush1.msra.mxu0 0.0
        %2589 = vmatprep.subr.mxu0 0.0
        %2590 = vmatpush1.msra.mxu0 %v2299
        %2591 = vmatprep.subr.mxu0 0.0
        %2592 = vmatpush2.msra.mxu0 0.0
        %2593 = vmatprep.subr.mxu0 0.0
        %2594 = vmatpush2.msra.mxu0 0.0
        %2595 = vmatprep.subr.mxu0 0.0
        %2596 = vmatpush2.msra.mxu0 0.0
        %2597 = vmatprep.subr.mxu0 0.0
        %2598 = vmatpush2.msra.mxu0 0.0
        %2599 = vmatprep.subr.mxu0 0.0
        %2600 = vmatpush2.msra.mxu0 0.0
        %2601 = vmatprep.subr.mxu0 0.0
        %2602 = vmatpush2.msra.mxu0 0.0
        %2603 = vmatprep.subr.mxu0 0.0
        %2604 = vmatpush2.msra.mxu0 0.0
        %2605 = vmatprep.subr.mxu0 0.0
        %2606 = vmatpush2.msra.mxu0 0.0
        %2607 = vmatprep.subr.mxu0 0.0
        %2608 = vmatpush2.msra.mxu0 0.0
        %2609 = vmatprep.subr.mxu0 0.0
        %2610 = vmatpush2.msra.mxu0 0.0
        %2611 = vmatprep.subr.mxu0 0.0
        %2612 = vmatpush2.msra.mxu0 0.0
        %2613 = vmatprep.subr.mxu0 0.0
        %2614 = vmatpush2.msra.mxu0 0.0
        %2615 = vmatprep.subr.mxu0 0.0
        %2616 = vmatpush2.msra.mxu0 0.0
        %2617 = vmatprep.subr.mxu0 0.0
        %2618 = vmatpush2.msra.mxu0 0.0
        %2619 = vmatprep.subr.mxu0 0.0
        %2620 = vmatpush2.msra.mxu0 0.0
        %2621 = vmatprep.subr.mxu0 0.0
        %2622 = vmatpush2.msra.mxu0 0.0
        %2623 = vmatprep.mubr.f32.mxu0 0.0
        %2624 = vmatmul.mubr.f32.gmra.mxu0 %v2557
        %v2625 = vpop.f32.mrf.mxu0
        %v2626 = vadd.f32 0.0, %v2625
        %v2627 = vpop.f32.mrf.mxu0
        %2628 = vdwg.mxu0
        %v2629 = vmax.f32 %v2554, 1e-30
        %v2630 = vrcp.pop %v2629
        %v2631 = vmul.f32 %v2626, %v2630
        %v2633 = vsel %vm418, %v2631, 0
        %2635 = vmatprep.subr.mxu0 0.0
        %2636 = vmatpush1.msra.mxu0 0.0
        %2637 = vmatprep.subr.mxu0 0.0
        %2638 = vmatpush1.msra.mxu0 0.0
        %2639 = vmatprep.subr.mxu0 0.0
        %2640 = vmatpush1.msra.mxu0 0.0
        %2641 = vmatprep.subr.mxu0 0.0
        %2642 = vmatpush1.msra.mxu0 0.0
        %2643 = vmatprep.subr.mxu0 0.0
        %2644 = vmatpush1.msra.mxu0 0.0
        %2645 = vmatprep.subr.mxu0 0.0
        %2646 = vmatpush1.msra.mxu0 0.0
        %2647 = vmatprep.subr.mxu0 0.0
        %2648 = vmatpush1.msra.mxu0 0.0
        %2649 = vmatprep.subr.mxu0 0.0
        %2650 = vmatpush1.msra.mxu0 0.0
        %2651 = vmatprep.subr.mxu0 0.0
        %2652 = vmatpush1.msra.mxu0 0.0
        %2653 = vmatprep.subr.mxu0 0.0
        %2654 = vmatpush1.msra.mxu0 0.0
        %2655 = vmatprep.subr.mxu0 0.0
        %2656 = vmatpush1.msra.mxu0 0.0
        %2657 = vmatprep.subr.mxu0 0.0
        %2658 = vmatpush1.msra.mxu0 0.0
        %2659 = vmatprep.subr.mxu0 0.0
        %2660 = vmatpush1.msra.mxu0 0.0
        %2661 = vmatprep.subr.mxu0 0.0
        %2662 = vmatpush1.msra.mxu0 0.0
        %2663 = vmatprep.subr.mxu0 0.0
        %2664 = vmatpush1.msra.mxu0 %v362
        %2665 = vmatprep.subr.mxu0 0.0
        %2666 = vmatpush1.msra.mxu0 %v361
        %2667 = vmatprep.subr.mxu0 0.0
        %2668 = vmatpush2.msra.mxu0 0.0
        %2669 = vmatprep.subr.mxu0 0.0
        %2670 = vmatpush2.msra.mxu0 0.0
        %2671 = vmatprep.subr.mxu0 0.0
        %2672 = vmatpush2.msra.mxu0 0.0
        %2673 = vmatprep.subr.mxu0 0.0
        %2674 = vmatpush2.msra.mxu0 0.0
        %2675 = vmatprep.subr.mxu0 0.0
        %2676 = vmatpush2.msra.mxu0 0.0
        %2677 = vmatprep.subr.mxu0 0.0
        %2678 = vmatpush2.msra.mxu0 0.0
        %2679 = vmatprep.subr.mxu0 0.0
        %2680 = vmatpush2.msra.mxu0 0.0
        %2681 = vmatprep.subr.mxu0 0.0
        %2682 = vmatpush2.msra.mxu0 0.0
        %2683 = vmatprep.subr.mxu0 0.0
        %2684 = vmatpush2.msra.mxu0 0.0
        %2685 = vmatprep.subr.mxu0 0.0
        %2686 = vmatpush2.msra.mxu0 0.0
        %2687 = vmatprep.subr.mxu0 0.0
        %2688 = vmatpush2.msra.mxu0 0.0
        %2689 = vmatprep.subr.mxu0 0.0
        %2690 = vmatpush2.msra.mxu0 0.0
        %2691 = vmatprep.subr.mxu0 0.0
        %2692 = vmatpush2.msra.mxu0 0.0
        %2693 = vmatprep.subr.mxu0 0.0
        %2694 = vmatpush2.msra.mxu0 0.0
        %2695 = vmatprep.subr.mxu0 0.0
        %2696 = vmatpush2.msra.mxu0 0.0
        %2697 = vmatprep.subr.mxu0 0.0
        %2698 = vmatpush2.msra.mxu0 0.0
        %2699 = vmatprep.mubr.f32.mxu0 0.0
        %2700 = vmatmul.mubr.f32.gmra.mxu0 %v2633
        %v2701 = vpop.f32.mrf.mxu0
        %v2702 = vadd.f32 %v879, %v2701
        %v2703 = vpop.f32.mrf.mxu0
        %2704 = vdwg.mxu0
        %2705 = vmatprep.subr.mxu0 0.0
        %2706 = vmatpush1.msra.mxu0 0.0
        %2707 = vmatprep.subr.mxu0 0.0
        %2708 = vmatpush1.msra.mxu0 0.0
        %2709 = vmatprep.subr.mxu0 0.0
        %2710 = vmatpush1.msra.mxu0 0.0
        %2711 = vmatprep.subr.mxu0 0.0
        %2712 = vmatpush1.msra.mxu0 0.0
        %2713 = vmatprep.subr.mxu0 0.0
        %2714 = vmatpush1.msra.mxu0 0.0
        %2715 = vmatprep.subr.mxu0 0.0
        %2716 = vmatpush1.msra.mxu0 0.0
        %2717 = vmatprep.subr.mxu0 0.0
        %2718 = vmatpush1.msra.mxu0 0.0
        %2719 = vmatprep.subr.mxu0 0.0
        %2720 = vmatpush1.msra.mxu0 0.0
        %2721 = vmatprep.subr.mxu0 0.0
        %2722 = vmatpush1.msra.mxu0 0.0
        %2723 = vmatprep.subr.mxu0 0.0
        %2724 = vmatpush1.msra.mxu0 0.0
        %2725 = vmatprep.subr.mxu0 0.0
        %2726 = vmatpush1.msra.mxu0 0.0
        %2727 = vmatprep.subr.mxu0 0.0
        %2728 = vmatpush1.msra.mxu0 0.0
        %2729 = vmatprep.subr.mxu0 0.0
        %2730 = vmatpush1.msra.mxu0 0.0
        %2731 = vmatprep.subr.mxu0 0.0
        %2732 = vmatpush1.msra.mxu0 0.0
        %2733 = vmatprep.subr.mxu0 0.0
        %2734 = vmatpush1.msra.mxu0 %v364
        %2735 = vmatprep.subr.mxu0 0.0
        %2736 = vmatpush1.msra.mxu0 %v363
        %2737 = vmatprep.subr.mxu0 0.0
        %2738 = vmatpush2.msra.mxu0 0.0
        %2739 = vmatprep.subr.mxu0 0.0
        %2740 = vmatpush2.msra.mxu0 0.0
        %2741 = vmatprep.subr.mxu0 0.0
        %2742 = vmatpush2.msra.mxu0 0.0
        %2743 = vmatprep.subr.mxu0 0.0
        %2744 = vmatpush2.msra.mxu0 0.0
        %2745 = vmatprep.subr.mxu0 0.0
        %2746 = vmatpush2.msra.mxu0 0.0
        %2747 = vmatprep.subr.mxu0 0.0
        %2748 = vmatpush2.msra.mxu0 0.0
        %2749 = vmatprep.subr.mxu0 0.0
        %2750 = vmatpush2.msra.mxu0 0.0
        %2751 = vmatprep.subr.mxu0 0.0
        %2752 = vmatpush2.msra.mxu0 0.0
        %2753 = vmatprep.subr.mxu0 0.0
        %2754 = vmatpush2.msra.mxu0 0.0
        %2755 = vmatprep.subr.mxu0 0.0
        %2756 = vmatpush2.msra.mxu0 0.0
        %2757 = vmatprep.subr.mxu0 0.0
        %2758 = vmatpush2.msra.mxu0 0.0
        %2759 = vmatprep.subr.mxu0 0.0
        %2760 = vmatpush2.msra.mxu0 0.0
        %2761 = vmatprep.subr.mxu0 0.0
        %2762 = vmatpush2.msra.mxu0 0.0
        %2763 = vmatprep.subr.mxu0 0.0
        %2764 = vmatpush2.msra.mxu0 0.0
        %2765 = vmatprep.subr.mxu0 0.0
        %2766 = vmatpush2.msra.mxu0 0.0
        %2767 = vmatprep.subr.mxu0 0.0
        %2768 = vmatpush2.msra.mxu0 0.0
        %2769 = vmatprep.mubr.f32.mxu0 0.0
        %2770 = vmatmul.mubr.f32.gmra.mxu0 %v2230
        %v2771 = vpop.f32.mrf.mxu0
        %v2772 = vadd.f32 %v958, %v2771
        %v2773 = vpop.f32.mrf.mxu0
        %2774 = vdwg.mxu0
        %v2775 = vadd.f32 %v2702, %v2772
        %v2776 = vxor.u32 %v2775, 2147483648
        %v2777 = vmul.f32 %v2776, 1.442695
        %v2778 = vpow.pop %v2777
        %v2779 = vadd.f32 %v2778, 1.0
        %v2780 = vrcp.pop %v2779
        %v2781 = vmul.f32 1.0, %v2780
        %2783 = vrot.lane.b32.xlu0 %v2772, 96
        %v2784 = vpop.permute.xlu0 %2783
        %v2786 = vmul.f32 %v2781, %v2784
        %2788 = vrot.lane.b32.xlu0 %v2786, 32
        %v2789 = vpop.permute.xlu0 %2788
        %v2791 = vadd.f32 %v2702, %v2789
        %v2792 = vtanh.pop %v2791
        %v2793 = vsub.f32 1.0, %v2781
        %2795 = vrot.lane.b32.xlu0 %v2792, 112
        %v2796 = vpop.permute.xlu0 %2795
        %v2798 = vmul.f32 %v2793, %v2796
        %v2799 = vmul.f32 %v2781, %v2220
        %v2800 = vadd.f32 %v2798, %v2799
        %2802 = vrot.lane.b32.xlu0 %v2800, 112
        %v2803 = vpop.permute.xlu0 %2802
        %v2805 = vsel %vm418, %v2803, %v1055
        %v2806 = vld [vmem:[#allocation7 + $0x20] sm:$0xff]
        %v2807 = vld [vmem:[#allocation7 + $0x70] sm:$0xff]
        %v2808 = vld [vmem:[#allocation7 + $0xc0] sm:$0xff]
        %v2809 = vld [vmem:[#allocation7 + $0x110] sm:$0xff]
        %v2810 = vld [vmem:[#allocation8 + $0x2] sm:$0x1]
        %v2812 = vlaneseq
        %v2813 = vshrl.u32 %v2812, 7
        %v2814 = vsub.s32 0, %v2813
        %v2815 = vrot.slane %v2810, %v2814
        %vm2817 = vcmask 261120
        %v2819 = vsel %vm2817, %v2805, 0
        %2821 = vmatprep.subr.mxu0 0.0
        %2822 = vmatpush1.msra.mxu0 0.0
        %2823 = vmatprep.subr.mxu0 0.0
        %2824 = vmatpush1.msra.mxu0 0.0
        %2825 = vmatprep.subr.mxu0 0.0
        %2826 = vmatpush1.msra.mxu0 0.0
        %2827 = vmatprep.subr.mxu0 0.0
        %2828 = vmatpush1.msra.mxu0 0.0
        %2829 = vmatprep.subr.mxu0 0.0
        %2830 = vmatpush1.msra.mxu0 0.0
        %2831 = vmatprep.subr.mxu0 0.0
        %2832 = vmatpush1.msra.mxu0 0.0
        %2833 = vmatprep.subr.mxu0 0.0
        %2834 = vmatpush1.msra.mxu0 0.0
        %2835 = vmatprep.subr.mxu0 0.0
        %2836 = vmatpush1.msra.mxu0 0.0
        %2837 = vmatprep.subr.mxu0 0.0
        %2838 = vmatpush1.msra.mxu0 0.0
        %2839 = vmatprep.subr.mxu0 0.0
        %2840 = vmatpush1.msra.mxu0 0.0
        %2841 = vmatprep.subr.mxu0 0.0
        %2842 = vmatpush1.msra.mxu0 0.0
        %2843 = vmatprep.subr.mxu0 0.0
        %2844 = vmatpush1.msra.mxu0 0.0
        %2845 = vmatprep.subr.mxu0 0.0
        %2846 = vmatpush1.msra.mxu0 %v2809
        %2847 = vmatprep.subr.mxu0 0.0
        %2848 = vmatpush1.msra.mxu0 %v2808
        %2849 = vmatprep.subr.mxu0 0.0
        %2850 = vmatpush1.msra.mxu0 %v2807
        %2851 = vmatprep.subr.mxu0 0.0
        %2852 = vmatpush1.msra.mxu0 %v2806
        %2853 = vmatprep.subr.mxu0 0.0
        %2854 = vmatpush2.msra.mxu0 0.0
        %2855 = vmatprep.subr.mxu0 0.0
        %2856 = vmatpush2.msra.mxu0 0.0
        %2857 = vmatprep.subr.mxu0 0.0
        %2858 = vmatpush2.msra.mxu0 0.0
        %2859 = vmatprep.subr.mxu0 0.0
        %2860 = vmatpush2.msra.mxu0 0.0
        %2861 = vmatprep.subr.mxu0 0.0
        %2862 = vmatpush2.msra.mxu0 0.0
        %2863 = vmatprep.subr.mxu0 0.0
        %2864 = vmatpush2.msra.mxu0 0.0
        %2865 = vmatprep.subr.mxu0 0.0
        %2866 = vmatpush2.msra.mxu0 0.0
        %2867 = vmatprep.subr.mxu0 0.0
        %2868 = vmatpush2.msra.mxu0 0.0
        %2869 = vmatprep.subr.mxu0 0.0
        %2870 = vmatpush2.msra.mxu0 0.0
        %2871 = vmatprep.subr.mxu0 0.0
        %2872 = vmatpush2.msra.mxu0 0.0
        %2873 = vmatprep.subr.mxu0 0.0
        %2874 = vmatpush2.msra.mxu0 0.0
        %2875 = vmatprep.subr.mxu0 0.0
        %2876 = vmatpush2.msra.mxu0 0.0
        %2877 = vmatprep.subr.mxu0 0.0
        %2878 = vmatpush2.msra.mxu0 0.0
        %2879 = vmatprep.subr.mxu0 0.0
        %2880 = vmatpush2.msra.mxu0 0.0
        %2881 = vmatprep.subr.mxu0 0.0
        %2882 = vmatpush2.msra.mxu0 0.0
        %2883 = vmatprep.subr.mxu0 0.0
        %2884 = vmatpush2.msra.mxu0 0.0
        %2885 = vmatprep.mubr.f32.mxu0 0.0
        %2886 = vmatmul.mubr.f32.gmra.mxu0 %v2819
        %v2887 = vpop.f32.mrf.mxu0
        %v2888 = vadd.f32 %v2815, %v2887
        %v2889 = vpop.f32.mrf.mxu0
        %2890 = vdwg.mxu0
        %v2891 = vand.u32 2147483647, %v2888
        %v2892 = vadd.f32 %v2891, 1.0
        %v2893 = vrcp.pop %v2892
        %v2894 = vmul.f32 %v2888, %v2893
        %v2895 = vld [vmem:[#allocation7 + $0x28] sm:$0xff]
        %v2896 = vld [vmem:[#allocation7 + $0x78] sm:$0xff]
        %v2897 = vld [vmem:[#allocation8 + $0x3] sm:$0x1]
        %v2899 = vlaneseq
        %v2900 = vshrl.u32 %v2899, 7
        %v2901 = vsub.s32 0, %v2900
        %v2902 = vrot.slane %v2897, %v2901
        %v2905 = vsel %vm418, %v2894, 0
        %2907 = vmatprep.subr.mxu0 0.0
        %2908 = vmatpush1.msra.mxu0 0.0
        %2909 = vmatprep.subr.mxu0 0.0
        %2910 = vmatpush1.msra.mxu0 0.0
        %2911 = vmatprep.subr.mxu0 0.0
        %2912 = vmatpush1.msra.mxu0 0.0
        %2913 = vmatprep.subr.mxu0 0.0
        %2914 = vmatpush1.msra.mxu0 0.0
        %2915 = vmatprep.subr.mxu0 0.0
        %2916 = vmatpush1.msra.mxu0 0.0
        %2917 = vmatprep.subr.mxu0 0.0
        %2918 = vmatpush1.msra.mxu0 0.0
        %2919 = vmatprep.subr.mxu0 0.0
        %2920 = vmatpush1.msra.mxu0 0.0
        %2921 = vmatprep.subr.mxu0 0.0
        %2922 = vmatpush1.msra.mxu0 0.0
        %2923 = vmatprep.subr.mxu0 0.0
        %2924 = vmatpush1.msra.mxu0 0.0
        %2925 = vmatprep.subr.mxu0 0.0
        %2926 = vmatpush1.msra.mxu0 0.0
        %2927 = vmatprep.subr.mxu0 0.0
        %2928 = vmatpush1.msra.mxu0 0.0
        %2929 = vmatprep.subr.mxu0 0.0
        %2930 = vmatpush1.msra.mxu0 0.0
        %2931 = vmatprep.subr.mxu0 0.0
        %2932 = vmatpush1.msra.mxu0 0.0
        %2933 = vmatprep.subr.mxu0 0.0
        %2934 = vmatpush1.msra.mxu0 0.0
        %2935 = vmatprep.subr.mxu0 0.0
        %2936 = vmatpush1.msra.mxu0 %v2896
        %2937 = vmatprep.subr.mxu0 0.0
        %2938 = vmatpush1.msra.mxu0 %v2895
        %2939 = vmatprep.subr.mxu0 0.0
        %2940 = vmatpush2.msra.mxu0 0.0
        %2941 = vmatprep.subr.mxu0 0.0
        %2942 = vmatpush2.msra.mxu0 0.0
        %2943 = vmatprep.subr.mxu0 0.0
        %2944 = vmatpush2.msra.mxu0 0.0
        %2945 = vmatprep.subr.mxu0 0.0
        %2946 = vmatpush2.msra.mxu0 0.0
        %2947 = vmatprep.subr.mxu0 0.0
        %2948 = vmatpush2.msra.mxu0 0.0
        %2949 = vmatprep.subr.mxu0 0.0
        %2950 = vmatpush2.msra.mxu0 0.0
        %2951 = vmatprep.subr.mxu0 0.0
        %2952 = vmatpush2.msra.mxu0 0.0
        %2953 = vmatprep.subr.mxu0 0.0
        %2954 = vmatpush2.msra.mxu0 0.0
        %2955 = vmatprep.subr.mxu0 0.0
        %2956 = vmatpush2.msra.mxu0 0.0
        %2957 = vmatprep.subr.mxu0 0.0
        %2958 = vmatpush2.msra.mxu0 0.0
        %2959 = vmatprep.subr.mxu0 0.0
        %2960 = vmatpush2.msra.mxu0 0.0
        %2961 = vmatprep.subr.mxu0 0.0
        %2962 = vmatpush2.msra.mxu0 0.0
        %2963 = vmatprep.subr.mxu0 0.0
        %2964 = vmatpush2.msra.mxu0 0.0
        %2965 = vmatprep.subr.mxu0 0.0
        %2966 = vmatpush2.msra.mxu0 0.0
        %2967 = vmatprep.subr.mxu0 0.0
        %2968 = vmatpush2.msra.mxu0 0.0
        %2969 = vmatprep.subr.mxu0 0.0
        %2970 = vmatpush2.msra.mxu0 0.0
        %2971 = vmatprep.mubr.f32.mxu0 0.0
        %2972 = vmatmul.mubr.f32.gmra.mxu0 %v2905
        %v2973 = vpop.f32.mrf.mxu0
        %v2974 = vadd.f32 %v2902, %v2973
        %v2975 = vpop.f32.mrf.mxu0
        %2976 = vdwg.mxu0
        %v2977 = vand.u32 2147483647, %v2974
        %v2978 = vadd.f32 %v2977, 1.0
        %v2979 = vrcp.pop %v2978
        %v2980 = vmul.f32 %v2974, %v2979
        %v2981 = vsel %vm2817, %v2980, -inf
        %2982 = vmax.xlane.f32.xlu0 %v2981
        %v2983 = vpop.xlane.xlu0 %2982
        %v2984 = vsub.f32 %v2980, %v2983
        %v2985 = vmul.f32 %v2984, 1.442695
        %v2986 = vpow.pop %v2985
        %v2987 = vsel %vm2817, %v2986, 0.0
        %2988 = vadd.xlane.f32.xlu0 %v2987
        %v2989 = vpop.xlane.xlu0 %2988
        %v2990 = vrcp.pop %v2989
        %v2991 = vmul.f32 %v2986, %v2990
        %v2992 = vld [vmem:[#allocation7 + $0x30] sm:$0xff]
        %v2993 = vld [vmem:[#allocation7 + $0x80] sm:$0xff]
        %v2994 = vld [vmem:[#allocation8 + $0x4] sm:$0x1]
        %v2996 = vlaneseq
        %v2997 = vshrl.u32 %v2996, 7
        %v2998 = vsub.s32 0, %v2997
        %v2999 = vrot.slane %v2994, %v2998
        %3001 = vmatprep.subr.mxu0 0.0
        %3002 = vmatpush1.msra.mxu0 0.0
        %3003 = vmatprep.subr.mxu0 0.0
        %3004 = vmatpush1.msra.mxu0 0.0
        %3005 = vmatprep.subr.mxu0 0.0
        %3006 = vmatpush1.msra.mxu0 0.0
        %3007 = vmatprep.subr.mxu0 0.0
        %3008 = vmatpush1.msra.mxu0 0.0
        %3009 = vmatprep.subr.mxu0 0.0
        %3010 = vmatpush1.msra.mxu0 0.0
        %3011 = vmatprep.subr.mxu0 0.0
        %3012 = vmatpush1.msra.mxu0 0.0
        %3013 = vmatprep.subr.mxu0 0.0
        %3014 = vmatpush1.msra.mxu0 0.0
        %3015 = vmatprep.subr.mxu0 0.0
        %3016 = vmatpush1.msra.mxu0 0.0
        %3017 = vmatprep.subr.mxu0 0.0
        %3018 = vmatpush1.msra.mxu0 0.0
        %3019 = vmatprep.subr.mxu0 0.0
        %3020 = vmatpush1.msra.mxu0 0.0
        %3021 = vmatprep.subr.mxu0 0.0
        %3022 = vmatpush1.msra.mxu0 0.0
        %3023 = vmatprep.subr.mxu0 0.0
        %3024 = vmatpush1.msra.mxu0 0.0
        %3025 = vmatprep.subr.mxu0 0.0
        %3026 = vmatpush1.msra.mxu0 0.0
        %3027 = vmatprep.subr.mxu0 0.0
        %3028 = vmatpush1.msra.mxu0 0.0
        %3029 = vmatprep.subr.mxu0 0.0
        %3030 = vmatpush1.msra.mxu0 %v2993
        %3031 = vmatprep.subr.mxu0 0.0
        %3032 = vmatpush1.msra.mxu0 %v2992
        %3033 = vmatprep.subr.mxu0 0.0
        %3034 = vmatpush2.msra.mxu0 0.0
        %3035 = vmatprep.subr.mxu0 0.0
        %3036 = vmatpush2.msra.mxu0 0.0
        %3037 = vmatprep.subr.mxu0 0.0
        %3038 = vmatpush2.msra.mxu0 0.0
        %3039 = vmatprep.subr.mxu0 0.0
        %3040 = vmatpush2.msra.mxu0 0.0
        %3041 = vmatprep.subr.mxu0 0.0
        %3042 = vmatpush2.msra.mxu0 0.0
        %3043 = vmatprep.subr.mxu0 0.0
        %3044 = vmatpush2.msra.mxu0 0.0
        %3045 = vmatprep.subr.mxu0 0.0
        %3046 = vmatpush2.msra.mxu0 0.0
        %3047 = vmatprep.subr.mxu0 0.0
        %3048 = vmatpush2.msra.mxu0 0.0
        %3049 = vmatprep.subr.mxu0 0.0
        %3050 = vmatpush2.msra.mxu0 0.0
        %3051 = vmatprep.subr.mxu0 0.0
        %3052 = vmatpush2.msra.mxu0 0.0
        %3053 = vmatprep.subr.mxu0 0.0
        %3054 = vmatpush2.msra.mxu0 0.0
        %3055 = vmatprep.subr.mxu0 0.0
        %3056 = vmatpush2.msra.mxu0 0.0
        %3057 = vmatprep.subr.mxu0 0.0
        %3058 = vmatpush2.msra.mxu0 0.0
        %3059 = vmatprep.subr.mxu0 0.0
        %3060 = vmatpush2.msra.mxu0 0.0
        %3061 = vmatprep.subr.mxu0 0.0
        %3062 = vmatpush2.msra.mxu0 0.0
        %3063 = vmatprep.subr.mxu0 0.0
        %3064 = vmatpush2.msra.mxu0 0.0
        %3065 = vmatprep.mubr.f32.mxu0 0.0
        %3066 = vmatmul.mubr.f32.gmra.mxu0 %v420
        %v3067 = vpop.f32.mrf.mxu0
        %v3068 = vadd.f32 %v2999, %v3067
        %v3069 = vpop.f32.mrf.mxu0
        %3070 = vdwg.mxu0
        %v3071 = vand.u32 2147483647, %v3068
        %v3072 = vadd.f32 %v3071, 1.0
        %v3073 = vrcp.pop %v3072
        %v3074 = vmul.f32 %v3068, %v3073
        %v3075 = vmul.f32 %v2991, %v3074
        %v3076 = vld [vmem:[%s353] sm:$0x1]
        %v3078 = vsel %vm786, %v3076, 0
        %3080 = vmatprep.subr.mxu0 0.0
        %3081 = vmatpush1.msra.mxu0 0.0
        %3082 = vmatprep.subr.mxu0 0.0
        %3083 = vmatpush1.msra.mxu0 0.0
        %3084 = vmatprep.subr.mxu0 0.0
        %3085 = vmatpush1.msra.mxu0 0.0
        %3086 = vmatprep.subr.mxu0 0.0
        %3087 = vmatpush1.msra.mxu0 0.0
        %3088 = vmatprep.subr.mxu0 0.0
        %3089 = vmatpush1.msra.mxu0 0.0
        %3090 = vmatprep.subr.mxu0 0.0
        %3091 = vmatpush1.msra.mxu0 0.0
        %3092 = vmatprep.subr.mxu0 0.0
        %3093 = vmatpush1.msra.mxu0 0.0
        %3094 = vmatprep.subr.mxu0 0.0
        %3095 = vmatpush1.msra.mxu0 0.0
        %3096 = vmatprep.subr.mxu0 0.0
        %3097 = vmatpush1.msra.mxu0 0.0
        %3098 = vmatprep.subr.mxu0 0.0
        %3099 = vmatpush1.msra.mxu0 0.0
        %3100 = vmatprep.subr.mxu0 0.0
        %3101 = vmatpush1.msra.mxu0 0.0
        %3102 = vmatprep.subr.mxu0 0.0
        %3103 = vmatpush1.msra.mxu0 0.0
        %3104 = vmatprep.subr.mxu0 0.0
        %3105 = vmatpush1.msra.mxu0 0.0
        %3106 = vmatprep.subr.mxu0 0.0
        %3107 = vmatpush1.msra.mxu0 0.0
        %3108 = vmatprep.subr.mxu0 0.0
        %3109 = vmatpush1.msra.mxu0 0.0
        %3110 = vmatprep.subr.mxu0 0.0
        %3111 = vmatpush1.msra.mxu0 %v3075
        %3112 = vmatprep.subr.mxu0 0.0
        %3113 = vmatpush2.msra.mxu0 0.0
        %3114 = vmatprep.subr.mxu0 0.0
        %3115 = vmatpush2.msra.mxu0 0.0
        %3116 = vmatprep.subr.mxu0 0.0
        %3117 = vmatpush2.msra.mxu0 0.0
        %3118 = vmatprep.subr.mxu0 0.0
        %3119 = vmatpush2.msra.mxu0 0.0
        %3120 = vmatprep.subr.mxu0 0.0
        %3121 = vmatpush2.msra.mxu0 0.0
        %3122 = vmatprep.subr.mxu0 0.0
        %3123 = vmatpush2.msra.mxu0 0.0
        %3124 = vmatprep.subr.mxu0 0.0
        %3125 = vmatpush2.msra.mxu0 0.0
        %3126 = vmatprep.subr.mxu0 0.0
        %3127 = vmatpush2.msra.mxu0 0.0
        %3128 = vmatprep.subr.mxu0 0.0
        %3129 = vmatpush2.msra.mxu0 0.0
        %3130 = vmatprep.subr.mxu0 0.0
        %3131 = vmatpush2.msra.mxu0 0.0
        %3132 = vmatprep.subr.mxu0 0.0
        %3133 = vmatpush2.msra.mxu0 0.0
        %3134 = vmatprep.subr.mxu0 0.0
        %3135 = vmatpush2.msra.mxu0 0.0
        %3136 = vmatprep.subr.mxu0 0.0
        %3137 = vmatpush2.msra.mxu0 0.0
        %3138 = vmatprep.subr.mxu0 0.0
        %3139 = vmatpush2.msra.mxu0 0.0
        %3140 = vmatprep.subr.mxu0 0.0
        %3141 = vmatpush2.msra.mxu0 0.0
        %3142 = vmatprep.subr.mxu0 0.0
        %3143 = vmatpush2.msra.mxu0 0.0
        %3144 = vmatprep.mubr.f32.mxu0 0.0
        %3145 = vmatmul.mubr.f32.gmra.mxu0 %v3078
        %v3146 = vpop.f32.mrf.mxu0
        %v3147 = vadd.f32 0.0, %v3146
        %v3148 = vpop.f32.mrf.mxu0
        %3149 = vdwg.mxu0
        %v3150 = vld [vmem:[#allocation7 + $0x38] sm:$0xff]
        %v3151 = vld [vmem:[#allocation7 + $0x88] sm:$0xff]
        %v3152 = vld [vmem:[#allocation7 + $0xd8] sm:$0xff]
        %v3153 = vld [vmem:[#allocation7 + $0x128] sm:$0xff]
        %v3154 = vld [vmem:[#allocation8 + $0x5] sm:$0x1]
        %v3156 = vsel %vm2817, %v3147, 0
        %3158 = vmatprep.subr.mxu0 0.0
        %3159 = vmatpush1.msra.mxu0 0.0
        %3160 = vmatprep.subr.mxu0 0.0
        %3161 = vmatpush1.msra.mxu0 0.0
        %3162 = vmatprep.subr.mxu0 0.0
        %3163 = vmatpush1.msra.mxu0 0.0
        %3164 = vmatprep.subr.mxu0 0.0
        %3165 = vmatpush1.msra.mxu0 0.0
        %3166 = vmatprep.subr.mxu0 0.0
        %3167 = vmatpush1.msra.mxu0 0.0
        %3168 = vmatprep.subr.mxu0 0.0
        %3169 = vmatpush1.msra.mxu0 0.0
        %3170 = vmatprep.subr.mxu0 0.0
        %3171 = vmatpush1.msra.mxu0 0.0
        %3172 = vmatprep.subr.mxu0 0.0
        %3173 = vmatpush1.msra.mxu0 0.0
        %3174 = vmatprep.subr.mxu0 0.0
        %3175 = vmatpush1.msra.mxu0 0.0
        %3176 = vmatprep.subr.mxu0 0.0
        %3177 = vmatpush1.msra.mxu0 0.0
        %3178 = vmatprep.subr.mxu0 0.0
        %3179 = vmatpush1.msra.mxu0 0.0
        %3180 = vmatprep.subr.mxu0 0.0
        %3181 = vmatpush1.msra.mxu0 0.0
        %3182 = vmatprep.subr.mxu0 0.0
        %3183 = vmatpush1.msra.mxu0 %v3153
        %3184 = vmatprep.subr.mxu0 0.0
        %3185 = vmatpush1.msra.mxu0 %v3152
        %3186 = vmatprep.subr.mxu0 0.0
        %3187 = vmatpush1.msra.mxu0 %v3151
        %3188 = vmatprep.subr.mxu0 0.0
        %3189 = vmatpush1.msra.mxu0 %v3150
        %3190 = vmatprep.subr.mxu0 0.0
        %3191 = vmatpush2.msra.mxu0 0.0
        %3192 = vmatprep.subr.mxu0 0.0
        %3193 = vmatpush2.msra.mxu0 0.0
        %3194 = vmatprep.subr.mxu0 0.0
        %3195 = vmatpush2.msra.mxu0 0.0
        %3196 = vmatprep.subr.mxu0 0.0
        %3197 = vmatpush2.msra.mxu0 0.0
        %3198 = vmatprep.subr.mxu0 0.0
        %3199 = vmatpush2.msra.mxu0 0.0
        %3200 = vmatprep.subr.mxu0 0.0
        %3201 = vmatpush2.msra.mxu0 0.0
        %3202 = vmatprep.subr.mxu0 0.0
        %3203 = vmatpush2.msra.mxu0 0.0
        %3204 = vmatprep.subr.mxu0 0.0
        %3205 = vmatpush2.msra.mxu0 0.0
        %3206 = vmatprep.subr.mxu0 0.0
        %3207 = vmatpush2.msra.mxu0 0.0
        %3208 = vmatprep.subr.mxu0 0.0
        %3209 = vmatpush2.msra.mxu0 0.0
        %3210 = vmatprep.subr.mxu0 0.0
        %3211 = vmatpush2.msra.mxu0 0.0
        %3212 = vmatprep.subr.mxu0 0.0
        %3213 = vmatpush2.msra.mxu0 0.0
        %3214 = vmatprep.subr.mxu0 0.0
        %3215 = vmatpush2.msra.mxu0 0.0
        %3216 = vmatprep.subr.mxu0 0.0
        %3217 = vmatpush2.msra.mxu0 0.0
        %3218 = vmatprep.subr.mxu0 0.0
        %3219 = vmatpush2.msra.mxu0 0.0
        %3220 = vmatprep.subr.mxu0 0.0
        %3221 = vmatpush2.msra.mxu0 0.0
        %3222 = vmatprep.mubr.f32.mxu0 0.0
        %3223 = vmatmul.mubr.f32.gmra.mxu0 %v3156
        %v3224 = vpop.f32.mrf.mxu0
        %v3225 = vadd.f32 %v3154, %v3224
        %v3226 = vpop.f32.mrf.mxu0
        %3227 = vdwg.mxu0
        %v3228 = vmax.f32 %v3225, 0.0
        %v3229 = vld [vmem:[#allocation7 + $0x40] sm:$0xff]
        %v3230 = vld [vmem:[#allocation7 + $0x90] sm:$0xff]
        %v3231 = vld [vmem:[#allocation7 + $0xe0] sm:$0x1f]
        %v3232 = vld [vmem:[#allocation8 + $0x6] sm:$0x1]
        %vm3233 = vcmask 171008
        %v3235 = vsel %vm3233, %v3228, 0
        %vm3237 = vcmask 1044480
        %v3239 = vsel %vm3237, %v3231, 0
        %3241 = vmatprep.subr.mxu0 0.0
        %3242 = vmatpush1.msra.mxu0 0.0
        %3243 = vmatprep.subr.mxu0 0.0
        %3244 = vmatpush1.msra.mxu0 0.0
        %3245 = vmatprep.subr.mxu0 0.0
        %3246 = vmatpush1.msra.mxu0 0.0
        %3247 = vmatprep.subr.mxu0 0.0
        %3248 = vmatpush1.msra.mxu0 0.0
        %3249 = vmatprep.subr.mxu0 0.0
        %3250 = vmatpush1.msra.mxu0 0.0
        %3251 = vmatprep.subr.mxu0 0.0
        %3252 = vmatpush1.msra.mxu0 0.0
        %3253 = vmatprep.subr.mxu0 0.0
        %3254 = vmatpush1.msra.mxu0 0.0
        %3255 = vmatprep.subr.mxu0 0.0
        %3256 = vmatpush1.msra.mxu0 0.0
        %3257 = vmatprep.subr.mxu0 0.0
        %3258 = vmatpush1.msra.mxu0 0.0
        %3259 = vmatprep.subr.mxu0 0.0
        %3260 = vmatpush1.msra.mxu0 0.0
        %3261 = vmatprep.subr.mxu0 0.0
        %3262 = vmatpush1.msra.mxu0 0.0
        %3263 = vmatprep.subr.mxu0 0.0
        %3264 = vmatpush1.msra.mxu0 0.0
        %3265 = vmatprep.subr.mxu0 0.0
        %3266 = vmatpush1.msra.mxu0 0.0
        %3267 = vmatprep.subr.mxu0 0.0
        %3268 = vmatpush1.msra.mxu0 %v3239
        %3269 = vmatprep.subr.mxu0 0.0
        %3270 = vmatpush1.msra.mxu0 %v3230
        %3271 = vmatprep.subr.mxu0 0.0
        %3272 = vmatpush1.msra.mxu0 %v3229
        %3273 = vmatprep.subr.mxu0 0.0
        %3274 = vmatpush2.msra.mxu0 0.0
        %3275 = vmatprep.subr.mxu0 0.0
        %3276 = vmatpush2.msra.mxu0 0.0
        %3277 = vmatprep.subr.mxu0 0.0
        %3278 = vmatpush2.msra.mxu0 0.0
        %3279 = vmatprep.subr.mxu0 0.0
        %3280 = vmatpush2.msra.mxu0 0.0
        %3281 = vmatprep.subr.mxu0 0.0
        %3282 = vmatpush2.msra.mxu0 0.0
        %3283 = vmatprep.subr.mxu0 0.0
        %3284 = vmatpush2.msra.mxu0 0.0
        %3285 = vmatprep.subr.mxu0 0.0
        %3286 = vmatpush2.msra.mxu0 0.0
        %3287 = vmatprep.subr.mxu0 0.0
        %3288 = vmatpush2.msra.mxu0 0.0
        %3289 = vmatprep.subr.mxu0 0.0
        %3290 = vmatpush2.msra.mxu0 0.0
        %3291 = vmatprep.subr.mxu0 0.0
        %3292 = vmatpush2.msra.mxu0 0.0
        %3293 = vmatprep.subr.mxu0 0.0
        %3294 = vmatpush2.msra.mxu0 0.0
        %3295 = vmatprep.subr.mxu0 0.0
        %3296 = vmatpush2.msra.mxu0 0.0
        %3297 = vmatprep.subr.mxu0 0.0
        %3298 = vmatpush2.msra.mxu0 0.0
        %3299 = vmatprep.subr.mxu0 0.0
        %3300 = vmatpush2.msra.mxu0 0.0
        %3301 = vmatprep.subr.mxu0 0.0
        %3302 = vmatpush2.msra.mxu0 0.0
        %3303 = vmatprep.subr.mxu0 0.0
        %3304 = vmatpush2.msra.mxu0 0.0
        %3305 = vmatprep.mubr.f32.mxu0 0.0
        %3306 = vmatmul.mubr.f32.gmra.mxu0 %v3235
        %v3307 = vpop.f32.mrf.mxu0
        %v3308 = vadd.f32 %v3232, %v3307
        %v3309 = vpop.f32.mrf.mxu0
        %3310 = vdwg.mxu0
        %v3311 = vmax.f32 %v3308, 0.0
        %v3312 = vld [vmem:[#allocation7 + $0x48] sm:$0xff]
        %v3313 = vld [vmem:[#allocation7 + $0x98] sm:$0xff]
        %v3314 = vld [vmem:[#allocation8 + $0x7] sm:$0x1]
        %v3316 = vsel %vm418, %v3311, 0
        %3318 = vmatprep.subr.mxu0 0.0
        %3319 = vmatpush1.msra.mxu0 0.0
        %3320 = vmatprep.subr.mxu0 0.0
        %3321 = vmatpush1.msra.mxu0 0.0
        %3322 = vmatprep.subr.mxu0 0.0
        %3323 = vmatpush1.msra.mxu0 0.0
        %3324 = vmatprep.subr.mxu0 0.0
        %3325 = vmatpush1.msra.mxu0 0.0
        %3326 = vmatprep.subr.mxu0 0.0
        %3327 = vmatpush1.msra.mxu0 0.0
        %3328 = vmatprep.subr.mxu0 0.0
        %3329 = vmatpush1.msra.mxu0 0.0
        %3330 = vmatprep.subr.mxu0 0.0
        %3331 = vmatpush1.msra.mxu0 0.0
        %3332 = vmatprep.subr.mxu0 0.0
        %3333 = vmatpush1.msra.mxu0 0.0
        %3334 = vmatprep.subr.mxu0 0.0
        %3335 = vmatpush1.msra.mxu0 0.0
        %3336 = vmatprep.subr.mxu0 0.0
        %3337 = vmatpush1.msra.mxu0 0.0
        %3338 = vmatprep.subr.mxu0 0.0
        %3339 = vmatpush1.msra.mxu0 0.0
        %3340 = vmatprep.subr.mxu0 0.0
        %3341 = vmatpush1.msra.mxu0 0.0
        %3342 = vmatprep.subr.mxu0 0.0
        %3343 = vmatpush1.msra.mxu0 0.0
        %3344 = vmatprep.subr.mxu0 0.0
        %3345 = vmatpush1.msra.mxu0 0.0
        %3346 = vmatprep.subr.mxu0 0.0
        %3347 = vmatpush1.msra.mxu0 %v3313
        %3348 = vmatprep.subr.mxu0 0.0
        %3349 = vmatpush1.msra.mxu0 %v3312
        %3350 = vmatprep.subr.mxu0 0.0
        %3351 = vmatpush2.msra.mxu0 0.0
        %3352 = vmatprep.subr.mxu0 0.0
        %3353 = vmatpush2.msra.mxu0 0.0
        %3354 = vmatprep.subr.mxu0 0.0
        %3355 = vmatpush2.msra.mxu0 0.0
        %3356 = vmatprep.subr.mxu0 0.0
        %3357 = vmatpush2.msra.mxu0 0.0
        %3358 = vmatprep.subr.mxu0 0.0
        %3359 = vmatpush2.msra.mxu0 0.0
        %3360 = vmatprep.subr.mxu0 0.0
        %3361 = vmatpush2.msra.mxu0 0.0
        %3362 = vmatprep.subr.mxu0 0.0
        %3363 = vmatpush2.msra.mxu0 0.0
        %3364 = vmatprep.subr.mxu0 0.0
        %3365 = vmatpush2.msra.mxu0 0.0
        %3366 = vmatprep.subr.mxu0 0.0
        %3367 = vmatpush2.msra.mxu0 0.0
        %3368 = vmatprep.subr.mxu0 0.0
        %3369 = vmatpush2.msra.mxu0 0.0
        %3370 = vmatprep.subr.mxu0 0.0
        %3371 = vmatpush2.msra.mxu0 0.0
        %3372 = vmatprep.subr.mxu0 0.0
        %3373 = vmatpush2.msra.mxu0 0.0
        %3374 = vmatprep.subr.mxu0 0.0
        %3375 = vmatpush2.msra.mxu0 0.0
        %3376 = vmatprep.subr.mxu0 0.0
        %3377 = vmatpush2.msra.mxu0 0.0
        %3378 = vmatprep.subr.mxu0 0.0
        %3379 = vmatpush2.msra.mxu0 0.0
        %3380 = vmatprep.subr.mxu0 0.0
        %3381 = vmatpush2.msra.mxu0 0.0
        %3382 = vmatprep.mubr.f32.mxu0 0.0
        %3383 = vmatmul.mubr.f32.gmra.mxu0 %v3316
        %v3384 = vpop.f32.mrf.mxu0
        %v3385 = vadd.f32 %v3314, %v3384
        %v3386 = vpop.f32.mrf.mxu0
        %3387 = vdwg.mxu0
        %vm3388 = vcmask 0
        %3389 = vst.msk [vmem:[%s356] sm:$0x1] %vm3388, %v3385
        %p3390 = scmp.lt.s32.totalorder %s25, 1
        %s3391 = scalar_select %p3390, %s25, 1
        %s3392 = scalar_lea.vmem %s6, %s3391
        // Predicated region
        $region65: #{tpu_custom_call.1} parent=43 // pred_check
          %p3393 = pneg %p184
        $region66: #{tpu_custom_call.1} parent=43 // pred_check_branch
          %3395 = sbr.rel (%p3393) target = $region68
        $region67: #{tpu_custom_call.1} parent=43 // pred_region
          _
        $region68: #{tpu_custom_call.1} parent=43 // pred_fallthru
          _
      $region44: #{tpu_custom_call.1} parent=5 // pred_fallthru
        _
      %p3396 = scmp.le.s32.totalorder 2, %s20
      // Predicated region
      $region69: #{tpu_custom_call.1} parent=5 // pred_check
        %p3397 = pneg %p3396
      $region70: #{tpu_custom_call.1} parent=5 // pred_check_branch
        %3399 = sbr.rel (%p3397) target = $region72
      $region71: #{tpu_custom_call.1} parent=5 // pred_region
        %s3400 = ssub.s32 %s20, 2
        // Predicated region
        $region73: #{tpu_custom_call.1} parent=71 // pred_check
          %p3401 = pneg %p190
        $region74: #{tpu_custom_call.1} parent=71 // pred_check_branch
          %3403 = sbr.rel (%p3401) target = $region76
        $region75: #{tpu_custom_call.1} parent=71 // pred_region
          %p3404 = scmp.lt.s32.totalorder %s26, 1
          %s3405 = scalar_select %p3404, %s26, 1
          %s3406 = scalar_lea.vmem %s6, %s3405
        $region76: #{tpu_custom_call.1} parent=71 // pred_fallthru
          _
      $region72: #{tpu_custom_call.1} parent=5 // pred_fallthru
        _
    $region6: #{tpu_custom_call.1} parent=1 // loop_footer
      %s24 = sadd.s32 1, %s20
    $region7: #{tpu_custom_call.1} parent=1 // loop_footer_branch
      %19 = sbr.rel target = $region3
    $region8: #{tpu_custom_call.1} parent=1 // loop_exit
      _
    %3407 = vsyncpa [#allocation3], 1
    %s3408 = scalar_lea.sflag [#allocation3], 1
    %3409 = vsyncpa %s3408, 1
    %3410 = vsyncpa [#allocation6], 1
    %s3411 = scalar_lea.sflag [#allocation6], 1
    %3412 = vsyncpa %s3411, 1
    %3413 = vsyncpa [#allocation9], 1
    %3414 = vsyncpa [#allocation4], 1
    %s3415 = scalar_lea.sflag [#allocation4], 1
    %3416 = vsyncpa %s3415, 1

</llo_original>
